<compile_context>
chip_gen: v7x
topology: tpu7x:2x2x1
jax: 0.10.0
libtpu: 0.0.40
codegen_flags: <defaults>
</compile_context>

<pallas_src>
import functools
import math

import jax
import jax.numpy as jnp
from jax.experimental import pallas as pl
from jax.experimental.pallas import tpu as pltpu

# ----- model hyper-parameters (small test config consistent with the module) --
D_MODEL = 32          # dim_model
N_HEAD = 4            # n_head   (D_MODEL % N_HEAD == 0)
DIM_FF = 64           # dim_feedforward
N_LAYERS = 2          # n_layers (all layers fused in one pallas_call)
MAX_CHARGE = 5        # charge embedding rows
AA_VOCAB = 29         # amino-acid symbols incl. '_' blank
PAD_IDX = AA_VOCAB    # padding_idx of aa_encoder (embedding row is zeros)
LN_EPS = 1e-5         # torch.nn.LayerNorm default eps
NEG = -1e30           # additive key-padding bias (exp underflows to exactly 0)
SEQ_PAD = 8           # pad sequence length to a multiple of this
MAX_BLOCK_B = 256     # sequences per grid step (upper bound; VMEM-capped below)
VMEM_BUDGET = 24 * 1024 * 1024   # per-block live-set budget (safe on v7x 64 MiB)
VMEM_CAP = 48 * 1024 * 1024      # max scoped-VMEM request (legal on all gens)


# ============================ Pallas kernel ==================================
def _pep_encoder_kernel(x_ref, kpb_ref,
                        wqkv_ref, bqkv_ref, wo_ref, bo_ref,
                        ln1w_ref, ln1b_ref,
                        w1_ref, b1_ref, w2_ref, b2_ref,
                        ln2w_ref, ln2b_ref,
                        o_ref, *, n_head, n_layers, block_b, seq_len):
    """All transformer-encoder layers for a block of `block_b` sequences.

    x_ref   : (block_b * seq_len, D)   f32 activation slab
    kpb_ref : (1, block_b, seq_len)    f32 additive key-padding bias
    weights : stacked over layers, matrices in bf16, biases/LN params in f32
    """
    D = x_ref.shape[-1]
    dh = D // n_head
    R = block_b * seq_len
    scale = 1.0 / math.sqrt(dh)

    xf = x_ref[...].astype(jnp.float32)                       # (R, D) residual, f32
    kp = kpb_ref[0]                                            # (block_b, seq_len)
    # merged (head, batch) additive bias — hoisted out of the layer loop
    bias_g = jnp.tile(kp[:, None, :], (n_head, 1, 1))          # (H*bb, 1, L)

    for l in range(n_layers):                                  # static unroll: fused layers
        # ---- fused QKV projection: one (R, D) @ (D, 3D) bf16 GEMM on the MXU ----
        qkv = jnp.dot(xf.astype(jnp.bfloat16), wqkv_ref[l],
                      preferred_element_type=jnp.float32) + bqkv_ref[l]   # (R, 3D)
        q = qkv[:, 0 * D:1 * D].reshape(block_b, seq_len, D)
        k = qkv[:, 1 * D:2 * D].reshape(block_b, seq_len, D)
        v = qkv[:, 2 * D:3 * D].reshape(block_b, seq_len, D)

        # ---- heads merged into one leading batch dim (head-major): (H*bb, L, dh) ----
        qh = jnp.concatenate([q[..., h * dh:(h + 1) * dh] for h in range(n_head)], axis=0)
        kh = jnp.concatenate([k[..., h * dh:(h + 1) * dh] for h in range(n_head)], axis=0)
        vh = jnp.concatenate([v[..., h * dh:(h + 1) * dh] for h in range(n_head)], axis=0)

        # ---- ONE batched score einsum + softmax + ONE batched PV einsum ----
        s = jnp.einsum('gqd,gkd->gqk', qh.astype(jnp.bfloat16), kh.astype(jnp.bfloat16),
                       preferred_element_type=jnp.float32) * scale         # (H*bb, L, L)
        s = s + bias_g                                         # mask padded key columns
        m = jnp.max(s, axis=-1, keepdims=True)
        p = jnp.exp(s - m)
        p = p * pl.reciprocal(jnp.sum(p, axis=-1, keepdims=True), approx=True)
        o = jnp.einsum('gqk,gkd->gqd', p.astype(jnp.bfloat16), vh.astype(jnp.bfloat16),
                       preferred_element_type=jnp.float32)                 # (H*bb, L, dh)

        # ---- re-assemble heads along lanes, single K=D output-projection GEMM ----
        o_cat = jnp.concatenate([o[h * block_b:(h + 1) * block_b] for h in range(n_head)],
                                axis=-1)                                   # (bb, L, D)
        attn = jnp.dot(o_cat.reshape(R, D).astype(jnp.bfloat16), wo_ref[l],
                       preferred_element_type=jnp.float32) + bo_ref[l]     # (R, D)

        # ---- residual + LayerNorm 1 (post-norm), f32 ----
        h1 = xf + attn
        mu1 = jnp.mean(h1, axis=-1, keepdims=True)
        var1 = jnp.mean((h1 - mu1) ** 2, axis=-1, keepdims=True)
        x1 = (h1 - mu1) * jax.lax.rsqrt(var1 + LN_EPS) * ln1w_ref[l] + ln1b_ref[l]

        # ---- feed-forward (ReLU), bf16 MXU operands, f32 accumulation ----
        f = jnp.dot(x1.astype(jnp.bfloat16), w1_ref[l],
                    preferred_element_type=jnp.float32) + b1_ref[l]
        f = jnp.maximum(f, 0.0)
        f = jnp.dot(f.astype(jnp.bfloat16), w2_ref[l],
                    preferred_element_type=jnp.float32) + b2_ref[l]

        # ---- residual + LayerNorm 2 ----
        h2 = x1 + f
        mu2 = jnp.mean(h2, axis=-1, keepdims=True)
        var2 = jnp.mean((h2 - mu2) ** 2, axis=-1, keepdims=True)
        xf = (h2 - mu2) * jax.lax.rsqrt(var2 + LN_EPS) * ln2w_ref[l] + ln2b_ref[l]

    o_ref[...] = xf.astype(o_ref.dtype)


def _vmem_bytes_estimate(block_b, Lp, n_layers):
    """Rough per-block live-set estimate (activations + scores + io + weights)."""
    rows = block_b * Lp
    G = N_HEAD * block_b
    act = rows * (10 * D_MODEL + 2 * DIM_FF) * 4              # residual/qkv/head/ffn tensors
    scores = G * Lp * Lp * 3 * 4                               # s, p (+slack)
    io = 2 * 2 * rows * D_MODEL * 4 + 2 * block_b * Lp * 4     # double-buffered in/out + bias
    weights = n_layers * (3 * D_MODEL * D_MODEL + D_MODEL * D_MODEL
                          + 2 * D_MODEL * DIM_FF) * 2 + n_layers * 12 * D_MODEL * 4
    return act + scores + io + weights


def transformer_encoder_pallas(x, kp_bias, params, block_b_max=MAX_BLOCK_B):
    """x: (B, L, D) f32, kp_bias: (B, L) f32 additive bias. Returns (B, L, D)."""
    B, L, D = x.shape
    n_layers = params["wqkv"].shape[0]

    # --- pad sequence length to a multiple of 8 (full-sublane tiles) ---
    Lp = -(-L // SEQ_PAD) * SEQ_PAD
    if Lp != L:
        x = jnp.pad(x, ((0, 0), (0, Lp - L), (0, 0)))
        kp_bias = jnp.pad(kp_bias, ((0, 0), (0, Lp - L)), constant_values=NEG)

    # --- VMEM-derived cap on block_b (keeps the live set inside v7x's 64 MiB) ---
    per_seq = (Lp * (10 * D_MODEL + 2 * DIM_FF) * 4
               + N_HEAD * Lp * Lp * 12 + 4 * Lp * D_MODEL * 4)
    block_b_max = max(1, min(block_b_max, VMEM_BUDGET // per_seq))

    # --- batch blocking: an EVEN number of >=2 grid steps (target 4) so that
    #     BlockSpec double-buffering overlaps DMA with compute and the
    #     "parallel" grid axis can be split across both v7x TensorCores. ---
    steps = pl.cdiv(B, block_b_max)
    steps = max(steps, min(4, B))
    steps = max(2, steps + (steps % 2))
    block_b = pl.cdiv(B, steps)
    B_pad = block_b * steps
    if B_pad != B:
        x = jnp.pad(x, ((0, B_pad - B), (0, 0), (0, 0)))
        kp_bias = jnp.pad(kp_bias, ((0, B_pad - B), (0, 0)))

    rows = block_b * Lp
    x_flat = x.reshape(B_pad * Lp, D)              # lane-dense 2-D activation slab
    kpb = kp_bias.reshape(steps, block_b, Lp)      # per-step bias blocks (full trailing dims)

    # bf16 weight matrices for the MXU; biases / LayerNorm params stay f32
    w_args = [params["wqkv"].astype(jnp.bfloat16), params["bqkv"],
              params["wo"].astype(jnp.bfloat16), params["bo"],
              params["ln1w"], params["ln1b"],
              params["w1"].astype(jnp.bfloat16), params["b1"],
              params["w2"].astype(jnp.bfloat16), params["b2"],
              params["ln2w"], params["ln2b"]]

    def _full(shape):
        nd = len(shape)
        return pl.BlockSpec(shape, lambda b, _nd=nd: (0,) * _nd)

    in_specs = ([pl.BlockSpec((rows, D), lambda b: (b, 0)),
                 pl.BlockSpec((1, block_b, Lp), lambda b: (b, 0, 0))]
                + [_full(w.shape) for w in w_args])

    # --- cost estimate (lets XLA schedule the JAX prologue/epilogue sensibly) ---
    R_total = B_pad * Lp
    dh = D // N_HEAD
    flops = n_layers * (2 * R_total * D * (3 * D)              # QKV
                        + 4 * B_pad * N_HEAD * Lp * Lp * dh    # QK^T + PV
                        + 2 * R_total * D * D                  # Wo
                        + 4 * R_total * D * DIM_FF)            # FFN (two GEMMs)
    transcendentals = n_layers * (B_pad * N_HEAD * Lp * Lp + 3 * R_total)
    bytes_accessed = (4 * (2 * R_total * D + B_pad * Lp)
                      + sum(int(w.size) * w.dtype.itemsize for w in w_args))

    vmem_limit = int(min(VMEM_CAP,
                         max(32 * 1024 * 1024,
                             2 * _vmem_bytes_estimate(block_b, Lp, n_layers))))

    out_flat = pl.pallas_call(
        functools.partial(_pep_encoder_kernel, n_head=N_HEAD, n_layers=n_layers,
                          block_b=block_b, seq_len=Lp),
        out_shape=jax.ShapeDtypeStruct((B_pad * Lp, D), jnp.float32),
        grid=(steps,),
        in_specs=in_specs,
        out_specs=pl.BlockSpec((rows, D), lambda b: (b, 0)),
        compiler_params=pltpu.CompilerParams(
            dimension_semantics=("parallel",),
            vmem_limit_bytes=vmem_limit),
        cost_estimate=pl.CostEstimate(flops=flops, transcendentals=transcendentals,
                                      bytes_accessed=bytes_accessed),
    )(x_flat, kpb, *w_args)

    return out_flat.reshape(B_pad, Lp, D)[:B, :L]


# ============================ parameter setup ================================
def _sinusoid_terms(d, min_wavelength, max_wavelength):
    n_sin = d // 2
    n_cos = d - n_sin
    base = min_wavelength / (2.0 * math.pi)
    scale = max_wavelength / min_wavelength
    sin_term = base * scale ** (jnp.arange(n_sin, dtype=jnp.float32) / (n_sin - 1))
    cos_term = base * scale ** (jnp.arange(n_cos, dtype=jnp.float32) / (n_cos - 1))
    return sin_term, cos_term


def init_params(key, d_model=D_MODEL, dff=DIM_FF, n_layers=N_LAYERS,
                max_charge=MAX_CHARGE, n_aa=AA_VOCAB):
    s = 0.05
    k = jax.random.split(key, 8)
    mass_sin, mass_cos = _sinusoid_terms(d_model, 0.001, 10000.0)   # MassEncoder
    pos_sin, pos_cos = _sinusoid_terms(d_model, 1.0, 10000.0)       # PositionalEncoder

    aa_emb = s * jax.random.normal(k[0], (n_aa + 1, d_model), jnp.float32)
    aa_emb = aa_emb.at[PAD_IDX].set(0.0)     # padding_idx row is zeros

    params = {
        "mass_sin": mass_sin, "mass_cos": mass_cos,
        "pos_sin": pos_sin, "pos_cos": pos_cos,
        "aa_emb": aa_emb,
        "charge_emb": s * jax.random.normal(k[7], (max_charge, d_model), jnp.float32),
        # layer weights stacked over layers, already transposed for x @ W + b
        "wqkv": s * jax.random.normal(k[1], (n_layers, d_model, 3 * d_model), jnp.float32),
        "bqkv": s * jax.random.normal(k[2], (n_layers, 1, 3 * d_model), jnp.float32),
        "wo": s * jax.random.normal(k[3], (n_layers, d_model, d_model), jnp.float32),
        "bo": s * jax.random.normal(k[4], (n_layers, 1, d_model), jnp.float32),
        "ln1w": jnp.ones((n_layers, 1, d_model), jnp.float32),
        "ln1b": jnp.zeros((n_layers, 1, d_model), jnp.float32),
        "w1": s * jax.random.normal(k[5], (n_layers, d_model, dff), jnp.float32),
        "b1": jnp.zeros((n_layers, 1, dff), jnp.float32),
        "w2": s * jax.random.normal(k[6], (n_layers, dff, d_model), jnp.float32),
        "b2": jnp.zeros((n_layers, 1, d_model), jnp.float32),
        "ln2w": jnp.ones((n_layers, 1, d_model), jnp.float32),
        "ln2b": jnp.zeros((n_layers, 1, d_model), jnp.float32),
    }
    return params


# ============================ forward pass ===================================
def _mass_encode(x, sin_term, cos_term):
    """Sinusoidal encoder: x has trailing dim 1, returns trailing dim D."""
    return jnp.concatenate([jnp.sin(x / sin_term), jnp.cos(x / cos_term)], axis=-1)


def _encode_tokens(tokens, precursors, params):
    """Prologue: embeddings + precursor token + mask + positional encoding."""
    aa = jnp.take(params["aa_emb"], tokens, axis=0)                      # (B, N, D)

    masses = _mass_encode(precursors[:, None, 0:1],
                          params["mass_sin"], params["mass_cos"])        # (B, 1, D)
    charge_idx = precursors[:, 1].astype(jnp.int32) - 1
    charges = jnp.take(params["charge_emb"], charge_idx, axis=0)         # (B, D)
    prec = masses + charges[:, None, :]                                  # (B, 1, D)

    encoded = jnp.concatenate([prec, aa], axis=1).astype(jnp.float32)    # (B, L, D)

    # key-padding mask computed BEFORE positional encoding (as in PyTorch)
    mask = encoded.sum(axis=2) == 0                                      # (B, L)
    kp_bias = jnp.where(mask, NEG, 0.0).astype(jnp.float32)

    L = encoded.shape[1]
    pos = jnp.arange(L, dtype=jnp.float32)[:, None]
    pe = jnp.concatenate([jnp.sin(pos / params["pos_sin"]),
                          jnp.cos(pos / params["pos_cos"])], axis=-1)    # (L, D)
    x = encoded + pe[None]
    return x, kp_bias, mask


def peptide_encoder_forward(tokens, precursors, params):
    """Returns (latent (B, n_aa+1, D), mask (B, n_aa+1) bool)."""
    x, kp_bias, mask = _encode_tokens(tokens, precursors, params)
    latent = transformer_encoder_pallas(x, kp_bias, params)              # Pallas kernel
    return latent, mask


# ============================ pure-JAX reference =============================
def _ref_layernorm(h, w, b):
    mu = jnp.mean(h, -1, keepdims=True)
    var = jnp.mean((h - mu) ** 2, -1, keepdims=True)
    return (h - mu) / jnp.sqrt(var + LN_EPS) * w + b


def _ref_transformer(x, kp_bias, params):
    hp = jax.lax.Precision.HIGHEST
    D = x.shape[-1]
    dh = D // N_HEAD
    bias = kp_bias[:, None, :]
    for l in range(params["wqkv"].shape[0]):
        qkv = jnp.einsum("bld,de->ble", x, params["wqkv"][l], precision=hp) + params["bqkv"][l]
        q, k, v = qkv[..., :D], qkv[..., D:2 * D], qkv[..., 2 * D:]
        outs = []
        for h in range(N_HEAD):
            sl = slice(h * dh, (h + 1) * dh)
            s = jnp.einsum("bqd,bkd->bqk", q[..., sl], k[..., sl], precision=hp) / math.sqrt(dh)
            s = s + bias
            p = jax.nn.softmax(s, axis=-1)
            outs.append(jnp.einsum("bqk,bkd->bqd", p, v[..., sl], precision=hp))
        attn = jnp.concatenate(outs, axis=-1)
        attn = jnp.einsum("bld,de->ble", attn, params["wo"][l], precision=hp) + params["bo"][l]
        x1 = _ref_layernorm(x + attn, params["ln1w"][l], params["ln1b"][l])
        f = jax.nn.relu(jnp.einsum("bld,df->blf", x1, params["w1"][l], precision=hp) + params["b1"][l])
        f = jnp.einsum("blf,fd->bld", f, params["w2"][l], precision=hp) + params["b2"][l]
        x = _ref_layernorm(x1 + f, params["ln2w"][l], params["ln2b"][l])
    return x


# ================================= main ======================================
if __name__ == "__main__":
    key = jax.random.PRNGKey(0)
    k_param, k_tok, k_mass, k_charge = jax.random.split(key, 4)

    B, N = 2, 8                       # batch of 2 peptides, up to 8 amino acids
    params = init_params(k_param)

    # token indices, right-padded with PAD_IDX (sequence 1 has 3 padding slots)
    tokens = jax.random.randint(k_tok, (B, N), 0, AA_VOCAB)
    pad_len = jnp.array([0, 3])
    col = jnp.arange(N)[None, :]
    tokens = jnp.where(col >= (N - pad_len)[:, None], PAD_IDX, tokens)

    prec_mass = jax.random.uniform(k_mass, (B,), jnp.float32, 300.0, 2000.0)
    prec_charge = jax.random.randint(k_charge, (B,), 1, MAX_CHARGE + 1).astype(jnp.float32)
    precursors = jnp.stack([prec_mass, prec_charge], axis=1)              # (B, 2)

    latent, mask = jax.jit(peptide_encoder_forward)(tokens, precursors, params)
    latent = jax.block_until_ready(latent)

    # sanity check against a pure-JAX f32 reference of the same math
    x_ref_in, kp_bias_ref, mask_ref = _encode_tokens(tokens, precursors, params)
    latent_ref = _ref_transformer(x_ref_in, kp_bias_ref, params)

    assert latent.shape == (B, N + 1, D_MODEL)
    assert mask.shape == (B, N + 1)
    assert bool(jnp.all(mask == mask_ref))
    assert bool(mask[1, -1]) and not bool(mask[0, 0]) and not bool(mask[1, 0])
    assert bool(jnp.all(jnp.isfinite(latent)))
    max_err = float(jnp.max(jnp.abs(latent - latent_ref)))
    assert max_err < 5e-2, f"kernel vs reference mismatch: {max_err}"

    print("KERNEL_OK")
</pallas_src>

<mosaic_0001>
module attributes {stable_mosaic.version = 11 : i64} {
  func.func @_pep_encoder_kernel(%arg0: i32, %arg1: memref<16x32xf32, #tpu.memory_space<vmem>>, %arg2: memref<1x1x16xf32, #tpu.memory_space<vmem>>, %arg3: memref<2x32x96xbf16, #tpu.memory_space<vmem>>, %arg4: memref<2x1x96xf32, #tpu.memory_space<vmem>>, %arg5: memref<2x32x32xbf16, #tpu.memory_space<vmem>>, %arg6: memref<2x1x32xf32, #tpu.memory_space<vmem>>, %arg7: memref<2x1x32xf32, #tpu.memory_space<vmem>>, %arg8: memref<2x1x32xf32, #tpu.memory_space<vmem>>, %arg9: memref<2x32x64xbf16, #tpu.memory_space<vmem>>, %arg10: memref<2x1x64xf32, #tpu.memory_space<vmem>>, %arg11: memref<2x64x32xbf16, #tpu.memory_space<vmem>>, %arg12: memref<2x1x32xf32, #tpu.memory_space<vmem>>, %arg13: memref<2x1x32xf32, #tpu.memory_space<vmem>>, %arg14: memref<2x1x32xf32, #tpu.memory_space<vmem>>, %arg15: memref<16x32xf32, #tpu.memory_space<vmem>>) attributes {dimension_semantics = [#tpu.dimension_semantics<parallel>], iteration_bounds = array<i64: 2>, scalar_prefetch = 0 : i64, scratch_operands = 0 : i64, tpu.core_type = #tpu.core_type<tc>, window_params = [{transform_indices = @transform_0, window_bounds = array<i64: 16, 32>}, {transform_indices = @transform_1, window_bounds = array<i64: 1, 1, 16>}, {pipeline_mode = #tpu.pipeline_mode<synchronous>, transform_indices = @transform_2, window_bounds = array<i64: 2, 32, 96>}, {pipeline_mode = #tpu.pipeline_mode<synchronous>, transform_indices = @transform_3, window_bounds = array<i64: 2, 1, 96>}, {pipeline_mode = #tpu.pipeline_mode<synchronous>, transform_indices = @transform_4, window_bounds = array<i64: 2, 32, 32>}, {pipeline_mode = #tpu.pipeline_mode<synchronous>, transform_indices = @transform_5, window_bounds = array<i64: 2, 1, 32>}, {pipeline_mode = #tpu.pipeline_mode<synchronous>, transform_indices = @transform_6, window_bounds = array<i64: 2, 1, 32>}, {pipeline_mode = #tpu.pipeline_mode<synchronous>, transform_indices = @transform_7, window_bounds = array<i64: 2, 1, 32>}, {pipeline_mode = #tpu.pipeline_mode<synchronous>, transform_indices = @transform_8, window_bounds = array<i64: 2, 32, 64>}, {pipeline_mode = #tpu.pipeline_mode<synchronous>, transform_indices = @transform_9, window_bounds = array<i64: 2, 1, 64>}, {pipeline_mode = #tpu.pipeline_mode<synchronous>, transform_indices = @transform_10, window_bounds = array<i64: 2, 64, 32>}, {pipeline_mode = #tpu.pipeline_mode<synchronous>, transform_indices = @transform_11, window_bounds = array<i64: 2, 1, 32>}, {pipeline_mode = #tpu.pipeline_mode<synchronous>, transform_indices = @transform_12, window_bounds = array<i64: 2, 1, 32>}, {pipeline_mode = #tpu.pipeline_mode<synchronous>, transform_indices = @transform_13, window_bounds = array<i64: 2, 1, 32>}, {transform_indices = @transform_14, window_bounds = array<i64: 16, 32>}]} {
    %c0 = arith.constant 0 : index
    %c0_0 = arith.constant 0 : index
    %0 = vector.load %arg1[%c0, %c0_0] : memref<16x32xf32, #tpu.memory_space<vmem>>, vector<16x32xf32>
    %c0_1 = arith.constant 0 : index
    %c0_2 = arith.constant 0 : index
    %c0_3 = arith.constant 0 : index
    %1 = vector.load %arg2[%c0_1, %c0_2, %c0_3] : memref<1x1x16xf32, #tpu.memory_space<vmem>>, vector<1x1x16xf32>
    %2 = vector.shape_cast %1 : vector<1x1x16xf32> to vector<1x16xf32>
    %3 = vector.shape_cast %2 : vector<1x16xf32> to vector<1x1x16xf32>
    %4 = tpu.concatenate %3, %3, %3, %3 in 0 : vector<1x1x16xf32>, vector<1x1x16xf32>, vector<1x1x16xf32>, vector<1x1x16xf32> -> vector<4x1x16xf32>
    %5 = arith.truncf %0 : vector<16x32xf32> to vector<16x32xbf16>
    %c0_4 = arith.constant 0 : index
    %c0_5 = arith.constant 0 : index
    %c0_6 = arith.constant 0 : index
    %6 = vector.load %arg3[%c0_4, %c0_5, %c0_6] : memref<2x32x96xbf16, #tpu.memory_space<vmem>>, vector<1x32x96xbf16>
    %7 = vector.shape_cast %6 : vector<1x32x96xbf16> to vector<32x96xbf16>
    %cst = arith.constant dense<0.000000e+00> : vector<16x96xf32>
    %8 = tpu.matmul %5, %7, %cst {dimension_numbers = #tpu.dot_dimension_numbers<[1], [0], [0], [1], [0, 0, 1, 1], [], []>} : vector<16x32xbf16>, vector<32x96xbf16>, vector<16x96xf32> -> vector<16x96xf32>
    %c0_7 = arith.constant 0 : index
    %c0_8 = arith.constant 0 : index
    %c0_9 = arith.constant 0 : index
    %9 = vector.load %arg4[%c0_7, %c0_8, %c0_9] : memref<2x1x96xf32, #tpu.memory_space<vmem>>, vector<1x1x96xf32>
    %10 = vector.shape_cast %9 : vector<1x1x96xf32> to vector<1x96xf32>
    %11 = vector.broadcast %10 : vector<1x96xf32> to vector<16x96xf32>
    %12 = arith.addf %8, %11 : vector<16x96xf32>
    %13 = vector.extract_strided_slice %12 {offsets = [0, 0], sizes = [16, 32], strides = [1, 1]} : vector<16x96xf32> to vector<16x32xf32>
    %14 = vector.shape_cast %13 : vector<16x32xf32> to vector<1x16x32xf32>
    %15 = vector.extract_strided_slice %12 {offsets = [0, 32], sizes = [16, 32], strides = [1, 1]} : vector<16x96xf32> to vector<16x32xf32>
    %16 = vector.shape_cast %15 : vector<16x32xf32> to vector<1x16x32xf32>
    %17 = vector.extract_strided_slice %12 {offsets = [0, 64], sizes = [16, 32], strides = [1, 1]} : vector<16x96xf32> to vector<16x32xf32>
    %18 = vector.shape_cast %17 : vector<16x32xf32> to vector<1x16x32xf32>
    %19 = vector.extract_strided_slice %14 {offsets = [0, 0, 0], sizes = [1, 16, 8], strides = [1, 1, 1]} : vector<1x16x32xf32> to vector<1x16x8xf32>
    %20 = vector.extract_strided_slice %14 {offsets = [0, 0, 8], sizes = [1, 16, 8], strides = [1, 1, 1]} : vector<1x16x32xf32> to vector<1x16x8xf32>
    %21 = vector.extract_strided_slice %14 {offsets = [0, 0, 16], sizes = [1, 16, 8], strides = [1, 1, 1]} : vector<1x16x32xf32> to vector<1x16x8xf32>
    %22 = vector.extract_strided_slice %14 {offsets = [0, 0, 24], sizes = [1, 16, 8], strides = [1, 1, 1]} : vector<1x16x32xf32> to vector<1x16x8xf32>
    %23 = tpu.concatenate %19, %20, %21, %22 in 0 : vector<1x16x8xf32>, vector<1x16x8xf32>, vector<1x16x8xf32>, vector<1x16x8xf32> -> vector<4x16x8xf32>
    %24 = vector.extract_strided_slice %16 {offsets = [0, 0, 0], sizes = [1, 16, 8], strides = [1, 1, 1]} : vector<1x16x32xf32> to vector<1x16x8xf32>
    %25 = vector.extract_strided_slice %16 {offsets = [0, 0, 8], sizes = [1, 16, 8], strides = [1, 1, 1]} : vector<1x16x32xf32> to vector<1x16x8xf32>
    %26 = vector.extract_strided_slice %16 {offsets = [0, 0, 16], sizes = [1, 16, 8], strides = [1, 1, 1]} : vector<1x16x32xf32> to vector<1x16x8xf32>
    %27 = vector.extract_strided_slice %16 {offsets = [0, 0, 24], sizes = [1, 16, 8], strides = [1, 1, 1]} : vector<1x16x32xf32> to vector<1x16x8xf32>
    %28 = tpu.concatenate %24, %25, %26, %27 in 0 : vector<1x16x8xf32>, vector<1x16x8xf32>, vector<1x16x8xf32>, vector<1x16x8xf32> -> vector<4x16x8xf32>
    %29 = vector.extract_strided_slice %18 {offsets = [0, 0, 0], sizes = [1, 16, 8], strides = [1, 1, 1]} : vector<1x16x32xf32> to vector<1x16x8xf32>
    %30 = vector.extract_strided_slice %18 {offsets = [0, 0, 8], sizes = [1, 16, 8], strides = [1, 1, 1]} : vector<1x16x32xf32> to vector<1x16x8xf32>
    %31 = vector.extract_strided_slice %18 {offsets = [0, 0, 16], sizes = [1, 16, 8], strides = [1, 1, 1]} : vector<1x16x32xf32> to vector<1x16x8xf32>
    %32 = vector.extract_strided_slice %18 {offsets = [0, 0, 24], sizes = [1, 16, 8], strides = [1, 1, 1]} : vector<1x16x32xf32> to vector<1x16x8xf32>
    %33 = tpu.concatenate %29, %30, %31, %32 in 0 : vector<1x16x8xf32>, vector<1x16x8xf32>, vector<1x16x8xf32>, vector<1x16x8xf32> -> vector<4x16x8xf32>
    %34 = arith.truncf %23 : vector<4x16x8xf32> to vector<4x16x8xbf16>
    %35 = arith.truncf %28 : vector<4x16x8xf32> to vector<4x16x8xbf16>
    "tpu.trace_start"() <{level = 10 : i32, message = "gqd,gkd->gqk"}> : () -> ()
    %cst_10 = arith.constant dense<0.000000e+00> : vector<4x16x16xf32>
    %36 = tpu.matmul %34, %35, %cst_10 {dimension_numbers = #tpu.dot_dimension_numbers<[2], [2], [1], [1], [0, 0, 0, 1, 1, 1], [0], [0]>} : vector<4x16x8xbf16>, vector<4x16x8xbf16>, vector<4x16x16xf32> -> vector<4x16x16xf32>
    "tpu.trace_stop"() : () -> ()
    %cst_11 = arith.constant 0.353553385 : f32
    %37 = vector.broadcast %cst_11 : f32 to vector<4x16x16xf32>
    %38 = arith.mulf %36, %37 : vector<4x16x16xf32>
    %39 = vector.broadcast %4 : vector<4x1x16xf32> to vector<4x16x16xf32>
    %40 = arith.addf %38, %39 : vector<4x16x16xf32>
    %cst_12 = arith.constant dense<0xFF800000> : vector<4x16xf32>
    %41 = vector.multi_reduction <maximumf>, %40, %cst_12 [2] : vector<4x16x16xf32> to vector<4x16xf32>
    %42 = vector.shape_cast %41 : vector<4x16xf32> to vector<4x16x1xf32>
    %43 = vector.broadcast %42 : vector<4x16x1xf32> to vector<4x16x16xf32>
    %44 = arith.subf %40, %43 : vector<4x16x16xf32>
    %45 = math.exp %44 : vector<4x16x16xf32>
    %cst_13 = arith.constant dense<0.000000e+00> : vector<4x16xf32>
    %46 = vector.multi_reduction <add>, %45, %cst_13 [2] : vector<4x16x16xf32> to vector<4x16xf32>
    %47 = vector.shape_cast %46 : vector<4x16xf32> to vector<4x16x1xf32>
    %48 = tpu.reciprocal %47 {approx = true} : vector<4x16x1xf32> -> vector<4x16x1xf32>
    %49 = vector.broadcast %48 : vector<4x16x1xf32> to vector<4x16x16xf32>
    %50 = arith.mulf %45, %49 : vector<4x16x16xf32>
    %51 = arith.truncf %50 : vector<4x16x16xf32> to vector<4x16x16xbf16>
    %52 = arith.truncf %33 : vector<4x16x8xf32> to vector<4x16x8xbf16>
    "tpu.trace_start"() <{level = 10 : i32, message = "gqk,gkd->gqd"}> : () -> ()
    %cst_14 = arith.constant dense<0.000000e+00> : vector<4x16x8xf32>
    %53 = tpu.matmul %51, %52, %cst_14 {dimension_numbers = #tpu.dot_dimension_numbers<[2], [1], [1], [2], [0, 0, 0, 1, 1, 2], [0], [0]>} : vector<4x16x16xbf16>, vector<4x16x8xbf16>, vector<4x16x8xf32> -> vector<4x16x8xf32>
    "tpu.trace_stop"() : () -> ()
    %54 = vector.extract_strided_slice %53 {offsets = [0, 0, 0], sizes = [1, 16, 8], strides = [1, 1, 1]} : vector<4x16x8xf32> to vector<1x16x8xf32>
    %55 = vector.extract_strided_slice %53 {offsets = [1, 0, 0], sizes = [1, 16, 8], strides = [1, 1, 1]} : vector<4x16x8xf32> to vector<1x16x8xf32>
    %56 = vector.extract_strided_slice %53 {offsets = [2, 0, 0], sizes = [1, 16, 8], strides = [1, 1, 1]} : vector<4x16x8xf32> to vector<1x16x8xf32>
    %57 = vector.extract_strided_slice %53 {offsets = [3, 0, 0], sizes = [1, 16, 8], strides = [1, 1, 1]} : vector<4x16x8xf32> to vector<1x16x8xf32>
    %58 = tpu.concatenate %54, %55, %56, %57 in 2 : vector<1x16x8xf32>, vector<1x16x8xf32>, vector<1x16x8xf32>, vector<1x16x8xf32> -> vector<1x16x32xf32>
    %59 = vector.shape_cast %58 : vector<1x16x32xf32> to vector<16x32xf32>
    %60 = arith.truncf %59 : vector<16x32xf32> to vector<16x32xbf16>
    %c0_15 = arith.constant 0 : index
    %c0_16 = arith.constant 0 : index
    %c0_17 = arith.constant 0 : index
    %61 = vector.load %arg5[%c0_15, %c0_16, %c0_17] : memref<2x32x32xbf16, #tpu.memory_space<vmem>>, vector<1x32x32xbf16>
    %62 = vector.shape_cast %61 : vector<1x32x32xbf16> to vector<32x32xbf16>
    %cst_18 = arith.constant dense<0.000000e+00> : vector<16x32xf32>
    %63 = tpu.matmul %60, %62, %cst_18 {dimension_numbers = #tpu.dot_dimension_numbers<[1], [0], [0], [1], [0, 0, 1, 1], [], []>} : vector<16x32xbf16>, vector<32x32xbf16>, vector<16x32xf32> -> vector<16x32xf32>
    %c0_19 = arith.constant 0 : index
    %c0_20 = arith.constant 0 : index
    %c0_21 = arith.constant 0 : index
    %64 = vector.load %arg6[%c0_19, %c0_20, %c0_21] : memref<2x1x32xf32, #tpu.memory_space<vmem>>, vector<1x1x32xf32>
    %65 = vector.shape_cast %64 : vector<1x1x32xf32> to vector<1x32xf32>
    %66 = vector.broadcast %65 : vector<1x32xf32> to vector<16x32xf32>
    %67 = arith.addf %63, %66 : vector<16x32xf32>
    %68 = arith.addf %0, %67 : vector<16x32xf32>
    %cst_22 = arith.constant dense<0.000000e+00> : vector<16xf32>
    %69 = vector.multi_reduction <add>, %68, %cst_22 [1] : vector<16x32xf32> to vector<16xf32>
    %70 = vector.shape_cast %69 : vector<16xf32> to vector<16x1xf32>
    %cst_23 = arith.constant 3.200000e+01 : f32
    %71 = vector.broadcast %cst_23 : f32 to vector<16x1xf32>
    %72 = arith.divf %70, %71 : vector<16x1xf32>
    %73 = vector.broadcast %72 : vector<16x1xf32> to vector<16x32xf32>
    %74 = arith.subf %68, %73 : vector<16x32xf32>
    %75 = arith.mulf %74, %74 : vector<16x32xf32>
    %cst_24 = arith.constant dense<0.000000e+00> : vector<16xf32>
    %76 = vector.multi_reduction <add>, %75, %cst_24 [1] : vector<16x32xf32> to vector<16xf32>
    %77 = vector.shape_cast %76 : vector<16xf32> to vector<16x1xf32>
    %cst_25 = arith.constant 3.200000e+01 : f32
    %78 = vector.broadcast %cst_25 : f32 to vector<16x1xf32>
    %79 = arith.divf %77, %78 : vector<16x1xf32>
    %80 = vector.broadcast %72 : vector<16x1xf32> to vector<16x32xf32>
    %81 = arith.subf %68, %80 : vector<16x32xf32>
    %cst_26 = arith.constant 9.99999974E-6 : f32
    %82 = vector.broadcast %cst_26 : f32 to vector<16x1xf32>
    %83 = arith.addf %79, %82 : vector<16x1xf32>
    %84 = math.rsqrt %83 : vector<16x1xf32>
    %85 = vector.broadcast %84 : vector<16x1xf32> to vector<16x32xf32>
    %86 = arith.mulf %81, %85 : vector<16x32xf32>
    %c0_27 = arith.constant 0 : index
    %c0_28 = arith.constant 0 : index
    %c0_29 = arith.constant 0 : index
    %87 = vector.load %arg7[%c0_27, %c0_28, %c0_29] : memref<2x1x32xf32, #tpu.memory_space<vmem>>, vector<1x1x32xf32>
    %88 = vector.shape_cast %87 : vector<1x1x32xf32> to vector<1x32xf32>
    %89 = vector.broadcast %88 : vector<1x32xf32> to vector<16x32xf32>
    %90 = arith.mulf %86, %89 : vector<16x32xf32>
    %c0_30 = arith.constant 0 : index
    %c0_31 = arith.constant 0 : index
    %c0_32 = arith.constant 0 : index
    %91 = vector.load %arg8[%c0_30, %c0_31, %c0_32] : memref<2x1x32xf32, #tpu.memory_space<vmem>>, vector<1x1x32xf32>
    %92 = vector.shape_cast %91 : vector<1x1x32xf32> to vector<1x32xf32>
    %93 = vector.broadcast %92 : vector<1x32xf32> to vector<16x32xf32>
    %94 = arith.addf %90, %93 : vector<16x32xf32>
    %95 = arith.truncf %94 : vector<16x32xf32> to vector<16x32xbf16>
    %c0_33 = arith.constant 0 : index
    %c0_34 = arith.constant 0 : index
    %c0_35 = arith.constant 0 : index
    %96 = vector.load %arg9[%c0_33, %c0_34, %c0_35] : memref<2x32x64xbf16, #tpu.memory_space<vmem>>, vector<1x32x64xbf16>
    %97 = vector.shape_cast %96 : vector<1x32x64xbf16> to vector<32x64xbf16>
    %cst_36 = arith.constant dense<0.000000e+00> : vector<16x64xf32>
    %98 = tpu.matmul %95, %97, %cst_36 {dimension_numbers = #tpu.dot_dimension_numbers<[1], [0], [0], [1], [0, 0, 1, 1], [], []>} : vector<16x32xbf16>, vector<32x64xbf16>, vector<16x64xf32> -> vector<16x64xf32>
    %c0_37 = arith.constant 0 : index
    %c0_38 = arith.constant 0 : index
    %c0_39 = arith.constant 0 : index
    %99 = vector.load %arg10[%c0_37, %c0_38, %c0_39] : memref<2x1x64xf32, #tpu.memory_space<vmem>>, vector<1x1x64xf32>
    %100 = vector.shape_cast %99 : vector<1x1x64xf32> to vector<1x64xf32>
    %101 = vector.broadcast %100 : vector<1x64xf32> to vector<16x64xf32>
    %102 = arith.addf %98, %101 : vector<16x64xf32>
    %cst_40 = arith.constant 0.000000e+00 : f32
    %103 = vector.broadcast %cst_40 : f32 to vector<16x64xf32>
    %104 = arith.maximumf %102, %103 : vector<16x64xf32>
    %105 = arith.truncf %104 : vector<16x64xf32> to vector<16x64xbf16>
    %c0_41 = arith.constant 0 : index
    %c0_42 = arith.constant 0 : index
    %c0_43 = arith.constant 0 : index
    %106 = vector.load %arg11[%c0_41, %c0_42, %c0_43] : memref<2x64x32xbf16, #tpu.memory_space<vmem>>, vector<1x64x32xbf16>
    %107 = vector.shape_cast %106 : vector<1x64x32xbf16> to vector<64x32xbf16>
    %cst_44 = arith.constant dense<0.000000e+00> : vector<16x32xf32>
    %108 = tpu.matmul %105, %107, %cst_44 {dimension_numbers = #tpu.dot_dimension_numbers<[1], [0], [0], [1], [0, 0, 1, 1], [], []>} : vector<16x64xbf16>, vector<64x32xbf16>, vector<16x32xf32> -> vector<16x32xf32>
    %c0_45 = arith.constant 0 : index
    %c0_46 = arith.constant 0 : index
    %c0_47 = arith.constant 0 : index
    %109 = vector.load %arg12[%c0_45, %c0_46, %c0_47] : memref<2x1x32xf32, #tpu.memory_space<vmem>>, vector<1x1x32xf32>
    %110 = vector.shape_cast %109 : vector<1x1x32xf32> to vector<1x32xf32>
    %111 = vector.broadcast %110 : vector<1x32xf32> to vector<16x32xf32>
    %112 = arith.addf %108, %111 : vector<16x32xf32>
    %113 = arith.addf %94, %112 : vector<16x32xf32>
    %cst_48 = arith.constant dense<0.000000e+00> : vector<16xf32>
    %114 = vector.multi_reduction <add>, %113, %cst_48 [1] : vector<16x32xf32> to vector<16xf32>
    %115 = vector.shape_cast %114 : vector<16xf32> to vector<16x1xf32>
    %cst_49 = arith.constant 3.200000e+01 : f32
    %116 = vector.broadcast %cst_49 : f32 to vector<16x1xf32>
    %117 = arith.divf %115, %116 : vector<16x1xf32>
    %118 = vector.broadcast %117 : vector<16x1xf32> to vector<16x32xf32>
    %119 = arith.subf %113, %118 : vector<16x32xf32>
    %120 = arith.mulf %119, %119 : vector<16x32xf32>
    %cst_50 = arith.constant dense<0.000000e+00> : vector<16xf32>
    %121 = vector.multi_reduction <add>, %120, %cst_50 [1] : vector<16x32xf32> to vector<16xf32>
    %122 = vector.shape_cast %121 : vector<16xf32> to vector<16x1xf32>
    %cst_51 = arith.constant 3.200000e+01 : f32
    %123 = vector.broadcast %cst_51 : f32 to vector<16x1xf32>
    %124 = arith.divf %122, %123 : vector<16x1xf32>
    %125 = vector.broadcast %117 : vector<16x1xf32> to vector<16x32xf32>
    %126 = arith.subf %113, %125 : vector<16x32xf32>
    %cst_52 = arith.constant 9.99999974E-6 : f32
    %127 = vector.broadcast %cst_52 : f32 to vector<16x1xf32>
    %128 = arith.addf %124, %127 : vector<16x1xf32>
    %129 = math.rsqrt %128 : vector<16x1xf32>
    %130 = vector.broadcast %129 : vector<16x1xf32> to vector<16x32xf32>
    %131 = arith.mulf %126, %130 : vector<16x32xf32>
    %c0_53 = arith.constant 0 : index
    %c0_54 = arith.constant 0 : index
    %c0_55 = arith.constant 0 : index
    %132 = vector.load %arg13[%c0_53, %c0_54, %c0_55] : memref<2x1x32xf32, #tpu.memory_space<vmem>>, vector<1x1x32xf32>
    %133 = vector.shape_cast %132 : vector<1x1x32xf32> to vector<1x32xf32>
    %134 = vector.broadcast %133 : vector<1x32xf32> to vector<16x32xf32>
    %135 = arith.mulf %131, %134 : vector<16x32xf32>
    %c0_56 = arith.constant 0 : index
    %c0_57 = arith.constant 0 : index
    %c0_58 = arith.constant 0 : index
    %136 = vector.load %arg14[%c0_56, %c0_57, %c0_58] : memref<2x1x32xf32, #tpu.memory_space<vmem>>, vector<1x1x32xf32>
    %137 = vector.shape_cast %136 : vector<1x1x32xf32> to vector<1x32xf32>
    %138 = vector.broadcast %137 : vector<1x32xf32> to vector<16x32xf32>
    %139 = arith.addf %135, %138 : vector<16x32xf32>
    %140 = arith.truncf %139 : vector<16x32xf32> to vector<16x32xbf16>
    %c1 = arith.constant 1 : index
    %c0_59 = arith.constant 0 : index
    %c0_60 = arith.constant 0 : index
    %141 = vector.load %arg3[%c1, %c0_59, %c0_60] : memref<2x32x96xbf16, #tpu.memory_space<vmem>>, vector<1x32x96xbf16>
    %142 = vector.shape_cast %141 : vector<1x32x96xbf16> to vector<32x96xbf16>
    %cst_61 = arith.constant dense<0.000000e+00> : vector<16x96xf32>
    %143 = tpu.matmul %140, %142, %cst_61 {dimension_numbers = #tpu.dot_dimension_numbers<[1], [0], [0], [1], [0, 0, 1, 1], [], []>} : vector<16x32xbf16>, vector<32x96xbf16>, vector<16x96xf32> -> vector<16x96xf32>
    %c1_62 = arith.constant 1 : index
    %c0_63 = arith.constant 0 : index
    %c0_64 = arith.constant 0 : index
    %144 = vector.load %arg4[%c1_62, %c0_63, %c0_64] : memref<2x1x96xf32, #tpu.memory_space<vmem>>, vector<1x1x96xf32>
    %145 = vector.shape_cast %144 : vector<1x1x96xf32> to vector<1x96xf32>
    %146 = vector.broadcast %145 : vector<1x96xf32> to vector<16x96xf32>
    %147 = arith.addf %143, %146 : vector<16x96xf32>
    %148 = vector.extract_strided_slice %147 {offsets = [0, 0], sizes = [16, 32], strides = [1, 1]} : vector<16x96xf32> to vector<16x32xf32>
    %149 = vector.shape_cast %148 : vector<16x32xf32> to vector<1x16x32xf32>
    %150 = vector.extract_strided_slice %147 {offsets = [0, 32], sizes = [16, 32], strides = [1, 1]} : vector<16x96xf32> to vector<16x32xf32>
    %151 = vector.shape_cast %150 : vector<16x32xf32> to vector<1x16x32xf32>
    %152 = vector.extract_strided_slice %147 {offsets = [0, 64], sizes = [16, 32], strides = [1, 1]} : vector<16x96xf32> to vector<16x32xf32>
    %153 = vector.shape_cast %152 : vector<16x32xf32> to vector<1x16x32xf32>
    %154 = vector.extract_strided_slice %149 {offsets = [0, 0, 0], sizes = [1, 16, 8], strides = [1, 1, 1]} : vector<1x16x32xf32> to vector<1x16x8xf32>
    %155 = vector.extract_strided_slice %149 {offsets = [0, 0, 8], sizes = [1, 16, 8], strides = [1, 1, 1]} : vector<1x16x32xf32> to vector<1x16x8xf32>
    %156 = vector.extract_strided_slice %149 {offsets = [0, 0, 16], sizes = [1, 16, 8], strides = [1, 1, 1]} : vector<1x16x32xf32> to vector<1x16x8xf32>
    %157 = vector.extract_strided_slice %149 {offsets = [0, 0, 24], sizes = [1, 16, 8], strides = [1, 1, 1]} : vector<1x16x32xf32> to vector<1x16x8xf32>
    %158 = tpu.concatenate %154, %155, %156, %157 in 0 : vector<1x16x8xf32>, vector<1x16x8xf32>, vector<1x16x8xf32>, vector<1x16x8xf32> -> vector<4x16x8xf32>
    %159 = vector.extract_strided_slice %151 {offsets = [0, 0, 0], sizes = [1, 16, 8], strides = [1, 1, 1]} : vector<1x16x32xf32> to vector<1x16x8xf32>
    %160 = vector.extract_strided_slice %151 {offsets = [0, 0, 8], sizes = [1, 16, 8], strides = [1, 1, 1]} : vector<1x16x32xf32> to vector<1x16x8xf32>
    %161 = vector.extract_strided_slice %151 {offsets = [0, 0, 16], sizes = [1, 16, 8], strides = [1, 1, 1]} : vector<1x16x32xf32> to vector<1x16x8xf32>
    %162 = vector.extract_strided_slice %151 {offsets = [0, 0, 24], sizes = [1, 16, 8], strides = [1, 1, 1]} : vector<1x16x32xf32> to vector<1x16x8xf32>
    %163 = tpu.concatenate %159, %160, %161, %162 in 0 : vector<1x16x8xf32>, vector<1x16x8xf32>, vector<1x16x8xf32>, vector<1x16x8xf32> -> vector<4x16x8xf32>
    %164 = vector.extract_strided_slice %153 {offsets = [0, 0, 0], sizes = [1, 16, 8], strides = [1, 1, 1]} : vector<1x16x32xf32> to vector<1x16x8xf32>
    %165 = vector.extract_strided_slice %153 {offsets = [0, 0, 8], sizes = [1, 16, 8], strides = [1, 1, 1]} : vector<1x16x32xf32> to vector<1x16x8xf32>
    %166 = vector.extract_strided_slice %153 {offsets = [0, 0, 16], sizes = [1, 16, 8], strides = [1, 1, 1]} : vector<1x16x32xf32> to vector<1x16x8xf32>
    %167 = vector.extract_strided_slice %153 {offsets = [0, 0, 24], sizes = [1, 16, 8], strides = [1, 1, 1]} : vector<1x16x32xf32> to vector<1x16x8xf32>
    %168 = tpu.concatenate %164, %165, %166, %167 in 0 : vector<1x16x8xf32>, vector<1x16x8xf32>, vector<1x16x8xf32>, vector<1x16x8xf32> -> vector<4x16x8xf32>
    %169 = arith.truncf %158 : vector<4x16x8xf32> to vector<4x16x8xbf16>
    %170 = arith.truncf %163 : vector<4x16x8xf32> to vector<4x16x8xbf16>
    "tpu.trace_start"() <{level = 10 : i32, message = "gqd,gkd->gqk"}> : () -> ()
    %cst_65 = arith.constant dense<0.000000e+00> : vector<4x16x16xf32>
    %171 = tpu.matmul %169, %170, %cst_65 {dimension_numbers = #tpu.dot_dimension_numbers<[2], [2], [1], [1], [0, 0, 0, 1, 1, 1], [0], [0]>} : vector<4x16x8xbf16>, vector<4x16x8xbf16>, vector<4x16x16xf32> -> vector<4x16x16xf32>
    "tpu.trace_stop"() : () -> ()
    %cst_66 = arith.constant 0.353553385 : f32
    %172 = vector.broadcast %cst_66 : f32 to vector<4x16x16xf32>
    %173 = arith.mulf %171, %172 : vector<4x16x16xf32>
    %174 = vector.broadcast %4 : vector<4x1x16xf32> to vector<4x16x16xf32>
    %175 = arith.addf %173, %174 : vector<4x16x16xf32>
    %cst_67 = arith.constant dense<0xFF800000> : vector<4x16xf32>
    %176 = vector.multi_reduction <maximumf>, %175, %cst_67 [2] : vector<4x16x16xf32> to vector<4x16xf32>
    %177 = vector.shape_cast %176 : vector<4x16xf32> to vector<4x16x1xf32>
    %178 = vector.broadcast %177 : vector<4x16x1xf32> to vector<4x16x16xf32>
    %179 = arith.subf %175, %178 : vector<4x16x16xf32>
    %180 = math.exp %179 : vector<4x16x16xf32>
    %cst_68 = arith.constant dense<0.000000e+00> : vector<4x16xf32>
    %181 = vector.multi_reduction <add>, %180, %cst_68 [2] : vector<4x16x16xf32> to vector<4x16xf32>
    %182 = vector.shape_cast %181 : vector<4x16xf32> to vector<4x16x1xf32>
    %183 = tpu.reciprocal %182 {approx = true} : vector<4x16x1xf32> -> vector<4x16x1xf32>
    %184 = vector.broadcast %183 : vector<4x16x1xf32> to vector<4x16x16xf32>
    %185 = arith.mulf %180, %184 : vector<4x16x16xf32>
    %186 = arith.truncf %185 : vector<4x16x16xf32> to vector<4x16x16xbf16>
    %187 = arith.truncf %168 : vector<4x16x8xf32> to vector<4x16x8xbf16>
    "tpu.trace_start"() <{level = 10 : i32, message = "gqk,gkd->gqd"}> : () -> ()
    %cst_69 = arith.constant dense<0.000000e+00> : vector<4x16x8xf32>
    %188 = tpu.matmul %186, %187, %cst_69 {dimension_numbers = #tpu.dot_dimension_numbers<[2], [1], [1], [2], [0, 0, 0, 1, 1, 2], [0], [0]>} : vector<4x16x16xbf16>, vector<4x16x8xbf16>, vector<4x16x8xf32> -> vector<4x16x8xf32>
    "tpu.trace_stop"() : () -> ()
    %189 = vector.extract_strided_slice %188 {offsets = [0, 0, 0], sizes = [1, 16, 8], strides = [1, 1, 1]} : vector<4x16x8xf32> to vector<1x16x8xf32>
    %190 = vector.extract_strided_slice %188 {offsets = [1, 0, 0], sizes = [1, 16, 8], strides = [1, 1, 1]} : vector<4x16x8xf32> to vector<1x16x8xf32>
    %191 = vector.extract_strided_slice %188 {offsets = [2, 0, 0], sizes = [1, 16, 8], strides = [1, 1, 1]} : vector<4x16x8xf32> to vector<1x16x8xf32>
    %192 = vector.extract_strided_slice %188 {offsets = [3, 0, 0], sizes = [1, 16, 8], strides = [1, 1, 1]} : vector<4x16x8xf32> to vector<1x16x8xf32>
    %193 = tpu.concatenate %189, %190, %191, %192 in 2 : vector<1x16x8xf32>, vector<1x16x8xf32>, vector<1x16x8xf32>, vector<1x16x8xf32> -> vector<1x16x32xf32>
    %194 = vector.shape_cast %193 : vector<1x16x32xf32> to vector<16x32xf32>
    %195 = arith.truncf %194 : vector<16x32xf32> to vector<16x32xbf16>
    %c1_70 = arith.constant 1 : index
    %c0_71 = arith.constant 0 : index
    %c0_72 = arith.constant 0 : index
    %196 = vector.load %arg5[%c1_70, %c0_71, %c0_72] : memref<2x32x32xbf16, #tpu.memory_space<vmem>>, vector<1x32x32xbf16>
    %197 = vector.shape_cast %196 : vector<1x32x32xbf16> to vector<32x32xbf16>
    %cst_73 = arith.constant dense<0.000000e+00> : vector<16x32xf32>
    %198 = tpu.matmul %195, %197, %cst_73 {dimension_numbers = #tpu.dot_dimension_numbers<[1], [0], [0], [1], [0, 0, 1, 1], [], []>} : vector<16x32xbf16>, vector<32x32xbf16>, vector<16x32xf32> -> vector<16x32xf32>
    %c1_74 = arith.constant 1 : index
    %c0_75 = arith.constant 0 : index
    %c0_76 = arith.constant 0 : index
    %199 = vector.load %arg6[%c1_74, %c0_75, %c0_76] : memref<2x1x32xf32, #tpu.memory_space<vmem>>, vector<1x1x32xf32>
    %200 = vector.shape_cast %199 : vector<1x1x32xf32> to vector<1x32xf32>
    %201 = vector.broadcast %200 : vector<1x32xf32> to vector<16x32xf32>
    %202 = arith.addf %198, %201 : vector<16x32xf32>
    %203 = arith.addf %139, %202 : vector<16x32xf32>
    %cst_77 = arith.constant dense<0.000000e+00> : vector<16xf32>
    %204 = vector.multi_reduction <add>, %203, %cst_77 [1] : vector<16x32xf32> to vector<16xf32>
    %205 = vector.shape_cast %204 : vector<16xf32> to vector<16x1xf32>
    %cst_78 = arith.constant 3.200000e+01 : f32
    %206 = vector.broadcast %cst_78 : f32 to vector<16x1xf32>
    %207 = arith.divf %205, %206 : vector<16x1xf32>
    %208 = vector.broadcast %207 : vector<16x1xf32> to vector<16x32xf32>
    %209 = arith.subf %203, %208 : vector<16x32xf32>
    %210 = arith.mulf %209, %209 : vector<16x32xf32>
    %cst_79 = arith.constant dense<0.000000e+00> : vector<16xf32>
    %211 = vector.multi_reduction <add>, %210, %cst_79 [1] : vector<16x32xf32> to vector<16xf32>
    %212 = vector.shape_cast %211 : vector<16xf32> to vector<16x1xf32>
    %cst_80 = arith.constant 3.200000e+01 : f32
    %213 = vector.broadcast %cst_80 : f32 to vector<16x1xf32>
    %214 = arith.divf %212, %213 : vector<16x1xf32>
    %215 = vector.broadcast %207 : vector<16x1xf32> to vector<16x32xf32>
    %216 = arith.subf %203, %215 : vector<16x32xf32>
    %cst_81 = arith.constant 9.99999974E-6 : f32
    %217 = vector.broadcast %cst_81 : f32 to vector<16x1xf32>
    %218 = arith.addf %214, %217 : vector<16x1xf32>
    %219 = math.rsqrt %218 : vector<16x1xf32>
    %220 = vector.broadcast %219 : vector<16x1xf32> to vector<16x32xf32>
    %221 = arith.mulf %216, %220 : vector<16x32xf32>
    %c1_82 = arith.constant 1 : index
    %c0_83 = arith.constant 0 : index
    %c0_84 = arith.constant 0 : index
    %222 = vector.load %arg7[%c1_82, %c0_83, %c0_84] : memref<2x1x32xf32, #tpu.memory_space<vmem>>, vector<1x1x32xf32>
    %223 = vector.shape_cast %222 : vector<1x1x32xf32> to vector<1x32xf32>
    %224 = vector.broadcast %223 : vector<1x32xf32> to vector<16x32xf32>
    %225 = arith.mulf %221, %224 : vector<16x32xf32>
    %c1_85 = arith.constant 1 : index
    %c0_86 = arith.constant 0 : index
    %c0_87 = arith.constant 0 : index
    %226 = vector.load %arg8[%c1_85, %c0_86, %c0_87] : memref<2x1x32xf32, #tpu.memory_space<vmem>>, vector<1x1x32xf32>
    %227 = vector.shape_cast %226 : vector<1x1x32xf32> to vector<1x32xf32>
    %228 = vector.broadcast %227 : vector<1x32xf32> to vector<16x32xf32>
    %229 = arith.addf %225, %228 : vector<16x32xf32>
    %230 = arith.truncf %229 : vector<16x32xf32> to vector<16x32xbf16>
    %c1_88 = arith.constant 1 : index
    %c0_89 = arith.constant 0 : index
    %c0_90 = arith.constant 0 : index
    %231 = vector.load %arg9[%c1_88, %c0_89, %c0_90] : memref<2x32x64xbf16, #tpu.memory_space<vmem>>, vector<1x32x64xbf16>
    %232 = vector.shape_cast %231 : vector<1x32x64xbf16> to vector<32x64xbf16>
    %cst_91 = arith.constant dense<0.000000e+00> : vector<16x64xf32>
    %233 = tpu.matmul %230, %232, %cst_91 {dimension_numbers = #tpu.dot_dimension_numbers<[1], [0], [0], [1], [0, 0, 1, 1], [], []>} : vector<16x32xbf16>, vector<32x64xbf16>, vector<16x64xf32> -> vector<16x64xf32>
    %c1_92 = arith.constant 1 : index
    %c0_93 = arith.constant 0 : index
    %c0_94 = arith.constant 0 : index
    %234 = vector.load %arg10[%c1_92, %c0_93, %c0_94] : memref<2x1x64xf32, #tpu.memory_space<vmem>>, vector<1x1x64xf32>
    %235 = vector.shape_cast %234 : vector<1x1x64xf32> to vector<1x64xf32>
    %236 = vector.broadcast %235 : vector<1x64xf32> to vector<16x64xf32>
    %237 = arith.addf %233, %236 : vector<16x64xf32>
    %cst_95 = arith.constant 0.000000e+00 : f32
    %238 = vector.broadcast %cst_95 : f32 to vector<16x64xf32>
    %239 = arith.maximumf %237, %238 : vector<16x64xf32>
    %240 = arith.truncf %239 : vector<16x64xf32> to vector<16x64xbf16>
    %c1_96 = arith.constant 1 : index
    %c0_97 = arith.constant 0 : index
    %c0_98 = arith.constant 0 : index
    %241 = vector.load %arg11[%c1_96, %c0_97, %c0_98] : memref<2x64x32xbf16, #tpu.memory_space<vmem>>, vector<1x64x32xbf16>
    %242 = vector.shape_cast %241 : vector<1x64x32xbf16> to vector<64x32xbf16>
    %cst_99 = arith.constant dense<0.000000e+00> : vector<16x32xf32>
    %243 = tpu.matmul %240, %242, %cst_99 {dimension_numbers = #tpu.dot_dimension_numbers<[1], [0], [0], [1], [0, 0, 1, 1], [], []>} : vector<16x64xbf16>, vector<64x32xbf16>, vector<16x32xf32> -> vector<16x32xf32>
    %c1_100 = arith.constant 1 : index
    %c0_101 = arith.constant 0 : index
    %c0_102 = arith.constant 0 : index
    %244 = vector.load %arg12[%c1_100, %c0_101, %c0_102] : memref<2x1x32xf32, #tpu.memory_space<vmem>>, vector<1x1x32xf32>
    %245 = vector.shape_cast %244 : vector<1x1x32xf32> to vector<1x32xf32>
    %246 = vector.broadcast %245 : vector<1x32xf32> to vector<16x32xf32>
    %247 = arith.addf %243, %246 : vector<16x32xf32>
    %248 = arith.addf %229, %247 : vector<16x32xf32>
    %cst_103 = arith.constant dense<0.000000e+00> : vector<16xf32>
    %249 = vector.multi_reduction <add>, %248, %cst_103 [1] : vector<16x32xf32> to vector<16xf32>
    %250 = vector.shape_cast %249 : vector<16xf32> to vector<16x1xf32>
    %cst_104 = arith.constant 3.200000e+01 : f32
    %251 = vector.broadcast %cst_104 : f32 to vector<16x1xf32>
    %252 = arith.divf %250, %251 : vector<16x1xf32>
    %253 = vector.broadcast %252 : vector<16x1xf32> to vector<16x32xf32>
    %254 = arith.subf %248, %253 : vector<16x32xf32>
    %255 = arith.mulf %254, %254 : vector<16x32xf32>
    %cst_105 = arith.constant dense<0.000000e+00> : vector<16xf32>
    %256 = vector.multi_reduction <add>, %255, %cst_105 [1] : vector<16x32xf32> to vector<16xf32>
    %257 = vector.shape_cast %256 : vector<16xf32> to vector<16x1xf32>
    %cst_106 = arith.constant 3.200000e+01 : f32
    %258 = vector.broadcast %cst_106 : f32 to vector<16x1xf32>
    %259 = arith.divf %257, %258 : vector<16x1xf32>
    %260 = vector.broadcast %252 : vector<16x1xf32> to vector<16x32xf32>
    %261 = arith.subf %248, %260 : vector<16x32xf32>
    %cst_107 = arith.constant 9.99999974E-6 : f32
    %262 = vector.broadcast %cst_107 : f32 to vector<16x1xf32>
    %263 = arith.addf %259, %262 : vector<16x1xf32>
    %264 = math.rsqrt %263 : vector<16x1xf32>
    %265 = vector.broadcast %264 : vector<16x1xf32> to vector<16x32xf32>
    %266 = arith.mulf %261, %265 : vector<16x32xf32>
    %c1_108 = arith.constant 1 : index
    %c0_109 = arith.constant 0 : index
    %c0_110 = arith.constant 0 : index
    %267 = vector.load %arg13[%c1_108, %c0_109, %c0_110] : memref<2x1x32xf32, #tpu.memory_space<vmem>>, vector<1x1x32xf32>
    %268 = vector.shape_cast %267 : vector<1x1x32xf32> to vector<1x32xf32>
    %269 = vector.broadcast %268 : vector<1x32xf32> to vector<16x32xf32>
    %270 = arith.mulf %266, %269 : vector<16x32xf32>
    %c1_111 = arith.constant 1 : index
    %c0_112 = arith.constant 0 : index
    %c0_113 = arith.constant 0 : index
    %271 = vector.load %arg14[%c1_111, %c0_112, %c0_113] : memref<2x1x32xf32, #tpu.memory_space<vmem>>, vector<1x1x32xf32>
    %272 = vector.shape_cast %271 : vector<1x1x32xf32> to vector<1x32xf32>
    %273 = vector.broadcast %272 : vector<1x32xf32> to vector<16x32xf32>
    %274 = arith.addf %270, %273 : vector<16x32xf32>
    %c0_114 = arith.constant 0 : index
    %c0_115 = arith.constant 0 : index
    %275 = vector.load %arg15[%c0_114, %c0_115] : memref<16x32xf32, #tpu.memory_space<vmem>>, vector<16x32xf32>
    tpu.vector_store %arg15[%c0_114, %c0_115], %274 {strides = array<i32>} : memref<16x32xf32, #tpu.memory_space<vmem>>, vector<16x32xf32>,
    return
  }
  func.func @transform_0(%arg0: i32) -> (i32, i32) {
    %c0_i32 = arith.constant 0 : i32
    %c0_i32_0 = arith.constant 0 : i32
    return %arg0, %c0_i32 : i32, i32
  }
  func.func @transform_1(%arg0: i32) -> (i32, i32, i32) {
    %c0_i32 = arith.constant 0 : i32
    %c0_i32_0 = arith.constant 0 : i32
    %c0_i32_1 = arith.constant 0 : i32
    return %arg0, %c0_i32, %c0_i32_0 : i32, i32, i32
  }
  func.func @transform_2(%arg0: i32) -> (i32, i32, i32) {
    %c0_i32 = arith.constant 0 : i32
    %c0_i32_0 = arith.constant 0 : i32
    %c0_i32_1 = arith.constant 0 : i32
    %c0_i32_2 = arith.constant 0 : i32
    return %c0_i32, %c0_i32_0, %c0_i32_1 : i32, i32, i32
  }
  func.func @transform_3(%arg0: i32) -> (i32, i32, i32) {
    %c0_i32 = arith.constant 0 : i32
    %c0_i32_0 = arith.constant 0 : i32
    %c0_i32_1 = arith.constant 0 : i32
    %c0_i32_2 = arith.constant 0 : i32
    return %c0_i32, %c0_i32_0, %c0_i32_1 : i32, i32, i32
  }
  func.func @transform_4(%arg0: i32) -> (i32, i32, i32) {
    %c0_i32 = arith.constant 0 : i32
    %c0_i32_0 = arith.constant 0 : i32
    %c0_i32_1 = arith.constant 0 : i32
    %c0_i32_2 = arith.constant 0 : i32
    return %c0_i32, %c0_i32_0, %c0_i32_1 : i32, i32, i32
  }
  func.func @transform_5(%arg0: i32) -> (i32, i32, i32) {
    %c0_i32 = arith.constant 0 : i32
    %c0_i32_0 = arith.constant 0 : i32
    %c0_i32_1 = arith.constant 0 : i32
    %c0_i32_2 = arith.constant 0 : i32
    return %c0_i32, %c0_i32_0, %c0_i32_1 : i32, i32, i32
  }
  func.func @transform_6(%arg0: i32) -> (i32, i32, i32) {
    %c0_i32 = arith.constant 0 : i32
    %c0_i32_0 = arith.constant 0 : i32
    %c0_i32_1 = arith.constant 0 : i32
    %c0_i32_2 = arith.constant 0 : i32
    return %c0_i32, %c0_i32_0, %c0_i32_1 : i32, i32, i32
  }
  func.func @transform_7(%arg0: i32) -> (i32, i32, i32) {
    %c0_i32 = arith.constant 0 : i32
    %c0_i32_0 = arith.constant 0 : i32
    %c0_i32_1 = arith.constant 0 : i32
    %c0_i32_2 = arith.constant 0 : i32
    return %c0_i32, %c0_i32_0, %c0_i32_1 : i32, i32, i32
  }
  func.func @transform_8(%arg0: i32) -> (i32, i32, i32) {
    %c0_i32 = arith.constant 0 : i32
    %c0_i32_0 = arith.constant 0 : i32
    %c0_i32_1 = arith.constant 0 : i32
    %c0_i32_2 = arith.constant 0 : i32
    return %c0_i32, %c0_i32_0, %c0_i32_1 : i32, i32, i32
  }
  func.func @transform_9(%arg0: i32) -> (i32, i32, i32) {
    %c0_i32 = arith.constant 0 : i32
    %c0_i32_0 = arith.constant 0 : i32
    %c0_i32_1 = arith.constant 0 : i32
    %c0_i32_2 = arith.constant 0 : i32
    return %c0_i32, %c0_i32_0, %c0_i32_1 : i32, i32, i32
  }
  func.func @transform_10(%arg0: i32) -> (i32, i32, i32) {
    %c0_i32 = arith.constant 0 : i32
    %c0_i32_0 = arith.constant 0 : i32
    %c0_i32_1 = arith.constant 0 : i32
    %c0_i32_2 = arith.constant 0 : i32
    return %c0_i32, %c0_i32_0, %c0_i32_1 : i32, i32, i32
  }
  func.func @transform_11(%arg0: i32) -> (i32, i32, i32) {
    %c0_i32 = arith.constant 0 : i32
    %c0_i32_0 = arith.constant 0 : i32
    %c0_i32_1 = arith.constant 0 : i32
    %c0_i32_2 = arith.constant 0 : i32
    return %c0_i32, %c0_i32_0, %c0_i32_1 : i32, i32, i32
  }
  func.func @transform_12(%arg0: i32) -> (i32, i32, i32) {
    %c0_i32 = arith.constant 0 : i32
    %c0_i32_0 = arith.constant 0 : i32
    %c0_i32_1 = arith.constant 0 : i32
    %c0_i32_2 = arith.constant 0 : i32
    return %c0_i32, %c0_i32_0, %c0_i32_1 : i32, i32, i32
  }
  func.func @transform_13(%arg0: i32) -> (i32, i32, i32) {
    %c0_i32 = arith.constant 0 : i32
    %c0_i32_0 = arith.constant 0 : i32
    %c0_i32_1 = arith.constant 0 : i32
    %c0_i32_2 = arith.constant 0 : i32
    return %c0_i32, %c0_i32_0, %c0_i32_1 : i32, i32, i32
  }
  func.func @transform_14(%arg0: i32) -> (i32, i32) {
    %c0_i32 = arith.constant 0 : i32
    %c0_i32_0 = arith.constant 0 : i32
    return %arg0, %c0_i32 : i32, i32
  }
}

</mosaic_0001>

<llo_original>
// kernel: peptide_encoder_forward.1
$region0: #{peptide_encoder_forward.1}
  #allocation0 [shape = 'u32[]', space=smem, size = 0x4, offset = 0x4, fixed_abs, tag = 'smem constant byte address 0x4 - core index']
  #allocation1 [shape = 'u32[144,128]{1,0:T(1,128)}', space=vmem, size = 0x12000, scoped, tag = 'internal scratch']
  %s0 = inlined_call_operand.vmem [shape: f32[32,32], index: 0, kind: input, shape index: {}]
  %s1 = inlined_call_operand.vmem [shape: f32[2,1,16], index: 1, kind: input, shape index: {}]
  %s2 = inlined_call_operand.vmem [shape: bf16[2,32,96], index: 2, kind: input, shape index: {}]
  %s3 = inlined_call_operand.vmem [shape: f32[2,1,96], index: 3, kind: input, shape index: {}]
  %s4 = inlined_call_operand.vmem [shape: bf16[2,32,32], index: 4, kind: input, shape index: {}]
  %s5 = inlined_call_operand.vmem [shape: f32[2,1,32], index: 5, kind: input, shape index: {}]
  %s6 = inlined_call_operand.vmem [shape: f32[2,1,32], index: 6, kind: input, shape index: {}]
  %s7 = inlined_call_operand.vmem [shape: f32[2,1,32], index: 7, kind: input, shape index: {}]
  %s8 = inlined_call_operand.vmem [shape: bf16[2,32,64], index: 8, kind: input, shape index: {}]
  %s9 = inlined_call_operand.vmem [shape: f32[2,1,64], index: 9, kind: input, shape index: {}]
  %s10 = inlined_call_operand.vmem [shape: bf16[2,64,32], index: 10, kind: input, shape index: {}]
  %s11 = inlined_call_operand.vmem [shape: f32[2,1,32], index: 11, kind: input, shape index: {}]
  %s12 = inlined_call_operand.vmem [shape: f32[2,1,32], index: 12, kind: input, shape index: {}]
  %s13 = inlined_call_operand.vmem [shape: f32[2,1,32], index: 13, kind: input, shape index: {}]
  %s14 = inlined_call_operand.vmem [shape: f32[32,32], index: 14, kind: output, shape index: {}]
  %s15 = sld [smem:[#allocation0]]
  $region89: #{peptide_encoder_forward.1} parent=0
    _
  %s17 = ssub.s32 1, %s15
  %s18 = scalar_select 0, %s17, %s15
  loop: start=0, step=1, limit=4
  $region2: #{peptide_encoder_forward.1} parent=0 // loop_pre_header
    _
  $region3: #{peptide_encoder_forward.1} parent=0 // loop_header
    %s20 = sphi 0, %s24
    %p21 = scmp.ge.s32.totalorder %s20, 4
    %s30 = sphi 0, %s32
    %s33 = sphi 0, %s30
    %s34 = sphi 0, %s33
    %s50 = sphi 0, %s34
    %s56 = sphi 0, %s58
    %s59 = sphi 0, %s56
    %s60 = sphi 0, %s59
    %s76 = sphi 0, %s60
    %s80 = sphi 0, %s80
    %s82 = sphi 0, %s80
    %s83 = sphi 0, %s82
    %s97 = sphi 0, %s83
    %s101 = sphi 0, %s101
    %s103 = sphi 0, %s101
    %s104 = sphi 0, %s103
    %s118 = sphi 0, %s104
    %s122 = sphi 0, %s122
    %s124 = sphi 0, %s122
    %s125 = sphi 0, %s124
    %s139 = sphi 0, %s125
    %s143 = sphi 0, %s143
    %s145 = sphi 0, %s143
    %s146 = sphi 0, %s145
    %s160 = sphi 0, %s146
    %s164 = sphi 0, %s164
    %s166 = sphi 0, %s164
    %s167 = sphi 0, %s166
    %s181 = sphi 0, %s167
    %s185 = sphi 0, %s185
    %s187 = sphi 0, %s185
    %s188 = sphi 0, %s187
    %s202 = sphi 0, %s188
    %s206 = sphi 0, %s206
    %s208 = sphi 0, %s206
    %s209 = sphi 0, %s208
    %s223 = sphi 0, %s209
    %s227 = sphi 0, %s227
    %s229 = sphi 0, %s227
    %s230 = sphi 0, %s229
    %s244 = sphi 0, %s230
    %s248 = sphi 0, %s248
    %s250 = sphi 0, %s248
    %s251 = sphi 0, %s250
    %s265 = sphi 0, %s251
    %s269 = sphi 0, %s269
    %s271 = sphi 0, %s269
    %s272 = sphi 0, %s271
    %s286 = sphi 0, %s272
    %s290 = sphi 0, %s290
    %s292 = sphi 0, %s290
    %s293 = sphi 0, %s292
    %s307 = sphi 0, %s293
    %s311 = sphi 0, %s311
    %s313 = sphi 0, %s311
    %s314 = sphi 0, %s313
    %s328 = sphi 0, %s314
    %s334 = sphi 0, %s336
    %s337 = sphi 0, %s334
    %s338 = sphi 0, %s337
    %s354 = sphi 0, %s338
  $region4: #{peptide_encoder_forward.1} parent=0 // loop_header_branch
    %23 = sbr.rel (%p21) target = $region8
  $region5: #{peptide_encoder_forward.1} parent=0 // loop_body
    %s25 = ssub.s32 %s20, 1
    %s26 = ssub.s32 %s20, 2
    %s27 = sadd.s32 %s20, 1
    %s28 = ssub.s32 %s20, %s27
    %p29 = scmp.eq.s32.totalorder %s28, 0
    %s31 = sadd.s32 %s30, 1
    %s32 = scalar_select %p29, %s30, %s31
    %p35 = pneg %p29
    %p36 = scmp.eq.s32.totalorder %s20, 1
    %p37 = por %p35, %p36
    %p38 = scmp.ne.s32.totalorder %s30, %s33
    %p39 = scmp.eq.s32.totalorder %s20, 0
    %p40 = por %p38, %p39
    %p41 = scmp.ne.s32.totalorder %s30, %s33
    %p42 = scmp.eq.s32.totalorder %s25, 1
    %p43 = por %p41, %p42
    %p44 = scmp.ne.s32.totalorder %s33, %s34
    %p45 = scmp.eq.s32.totalorder %s25, 0
    %p46 = por %p44, %p45
    %p47 = scmp.ne.s32.totalorder %s33, %s34
    %p48 = scmp.eq.s32.totalorder %s26, 1
    %p49 = por %p47, %p48
    %p51 = scmp.ne.s32.totalorder %s34, %s50
    %p52 = scmp.eq.s32.totalorder %s26, 0
    %p53 = por %p51, %p52
    %s54 = ssub.s32 %s20, %s27
    %p55 = scmp.eq.s32.totalorder %s54, 0
    %s57 = sadd.s32 %s56, 1
    %s58 = scalar_select %p55, %s56, %s57
    %p61 = pneg %p55
    %p62 = scmp.eq.s32.totalorder %s20, 1
    %p63 = por %p61, %p62
    %p64 = scmp.ne.s32.totalorder %s56, %s59
    %p65 = scmp.eq.s32.totalorder %s20, 0
    %p66 = por %p64, %p65
    %p67 = scmp.ne.s32.totalorder %s56, %s59
    %p68 = scmp.eq.s32.totalorder %s25, 1
    %p69 = por %p67, %p68
    %p70 = scmp.ne.s32.totalorder %s59, %s60
    %p71 = scmp.eq.s32.totalorder %s25, 0
    %p72 = por %p70, %p71
    %p73 = scmp.ne.s32.totalorder %s59, %s60
    %p74 = scmp.eq.s32.totalorder %s26, 1
    %p75 = por %p73, %p74
    %p77 = scmp.ne.s32.totalorder %s60, %s76
    %p78 = scmp.eq.s32.totalorder %s26, 0
    %p79 = por %p77, %p78
    %s81 = sadd.s32 %s80, 1
    %p84 = scmp.eq.s32.totalorder %s20, 1
    %p85 = scmp.ne.s32.totalorder %s80, %s82
    %p86 = scmp.eq.s32.totalorder %s20, 0
    %p87 = por %p85, %p86
    %p88 = scmp.ne.s32.totalorder %s80, %s82
    %p89 = scmp.eq.s32.totalorder %s25, 1
    %p90 = por %p88, %p89
    %p91 = scmp.ne.s32.totalorder %s82, %s83
    %p92 = scmp.eq.s32.totalorder %s25, 0
    %p93 = por %p91, %p92
    %p94 = scmp.ne.s32.totalorder %s82, %s83
    %p95 = scmp.eq.s32.totalorder %s26, 1
    %p96 = por %p94, %p95
    %p98 = scmp.ne.s32.totalorder %s83, %s97
    %p99 = scmp.eq.s32.totalorder %s26, 0
    %p100 = por %p98, %p99
    %s102 = sadd.s32 %s101, 1
    %p105 = scmp.eq.s32.totalorder %s20, 1
    %p106 = scmp.ne.s32.totalorder %s101, %s103
    %p107 = scmp.eq.s32.totalorder %s20, 0
    %p108 = por %p106, %p107
    %p109 = scmp.ne.s32.totalorder %s101, %s103
    %p110 = scmp.eq.s32.totalorder %s25, 1
    %p111 = por %p109, %p110
    %p112 = scmp.ne.s32.totalorder %s103, %s104
    %p113 = scmp.eq.s32.totalorder %s25, 0
    %p114 = por %p112, %p113
    %p115 = scmp.ne.s32.totalorder %s103, %s104
    %p116 = scmp.eq.s32.totalorder %s26, 1
    %p117 = por %p115, %p116
    %p119 = scmp.ne.s32.totalorder %s104, %s118
    %p120 = scmp.eq.s32.totalorder %s26, 0
    %p121 = por %p119, %p120
    %s123 = sadd.s32 %s122, 1
    %p126 = scmp.eq.s32.totalorder %s20, 1
    %p127 = scmp.ne.s32.totalorder %s122, %s124
    %p128 = scmp.eq.s32.totalorder %s20, 0
    %p129 = por %p127, %p128
    %p130 = scmp.ne.s32.totalorder %s122, %s124
    %p131 = scmp.eq.s32.totalorder %s25, 1
    %p132 = por %p130, %p131
    %p133 = scmp.ne.s32.totalorder %s124, %s125
    %p134 = scmp.eq.s32.totalorder %s25, 0
    %p135 = por %p133, %p134
    %p136 = scmp.ne.s32.totalorder %s124, %s125
    %p137 = scmp.eq.s32.totalorder %s26, 1
    %p138 = por %p136, %p137
    %p140 = scmp.ne.s32.totalorder %s125, %s139
    %p141 = scmp.eq.s32.totalorder %s26, 0
    %p142 = por %p140, %p141
    %s144 = sadd.s32 %s143, 1
    %p147 = scmp.eq.s32.totalorder %s20, 1
    %p148 = scmp.ne.s32.totalorder %s143, %s145
    %p149 = scmp.eq.s32.totalorder %s20, 0
    %p150 = por %p148, %p149
    %p151 = scmp.ne.s32.totalorder %s143, %s145
    %p152 = scmp.eq.s32.totalorder %s25, 1
    %p153 = por %p151, %p152
    %p154 = scmp.ne.s32.totalorder %s145, %s146
    %p155 = scmp.eq.s32.totalorder %s25, 0
    %p156 = por %p154, %p155
    %p157 = scmp.ne.s32.totalorder %s145, %s146
    %p158 = scmp.eq.s32.totalorder %s26, 1
    %p159 = por %p157, %p158
    %p161 = scmp.ne.s32.totalorder %s146, %s160
    %p162 = scmp.eq.s32.totalorder %s26, 0
    %p163 = por %p161, %p162
    %s165 = sadd.s32 %s164, 1
    %p168 = scmp.eq.s32.totalorder %s20, 1
    %p169 = scmp.ne.s32.totalorder %s164, %s166
    %p170 = scmp.eq.s32.totalorder %s20, 0
    %p171 = por %p169, %p170
    %p172 = scmp.ne.s32.totalorder %s164, %s166
    %p173 = scmp.eq.s32.totalorder %s25, 1
    %p174 = por %p172, %p173
    %p175 = scmp.ne.s32.totalorder %s166, %s167
    %p176 = scmp.eq.s32.totalorder %s25, 0
    %p177 = por %p175, %p176
    %p178 = scmp.ne.s32.totalorder %s166, %s167
    %p179 = scmp.eq.s32.totalorder %s26, 1
    %p180 = por %p178, %p179
    %p182 = scmp.ne.s32.totalorder %s167, %s181
    %p183 = scmp.eq.s32.totalorder %s26, 0
    %p184 = por %p182, %p183
    %s186 = sadd.s32 %s185, 1
    %p189 = scmp.eq.s32.totalorder %s20, 1
    %p190 = scmp.ne.s32.totalorder %s185, %s187
    %p191 = scmp.eq.s32.totalorder %s20, 0
    %p192 = por %p190, %p191
    %p193 = scmp.ne.s32.totalorder %s185, %s187
    %p194 = scmp.eq.s32.totalorder %s25, 1
    %p195 = por %p193, %p194
    %p196 = scmp.ne.s32.totalorder %s187, %s188
    %p197 = scmp.eq.s32.totalorder %s25, 0
    %p198 = por %p196, %p197
    %p199 = scmp.ne.s32.totalorder %s187, %s188
    %p200 = scmp.eq.s32.totalorder %s26, 1
    %p201 = por %p199, %p200
    %p203 = scmp.ne.s32.totalorder %s188, %s202
    %p204 = scmp.eq.s32.totalorder %s26, 0
    %p205 = por %p203, %p204
    %s207 = sadd.s32 %s206, 1
    %p210 = scmp.eq.s32.totalorder %s20, 1
    %p211 = scmp.ne.s32.totalorder %s206, %s208
    %p212 = scmp.eq.s32.totalorder %s20, 0
    %p213 = por %p211, %p212
    %p214 = scmp.ne.s32.totalorder %s206, %s208
    %p215 = scmp.eq.s32.totalorder %s25, 1
    %p216 = por %p214, %p215
    %p217 = scmp.ne.s32.totalorder %s208, %s209
    %p218 = scmp.eq.s32.totalorder %s25, 0
    %p219 = por %p217, %p218
    %p220 = scmp.ne.s32.totalorder %s208, %s209
    %p221 = scmp.eq.s32.totalorder %s26, 1
    %p222 = por %p220, %p221
    %p224 = scmp.ne.s32.totalorder %s209, %s223
    %p225 = scmp.eq.s32.totalorder %s26, 0
    %p226 = por %p224, %p225
    %s228 = sadd.s32 %s227, 1
    %p231 = scmp.eq.s32.totalorder %s20, 1
    %p232 = scmp.ne.s32.totalorder %s227, %s229
    %p233 = scmp.eq.s32.totalorder %s20, 0
    %p234 = por %p232, %p233
    %p235 = scmp.ne.s32.totalorder %s227, %s229
    %p236 = scmp.eq.s32.totalorder %s25, 1
    %p237 = por %p235, %p236
    %p238 = scmp.ne.s32.totalorder %s229, %s230
    %p239 = scmp.eq.s32.totalorder %s25, 0
    %p240 = por %p238, %p239
    %p241 = scmp.ne.s32.totalorder %s229, %s230
    %p242 = scmp.eq.s32.totalorder %s26, 1
    %p243 = por %p241, %p242
    %p245 = scmp.ne.s32.totalorder %s230, %s244
    %p246 = scmp.eq.s32.totalorder %s26, 0
    %p247 = por %p245, %p246
    %s249 = sadd.s32 %s248, 1
    %p252 = scmp.eq.s32.totalorder %s20, 1
    %p253 = scmp.ne.s32.totalorder %s248, %s250
    %p254 = scmp.eq.s32.totalorder %s20, 0
    %p255 = por %p253, %p254
    %p256 = scmp.ne.s32.totalorder %s248, %s250
    %p257 = scmp.eq.s32.totalorder %s25, 1
    %p258 = por %p256, %p257
    %p259 = scmp.ne.s32.totalorder %s250, %s251
    %p260 = scmp.eq.s32.totalorder %s25, 0
    %p261 = por %p259, %p260
    %p262 = scmp.ne.s32.totalorder %s250, %s251
    %p263 = scmp.eq.s32.totalorder %s26, 1
    %p264 = por %p262, %p263
    %p266 = scmp.ne.s32.totalorder %s251, %s265
    %p267 = scmp.eq.s32.totalorder %s26, 0
    %p268 = por %p266, %p267
    %s270 = sadd.s32 %s269, 1
    %p273 = scmp.eq.s32.totalorder %s20, 1
    %p274 = scmp.ne.s32.totalorder %s269, %s271
    %p275 = scmp.eq.s32.totalorder %s20, 0
    %p276 = por %p274, %p275
    %p277 = scmp.ne.s32.totalorder %s269, %s271
    %p278 = scmp.eq.s32.totalorder %s25, 1
    %p279 = por %p277, %p278
    %p280 = scmp.ne.s32.totalorder %s271, %s272
    %p281 = scmp.eq.s32.totalorder %s25, 0
    %p282 = por %p280, %p281
    %p283 = scmp.ne.s32.totalorder %s271, %s272
    %p284 = scmp.eq.s32.totalorder %s26, 1
    %p285 = por %p283, %p284
    %p287 = scmp.ne.s32.totalorder %s272, %s286
    %p288 = scmp.eq.s32.totalorder %s26, 0
    %p289 = por %p287, %p288
    %s291 = sadd.s32 %s290, 1
    %p294 = scmp.eq.s32.totalorder %s20, 1
    %p295 = scmp.ne.s32.totalorder %s290, %s292
    %p296 = scmp.eq.s32.totalorder %s20, 0
    %p297 = por %p295, %p296
    %p298 = scmp.ne.s32.totalorder %s290, %s292
    %p299 = scmp.eq.s32.totalorder %s25, 1
    %p300 = por %p298, %p299
    %p301 = scmp.ne.s32.totalorder %s292, %s293
    %p302 = scmp.eq.s32.totalorder %s25, 0
    %p303 = por %p301, %p302
    %p304 = scmp.ne.s32.totalorder %s292, %s293
    %p305 = scmp.eq.s32.totalorder %s26, 1
    %p306 = por %p304, %p305
    %p308 = scmp.ne.s32.totalorder %s293, %s307
    %p309 = scmp.eq.s32.totalorder %s26, 0
    %p310 = por %p308, %p309
    %s312 = sadd.s32 %s311, 1
    %p315 = scmp.eq.s32.totalorder %s20, 1
    %p316 = scmp.ne.s32.totalorder %s311, %s313
    %p317 = scmp.eq.s32.totalorder %s20, 0
    %p318 = por %p316, %p317
    %p319 = scmp.ne.s32.totalorder %s311, %s313
    %p320 = scmp.eq.s32.totalorder %s25, 1
    %p321 = por %p319, %p320
    %p322 = scmp.ne.s32.totalorder %s313, %s314
    %p323 = scmp.eq.s32.totalorder %s25, 0
    %p324 = por %p322, %p323
    %p325 = scmp.ne.s32.totalorder %s313, %s314
    %p326 = scmp.eq.s32.totalorder %s26, 1
    %p327 = por %p325, %p326
    %p329 = scmp.ne.s32.totalorder %s314, %s328
    %p330 = scmp.eq.s32.totalorder %s26, 0
    %p331 = por %p329, %p330
    %s332 = ssub.s32 %s20, %s27
    %p333 = scmp.eq.s32.totalorder %s332, 0
    %s335 = sadd.s32 %s334, 1
    %s336 = scalar_select %p333, %s334, %s335
    %p339 = pneg %p333
    %p340 = scmp.eq.s32.totalorder %s20, 1
    %p341 = por %p339, %p340
    %p342 = scmp.ne.s32.totalorder %s334, %s337
    %p343 = scmp.eq.s32.totalorder %s20, 0
    %p344 = por %p342, %p343
    %p345 = scmp.ne.s32.totalorder %s334, %s337
    %p346 = scmp.eq.s32.totalorder %s25, 1
    %p347 = por %p345, %p346
    %p348 = scmp.ne.s32.totalorder %s337, %s338
    %p349 = scmp.eq.s32.totalorder %s25, 0
    %p350 = por %p348, %p349
    %p351 = scmp.ne.s32.totalorder %s337, %s338
    %p352 = scmp.eq.s32.totalorder %s26, 1
    %p353 = por %p351, %p352
    %p355 = scmp.ne.s32.totalorder %s338, %s354
    %p356 = scmp.eq.s32.totalorder %s26, 0
    %p357 = por %p355, %p356
    %p358 = scmp.le.s32.totalorder 1, %s20
    %p359 = scmp.lt.s32.totalorder %s20, 3
    %p360 = pnand %p358, %p359
    %p361 = pneg %p360
    // Predicated region
    $region9: #{peptide_encoder_forward.1} parent=5 // pred_check
      _
    $region10: #{peptide_encoder_forward.1} parent=5 // pred_check_branch
      %363 = sbr.rel (%p360) target = $region12
    $region11: #{peptide_encoder_forward.1} parent=5 // pred_region
      %s364 = ssub.s32 %s20, 1
      // Predicated region
      $region13: #{peptide_encoder_forward.1} parent=11 // pred_check
        %p365 = pneg %p93
      $region14: #{peptide_encoder_forward.1} parent=11 // pred_check_branch
        %367 = sbr.rel (%p365) target = $region16
      $region15: #{peptide_encoder_forward.1} parent=11 // pred_region
        _
      $region16: #{peptide_encoder_forward.1} parent=11 // pred_fallthru
        _
      // Predicated region
      $region17: #{peptide_encoder_forward.1} parent=11 // pred_check
        %p368 = pneg %p114
      $region18: #{peptide_encoder_forward.1} parent=11 // pred_check_branch
        %370 = sbr.rel (%p368) target = $region20
      $region19: #{peptide_encoder_forward.1} parent=11 // pred_region
        _
      $region20: #{peptide_encoder_forward.1} parent=11 // pred_fallthru
        _
      // Predicated region
      $region21: #{peptide_encoder_forward.1} parent=11 // pred_check
        %p371 = pneg %p135
      $region22: #{peptide_encoder_forward.1} parent=11 // pred_check_branch
        %373 = sbr.rel (%p371) target = $region24
      $region23: #{peptide_encoder_forward.1} parent=11 // pred_region
        _
      $region24: #{peptide_encoder_forward.1} parent=11 // pred_fallthru
        _
      // Predicated region
      $region25: #{peptide_encoder_forward.1} parent=11 // pred_check
        %p374 = pneg %p156
      $region26: #{peptide_encoder_forward.1} parent=11 // pred_check_branch
        %376 = sbr.rel (%p374) target = $region28
      $region27: #{peptide_encoder_forward.1} parent=11 // pred_region
        _
      $region28: #{peptide_encoder_forward.1} parent=11 // pred_fallthru
        _
      // Predicated region
      $region29: #{peptide_encoder_forward.1} parent=11 // pred_check
        %p377 = pneg %p177
      $region30: #{peptide_encoder_forward.1} parent=11 // pred_check_branch
        %379 = sbr.rel (%p377) target = $region32
      $region31: #{peptide_encoder_forward.1} parent=11 // pred_region
        _
      $region32: #{peptide_encoder_forward.1} parent=11 // pred_fallthru
        _
      // Predicated region
      $region33: #{peptide_encoder_forward.1} parent=11 // pred_check
        %p380 = pneg %p198
      $region34: #{peptide_encoder_forward.1} parent=11 // pred_check_branch
        %382 = sbr.rel (%p380) target = $region36
      $region35: #{peptide_encoder_forward.1} parent=11 // pred_region
        _
      $region36: #{peptide_encoder_forward.1} parent=11 // pred_fallthru
        _
      // Predicated region
      $region37: #{peptide_encoder_forward.1} parent=11 // pred_check
        %p383 = pneg %p219
      $region38: #{peptide_encoder_forward.1} parent=11 // pred_check_branch
        %385 = sbr.rel (%p383) target = $region40
      $region39: #{peptide_encoder_forward.1} parent=11 // pred_region
        _
      $region40: #{peptide_encoder_forward.1} parent=11 // pred_fallthru
        _
      // Predicated region
      $region41: #{peptide_encoder_forward.1} parent=11 // pred_check
        %p386 = pneg %p240
      $region42: #{peptide_encoder_forward.1} parent=11 // pred_check_branch
        %388 = sbr.rel (%p386) target = $region44
      $region43: #{peptide_encoder_forward.1} parent=11 // pred_region
        _
      $region44: #{peptide_encoder_forward.1} parent=11 // pred_fallthru
        _
      // Predicated region
      $region45: #{peptide_encoder_forward.1} parent=11 // pred_check
        %p389 = pneg %p261
      $region46: #{peptide_encoder_forward.1} parent=11 // pred_check_branch
        %391 = sbr.rel (%p389) target = $region48
      $region47: #{peptide_encoder_forward.1} parent=11 // pred_region
        _
      $region48: #{peptide_encoder_forward.1} parent=11 // pred_fallthru
        _
      // Predicated region
      $region49: #{peptide_encoder_forward.1} parent=11 // pred_check
        %p392 = pneg %p282
      $region50: #{peptide_encoder_forward.1} parent=11 // pred_check_branch
        %394 = sbr.rel (%p392) target = $region52
      $region51: #{peptide_encoder_forward.1} parent=11 // pred_region
        _
      $region52: #{peptide_encoder_forward.1} parent=11 // pred_fallthru
        _
      // Predicated region
      $region53: #{peptide_encoder_forward.1} parent=11 // pred_check
        %p395 = pneg %p303
      $region54: #{peptide_encoder_forward.1} parent=11 // pred_check_branch
        %397 = sbr.rel (%p395) target = $region56
      $region55: #{peptide_encoder_forward.1} parent=11 // pred_region
        _
      $region56: #{peptide_encoder_forward.1} parent=11 // pred_fallthru
        _
      // Predicated region
      $region57: #{peptide_encoder_forward.1} parent=11 // pred_check
        %p398 = pneg %p324
      $region58: #{peptide_encoder_forward.1} parent=11 // pred_check_branch
        %400 = sbr.rel (%p398) target = $region60
      $region59: #{peptide_encoder_forward.1} parent=11 // pred_region
        _
      $region60: #{peptide_encoder_forward.1} parent=11 // pred_fallthru
        _
    $region12: #{peptide_encoder_forward.1} parent=5 // pred_fallthru
      _
    %p401 = scmp.lt.s32.totalorder %s20, 2
    // Predicated region
    $region61: #{peptide_encoder_forward.1} parent=5 // pred_check
      %p402 = pneg %p401
    $region62: #{peptide_encoder_forward.1} parent=5 // pred_check_branch
      %404 = sbr.rel (%p402) target = $region64
    $region63: #{peptide_encoder_forward.1} parent=5 // pred_region
      // Predicated region
      $region65: #{peptide_encoder_forward.1} parent=63 // pred_check
        %p405 = pneg %p40
      $region66: #{peptide_encoder_forward.1} parent=63 // pred_check_branch
        %407 = sbr.rel (%p405) target = $region68
      $region67: #{peptide_encoder_forward.1} parent=63 // pred_region
        %s408 = smul.u32 2, %s20
        %p409 = scmp.lt.s32.totalorder %s408, 3
        %s410 = scalar_select %p409, %s408, 3
        %s411 = smul.addr %s410, 8
        %s412 = scalar_lea.vmem %s0, %s411
        %s413 = smul.u32 2, %s20
      $region68: #{peptide_encoder_forward.1} parent=63 // pred_fallthru
        _
      // Predicated region
      $region69: #{peptide_encoder_forward.1} parent=63 // pred_check
        %p414 = pneg %p66
      $region70: #{peptide_encoder_forward.1} parent=63 // pred_check_branch
        %416 = sbr.rel (%p414) target = $region72
      $region71: #{peptide_encoder_forward.1} parent=63 // pred_region
        %p417 = scmp.lt.s32.totalorder %s20, 1
        %s418 = scalar_select %p417, %s20, 1
        %s419 = scalar_lea.vmem %s1, %s418
      $region72: #{peptide_encoder_forward.1} parent=63 // pred_fallthru
        _
    $region64: #{peptide_encoder_forward.1} parent=5 // pred_fallthru
      _
    %p420 = scmp.le.s32.totalorder 1, %s20
    %p421 = scmp.lt.s32.totalorder %s20, 3
    %p422 = pnand %p420, %p421
    %p423 = pneg %p422
    // Predicated region
    $region73: #{peptide_encoder_forward.1} parent=5 // pred_check
      _
    $region74: #{peptide_encoder_forward.1} parent=5 // pred_check_branch
      %425 = sbr.rel (%p422) target = $region76
    $region75: #{peptide_encoder_forward.1} parent=5 // pred_region
      %s426 = ssub.s32 %s20, 1
      %s427 = smul.u32 2, %s25
      %p428 = scmp.lt.s32.totalorder %s427, 3
      %s429 = scalar_select %p428, %s427, 3
      %s430 = smul.addr %s429, 8
      %s431 = scalar_lea.vmem %s0, %s430
      %p432 = pneg %p46
      %p433 = pneg %p43
      %p434 = scmp.lt.s32.totalorder %s25, 1
      %s435 = scalar_select %p434, %s25, 1
      %s436 = scalar_lea.vmem %s1, %s435
      %p437 = pneg %p72
      %p438 = pneg %p69
      %p439 = pneg %p93
      %p440 = pneg %p90
      %p441 = pneg %p114
      %p442 = pneg %p111
      %p443 = pneg %p135
      %p444 = pneg %p132
      %p445 = pneg %p156
      %p446 = pneg %p153
      %p447 = pneg %p177
      %p448 = pneg %p174
      %p449 = pneg %p198
      %p450 = pneg %p195
      %p451 = pneg %p219
      %p452 = pneg %p216
      %p453 = pneg %p240
      %p454 = pneg %p237
      %p455 = pneg %p261
      %p456 = pneg %p258
      %p457 = pneg %p282
      %p458 = pneg %p279
      %p459 = pneg %p303
      %p460 = pneg %p300
      %p461 = pneg %p324
      %p462 = pneg %p321
      %p463 = pneg %p350
      %p464 = pneg %p347
      %s465 = smul.u32 2, %s25
      %p466 = scmp.lt.s32.totalorder %s465, 3
      %s467 = scalar_select %p466, %s465, 3
      %s468 = smul.addr %s467, 8
      %s469 = scalar_lea.vmem %s14, %s468
      %s470 = smul.u32 2, %s25
      %p471 = scmp.lt.s32.totalorder %s470, 3
      %s472 = scalar_select %p471, %s470, 3
      %s473 = smul.addr %s472, 8
      %s474 = scalar_lea.vmem %s0, %s473
      %s475 = smul.u32 2, %s25
      %p476 = scmp.lt.s32.totalorder %s25, 1
      %s477 = scalar_select %p476, %s25, 1
      %s478 = scalar_lea.vmem %s1, %s477
      %s479 = smul.u32 2, %s25
      %p480 = scmp.lt.s32.totalorder %s479, 3
      %s481 = scalar_select %p480, %s479, 3
      %s482 = smul.addr %s481, 8
      %s483 = scalar_lea.vmem %s14, %s482
      %s484 = smul.u32 2, %s25
      %v486 = vld [vmem:[%s474] sm:$0xff]
      %v487 = vld [vmem:[%s474 + $0x8] sm:$0xff]
      %v488 = vld [vmem:[%s478] sm:$0x1]
      %v489 = vpack.c.bf16 %v487, %v486
      %v490 = vld [vmem:[%s2] sm:$0xf]
      %v491 = vld [vmem:[%s2 + $0x4] sm:$0xf]
      %v492 = vld [vmem:[%s2 + $0x8] sm:$0xf]
      %v493 = vld [vmem:[%s2 + $0xc] sm:$0xf]
      %v494 = vld [vmem:[%s3] sm:$0x1]
      %v496 = vlaneseq
      %v497 = vshrl.u32 %v496, 7
      %v498 = vsub.s32 0, %v497
      %v499 = vrot.slane %v494, %v498
      %v505 = vunpack.c.l.b16 %v490
      %v506 = vunpack.c.l.b16 %v491
      %v507 = vunpack.c.l.b16 %v492
      %v508 = vunpack.c.l.b16 %v493
      %v509 = vpack.c.b16 %v506, %v505
      %v510 = vpack.c.b16 %v508, %v507
      %vm513 = vcmask 261120
      %v515 = vsel %vm513, %v489, 0
      %517 = vmatprep.subr.bf16.mxu0 0
      %518 = vmatpush1.bf16.msra.mxu0 %v509
      %519 = vmatprep.subr.bf16.mxu0 0
      %520 = vmatpush1.bf16.msra.mxu0 %v510
      %521 = vmatprep.subr.bf16.mxu0 0
      %522 = vmatpush1.bf16.msra.mxu0 0
      %523 = vmatprep.subr.bf16.mxu0 0
      %524 = vmatpush1.bf16.msra.mxu0 0
      %525 = vmatprep.subr.bf16.mxu0 0
      %526 = vmatpush1.bf16.msra.mxu0 0
      %527 = vmatprep.subr.bf16.mxu0 0
      %528 = vmatpush1.bf16.msra.mxu0 0
      %529 = vmatprep.subr.bf16.mxu0 0
      %530 = vmatpush1.bf16.msra.mxu0 0
      %531 = vmatprep.subr.bf16.mxu0 0
      %532 = vmatpush1.bf16.msra.mxu0 0
      %533 = vmatprep.subr.bf16.mxu0 0
      %534 = vmatpush1.bf16.msra.mxu0 0
      %535 = vmatprep.subr.bf16.mxu0 0
      %536 = vmatpush1.bf16.msra.mxu0 0
      %537 = vmatprep.subr.bf16.mxu0 0
      %538 = vmatpush1.bf16.msra.mxu0 0
      %539 = vmatprep.subr.bf16.mxu0 0
      %540 = vmatpush1.bf16.msra.mxu0 0
      %541 = vmatprep.subr.bf16.mxu0 0
      %542 = vmatpush1.bf16.msra.mxu0 0
      %543 = vmatprep.subr.bf16.mxu0 0
      %544 = vmatpush1.bf16.msra.mxu0 0
      %545 = vmatprep.subr.bf16.mxu0 0
      %546 = vmatpush1.bf16.msra.mxu0 0
      %547 = vmatprep.subr.bf16.mxu0 0
      %548 = vmatpush1.bf16.msra.mxu0 0
      %549 = vmatprep.mubr.bf16.mxu0 0
      %550 = vmatmul.mubr.bf16.gmra.mrb[0].mxu0 %v515
      %v551 = vpop.f32.mrb[0].mxu0
      %v552 = vadd.f32 %v499, %v551
      %v553 = vpop.f32.mrb[0].mxu0
      %v554 = vpop.f32.mrb[0].mxu0
      %v555 = vadd.f32 %v499, %v554
      %v556 = vpop.f32.mrb[0].mxu0
      %557 = vdwg.mxu0
      %560 = vrot.lane.b32.xlu0 %v552, 120
      %v561 = vpop.permute.xlu0 %560
      %562 = vrot.lane.b32.xlu0 %v555, 120
      %v563 = vpop.permute.xlu0 %562
      %566 = vrot.lane.b32.xlu0 %v552, 112
      %v567 = vpop.permute.xlu0 %566
      %568 = vrot.lane.b32.xlu0 %v555, 112
      %v569 = vpop.permute.xlu0 %568
      %572 = vrot.lane.b32.xlu0 %v552, 104
      %v573 = vpop.permute.xlu0 %572
      %574 = vrot.lane.b32.xlu0 %v555, 104
      %v575 = vpop.permute.xlu0 %574
      %v578 = vpack.c.bf16 %v555, %v552
      %v579 = vpack.c.bf16 %v563, %v561
      %v580 = vpack.c.bf16 %v569, %v567
      %v581 = vpack.c.bf16 %v575, %v573
      %583 = vrot.lane.b32.xlu0 %v578, 96
      %v584 = vpop.permute.xlu0 %583
      %vm585 = vcmask 64512
      %v587 = vsel %vm585, %v578, 0
      %v590 = vsel %vm585, %v584, 0
      %592 = vmatprep.subr.bf16.mxu0 0
      %593 = vmatpush1.bf16.xpose.msra.mxu0 %v590
      %594 = vmatprep.subr.bf16.mxu0 0
      %595 = vmatpush1.bf16.xpose.msra.mxu0 0
      %596 = vmatprep.subr.bf16.mxu0 0
      %597 = vmatpush1.bf16.xpose.msra.mxu0 0
      %598 = vmatprep.subr.bf16.mxu0 0
      %599 = vmatpush1.bf16.xpose.msra.mxu0 0
      %600 = vmatprep.subr.bf16.mxu0 0
      %601 = vmatpush1.bf16.xpose.msra.mxu0 0
      %602 = vmatprep.subr.bf16.mxu0 0
      %603 = vmatpush1.bf16.xpose.msra.mxu0 0
      %604 = vmatprep.subr.bf16.mxu0 0
      %605 = vmatpush1.bf16.xpose.msra.mxu0 0
      %606 = vmatprep.subr.bf16.mxu0 0
      %607 = vmatpush1.bf16.xpose.msra.mxu0 0
      %608 = vmatprep.subr.bf16.mxu0 0
      %609 = vmatpush1.bf16.xpose.msra.mxu0 0
      %610 = vmatprep.subr.bf16.mxu0 0
      %611 = vmatpush1.bf16.xpose.msra.mxu0 0
      %612 = vmatprep.subr.bf16.mxu0 0
      %613 = vmatpush1.bf16.xpose.msra.mxu0 0
      %614 = vmatprep.subr.bf16.mxu0 0
      %615 = vmatpush1.bf16.xpose.msra.mxu0 0
      %616 = vmatprep.subr.bf16.mxu0 0
      %617 = vmatpush1.bf16.xpose.msra.mxu0 0
      %618 = vmatprep.subr.bf16.mxu0 0
      %619 = vmatpush1.bf16.xpose.msra.mxu0 0
      %620 = vmatprep.subr.bf16.mxu0 0
      %621 = vmatpush1.bf16.xpose.msra.mxu0 0
      %622 = vmatprep.subr.bf16.mxu0 0
      %623 = vmatpush1.bf16.xpose.msra.mxu0 0
      %624 = vmatprep.mubr.bf16.mxu0 0
      %625 = vmatmul.mubr.bf16.gmra.mrb[0].mxu0 %v587
      %v626 = vpop.f32.mrb[0].mxu0
      %v627 = vadd.f32 0.0, %v626
      %v628 = vpop.f32.mrb[0].mxu0
      %v629 = vpop.f32.mrb[0].mxu0
      %v630 = vadd.f32 0.0, %v629
      %v631 = vpop.f32.mrb[0].mxu0
      %632 = vdwg.mxu0
      %634 = vrot.lane.b32.xlu0 %v579, 96
      %v635 = vpop.permute.xlu0 %634
      %v637 = vsel %vm585, %v579, 0
      %v640 = vsel %vm585, %v635, 0
      %642 = vmatprep.subr.bf16.mxu0 0
      %643 = vmatpush1.bf16.xpose.msra.mxu0 %v640
      %644 = vmatprep.subr.bf16.mxu0 0
      %645 = vmatpush1.bf16.xpose.msra.mxu0 0
      %646 = vmatprep.subr.bf16.mxu0 0
      %647 = vmatpush1.bf16.xpose.msra.mxu0 0
      %648 = vmatprep.subr.bf16.mxu0 0
      %649 = vmatpush1.bf16.xpose.msra.mxu0 0
      %650 = vmatprep.subr.bf16.mxu0 0
      %651 = vmatpush1.bf16.xpose.msra.mxu0 0
      %652 = vmatprep.subr.bf16.mxu0 0
      %653 = vmatpush1.bf16.xpose.msra.mxu0 0
      %654 = vmatprep.subr.bf16.mxu0 0
      %655 = vmatpush1.bf16.xpose.msra.mxu0 0
      %656 = vmatprep.subr.bf16.mxu0 0
      %657 = vmatpush1.bf16.xpose.msra.mxu0 0
      %658 = vmatprep.subr.bf16.mxu0 0
      %659 = vmatpush1.bf16.xpose.msra.mxu0 0
      %660 = vmatprep.subr.bf16.mxu0 0
      %661 = vmatpush1.bf16.xpose.msra.mxu0 0
      %662 = vmatprep.subr.bf16.mxu0 0
      %663 = vmatpush1.bf16.xpose.msra.mxu0 0
      %664 = vmatprep.subr.bf16.mxu0 0
      %665 = vmatpush1.bf16.xpose.msra.mxu0 0
      %666 = vmatprep.subr.bf16.mxu0 0
      %667 = vmatpush1.bf16.xpose.msra.mxu0 0
      %668 = vmatprep.subr.bf16.mxu0 0
      %669 = vmatpush1.bf16.xpose.msra.mxu0 0
      %670 = vmatprep.subr.bf16.mxu0 0
      %671 = vmatpush1.bf16.xpose.msra.mxu0 0
      %672 = vmatprep.subr.bf16.mxu0 0
      %673 = vmatpush1.bf16.xpose.msra.mxu0 0
      %674 = vmatprep.mubr.bf16.mxu0 0
      %675 = vmatmul.mubr.bf16.gmra.mrb[0].mxu0 %v637
      %v676 = vpop.f32.mrb[0].mxu0
      %v677 = vadd.f32 0.0, %v676
      %v678 = vpop.f32.mrb[0].mxu0
      %v679 = vpop.f32.mrb[0].mxu0
      %v680 = vadd.f32 0.0, %v679
      %v681 = vpop.f32.mrb[0].mxu0
      %682 = vdwg.mxu0
      %684 = vrot.lane.b32.xlu0 %v580, 96
      %v685 = vpop.permute.xlu0 %684
      %v687 = vsel %vm585, %v580, 0
      %v690 = vsel %vm585, %v685, 0
      %692 = vmatprep.subr.bf16.mxu0 0
      %693 = vmatpush1.bf16.xpose.msra.mxu0 %v690
      %694 = vmatprep.subr.bf16.mxu0 0
      %695 = vmatpush1.bf16.xpose.msra.mxu0 0
      %696 = vmatprep.subr.bf16.mxu0 0
      %697 = vmatpush1.bf16.xpose.msra.mxu0 0
      %698 = vmatprep.subr.bf16.mxu0 0
      %699 = vmatpush1.bf16.xpose.msra.mxu0 0
      %700 = vmatprep.subr.bf16.mxu0 0
      %701 = vmatpush1.bf16.xpose.msra.mxu0 0
      %702 = vmatprep.subr.bf16.mxu0 0
      %703 = vmatpush1.bf16.xpose.msra.mxu0 0
      %704 = vmatprep.subr.bf16.mxu0 0
      %705 = vmatpush1.bf16.xpose.msra.mxu0 0
      %706 = vmatprep.subr.bf16.mxu0 0
      %707 = vmatpush1.bf16.xpose.msra.mxu0 0
      %708 = vmatprep.subr.bf16.mxu0 0
      %709 = vmatpush1.bf16.xpose.msra.mxu0 0
      %710 = vmatprep.subr.bf16.mxu0 0
      %711 = vmatpush1.bf16.xpose.msra.mxu0 0
      %712 = vmatprep.subr.bf16.mxu0 0
      %713 = vmatpush1.bf16.xpose.msra.mxu0 0
      %714 = vmatprep.subr.bf16.mxu0 0
      %715 = vmatpush1.bf16.xpose.msra.mxu0 0
      %716 = vmatprep.subr.bf16.mxu0 0
      %717 = vmatpush1.bf16.xpose.msra.mxu0 0
      %718 = vmatprep.subr.bf16.mxu0 0
      %719 = vmatpush1.bf16.xpose.msra.mxu0 0
      %720 = vmatprep.subr.bf16.mxu0 0
      %721 = vmatpush1.bf16.xpose.msra.mxu0 0
      %722 = vmatprep.subr.bf16.mxu0 0
      %723 = vmatpush1.bf16.xpose.msra.mxu0 0
      %724 = vmatprep.mubr.bf16.mxu0 0
      %725 = vmatmul.mubr.bf16.gmra.mrb[0].mxu0 %v687
      %v726 = vpop.f32.mrb[0].mxu0
      %v727 = vadd.f32 0.0, %v726
      %v728 = vpop.f32.mrb[0].mxu0
      %v729 = vpop.f32.mrb[0].mxu0
      %v730 = vadd.f32 0.0, %v729
      %v731 = vpop.f32.mrb[0].mxu0
      %732 = vdwg.mxu0
      %734 = vrot.lane.b32.xlu0 %v581, 96
      %v735 = vpop.permute.xlu0 %734
      %v737 = vsel %vm585, %v581, 0
      %v740 = vsel %vm585, %v735, 0
      %742 = vmatprep.subr.bf16.mxu0 0
      %743 = vmatpush1.bf16.xpose.msra.mxu0 %v740
      %744 = vmatprep.subr.bf16.mxu0 0
      %745 = vmatpush1.bf16.xpose.msra.mxu0 0
      %746 = vmatprep.subr.bf16.mxu0 0
      %747 = vmatpush1.bf16.xpose.msra.mxu0 0
      %748 = vmatprep.subr.bf16.mxu0 0
      %749 = vmatpush1.bf16.xpose.msra.mxu0 0
      %750 = vmatprep.subr.bf16.mxu0 0
      %751 = vmatpush1.bf16.xpose.msra.mxu0 0
      %752 = vmatprep.subr.bf16.mxu0 0
      %753 = vmatpush1.bf16.xpose.msra.mxu0 0
      %754 = vmatprep.subr.bf16.mxu0 0
      %755 = vmatpush1.bf16.xpose.msra.mxu0 0
      %756 = vmatprep.subr.bf16.mxu0 0
      %757 = vmatpush1.bf16.xpose.msra.mxu0 0
      %758 = vmatprep.subr.bf16.mxu0 0
      %759 = vmatpush1.bf16.xpose.msra.mxu0 0
      %760 = vmatprep.subr.bf16.mxu0 0
      %761 = vmatpush1.bf16.xpose.msra.mxu0 0
      %762 = vmatprep.subr.bf16.mxu0 0
      %763 = vmatpush1.bf16.xpose.msra.mxu0 0
      %764 = vmatprep.subr.bf16.mxu0 0
      %765 = vmatpush1.bf16.xpose.msra.mxu0 0
      %766 = vmatprep.subr.bf16.mxu0 0
      %767 = vmatpush1.bf16.xpose.msra.mxu0 0
      %768 = vmatprep.subr.bf16.mxu0 0
      %769 = vmatpush1.bf16.xpose.msra.mxu0 0
      %770 = vmatprep.subr.bf16.mxu0 0
      %771 = vmatpush1.bf16.xpose.msra.mxu0 0
      %772 = vmatprep.subr.bf16.mxu0 0
      %773 = vmatpush1.bf16.xpose.msra.mxu0 0
      %774 = vmatprep.mubr.bf16.mxu0 0
      %775 = vmatmul.mubr.bf16.gmra.mrb[0].mxu0 %v737
      %v776 = vpop.f32.mrb[0].mxu0
      %v777 = vadd.f32 0.0, %v776
      %v778 = vpop.f32.mrb[0].mxu0
      %v779 = vpop.f32.mrb[0].mxu0
      %v780 = vadd.f32 0.0, %v779
      %v781 = vpop.f32.mrb[0].mxu0
      %782 = vdwg.mxu0
      %v783 = vmul.f32 %v627, 0.35355338
      %v784 = vmul.f32 %v630, 0.35355338
      %v785 = vmul.f32 %v677, 0.35355338
      %v786 = vmul.f32 %v680, 0.35355338
      %v787 = vmul.f32 %v727, 0.35355338
      %v788 = vmul.f32 %v730, 0.35355338
      %v789 = vmul.f32 %v777, 0.35355338
      %v790 = vmul.f32 %v780, 0.35355338
      %v792 = vlaneseq
      %v793 = vshrl.u32 %v792, 7
      %v794 = vsub.s32 0, %v793
      %v795 = vrot.slane %v488, %v794
      %v797 = vadd.f32 %v783, %v795
      %v798 = vadd.f32 %v784, %v795
      %v799 = vadd.f32 %v785, %v795
      %v800 = vadd.f32 %v786, %v795
      %v801 = vadd.f32 %v787, %v795
      %v802 = vadd.f32 %v788, %v795
      %v803 = vadd.f32 %v789, %v795
      %v804 = vadd.f32 %v790, %v795
      %vm805 = vcmask 130048
      %v806 = vsel %vm805, %v797, -inf
      %807 = vmax.xlane.f32.xlu0 %v806
      %v808 = vpop.xlane.xlu0 %807
      %v809 = vsel %vm805, %v798, -inf
      %810 = vmax.xlane.f32.xlu0 %v809
      %v811 = vpop.xlane.xlu0 %810
      %v812 = vsel %vm805, %v799, -inf
      %813 = vmax.xlane.f32.xlu0 %v812
      %v814 = vpop.xlane.xlu0 %813
      %v815 = vsel %vm805, %v800, -inf
      %816 = vmax.xlane.f32.xlu0 %v815
      %v817 = vpop.xlane.xlu0 %816
      %v818 = vsel %vm805, %v801, -inf
      %819 = vmax.xlane.f32.xlu0 %v818
      %v820 = vpop.xlane.xlu0 %819
      %v821 = vsel %vm805, %v802, -inf
      %822 = vmax.xlane.f32.xlu0 %v821
      %v823 = vpop.xlane.xlu0 %822
      %v824 = vsel %vm805, %v803, -inf
      %825 = vmax.xlane.f32.xlu0 %v824
      %v826 = vpop.xlane.xlu0 %825
      %v827 = vsel %vm805, %v804, -inf
      %828 = vmax.xlane.f32.xlu0 %v827
      %v829 = vpop.xlane.xlu0 %828
      %v830 = vsub.f32 %v797, %v808
      %v831 = vsub.f32 %v798, %v811
      %v832 = vsub.f32 %v799, %v814
      %v833 = vsub.f32 %v800, %v817
      %v834 = vsub.f32 %v801, %v820
      %v835 = vsub.f32 %v802, %v823
      %v836 = vsub.f32 %v803, %v826
      %v837 = vsub.f32 %v804, %v829
      %v838 = vmul.f32 %v830, 1.442695
      %v839 = vpow.pop %v838
      %v840 = vmul.f32 %v831, 1.442695
      %v841 = vpow.pop %v840
      %v842 = vmul.f32 %v832, 1.442695
      %v843 = vpow.pop %v842
      %v844 = vmul.f32 %v833, 1.442695
      %v845 = vpow.pop %v844
      %v846 = vmul.f32 %v834, 1.442695
      %v847 = vpow.pop %v846
      %v848 = vmul.f32 %v835, 1.442695
      %v849 = vpow.pop %v848
      %v850 = vmul.f32 %v836, 1.442695
      %v851 = vpow.pop %v850
      %v852 = vmul.f32 %v837, 1.442695
      %v853 = vpow.pop %v852
      %v854 = vsel %vm805, %v839, 0.0
      %855 = vadd.xlane.f32.xlu0 %v854
      %v856 = vpop.xlane.xlu0 %855
      %v857 = vsel %vm805, %v841, 0.0
      %858 = vadd.xlane.f32.xlu0 %v857
      %v859 = vpop.xlane.xlu0 %858
      %v860 = vsel %vm805, %v843, 0.0
      %861 = vadd.xlane.f32.xlu0 %v860
      %v862 = vpop.xlane.xlu0 %861
      %v863 = vsel %vm805, %v845, 0.0
      %864 = vadd.xlane.f32.xlu0 %v863
      %v865 = vpop.xlane.xlu0 %864
      %v866 = vsel %vm805, %v847, 0.0
      %867 = vadd.xlane.f32.xlu0 %v866
      %v868 = vpop.xlane.xlu0 %867
      %v869 = vsel %vm805, %v849, 0.0
      %870 = vadd.xlane.f32.xlu0 %v869
      %v871 = vpop.xlane.xlu0 %870
      %v872 = vsel %vm805, %v851, 0.0
      %873 = vadd.xlane.f32.xlu0 %v872
      %v874 = vpop.xlane.xlu0 %873
      %v875 = vsel %vm805, %v853, 0.0
      %876 = vadd.xlane.f32.xlu0 %v875
      %v877 = vpop.xlane.xlu0 %876
      %v878 = vrcp.pop %v856
      %v879 = vrcp.pop %v859
      %v880 = vrcp.pop %v862
      %v881 = vrcp.pop %v865
      %v882 = vrcp.pop %v868
      %v883 = vrcp.pop %v871
      %v884 = vrcp.pop %v874
      %v885 = vrcp.pop %v877
      %v886 = vmul.f32 %v839, %v878
      %v887 = vmul.f32 %v841, %v879
      %v888 = vmul.f32 %v843, %v880
      %v889 = vmul.f32 %v845, %v881
      %v890 = vmul.f32 %v847, %v882
      %v891 = vmul.f32 %v849, %v883
      %v892 = vmul.f32 %v851, %v884
      %v893 = vmul.f32 %v853, %v885
      %v894 = vpack.c.bf16 %v887, %v886
      %v895 = vpack.c.bf16 %v889, %v888
      %v896 = vpack.c.bf16 %v891, %v890
      %v897 = vpack.c.bf16 %v893, %v892
      %898 = vrot.lane.b32.xlu0 %v578, 64
      %v899 = vpop.permute.xlu0 %898
      %v902 = vsel %vm805, %v894, 0
      %904 = vmatprep.subr.bf16.mxu0 0
      %905 = vmatpush1.bf16.msra.mxu0 %v899
      %906 = vmatprep.subr.bf16.mxu0 0
      %907 = vmatpush1.bf16.msra.mxu0 0
      %908 = vmatprep.subr.bf16.mxu0 0
      %909 = vmatpush1.bf16.msra.mxu0 0
      %910 = vmatprep.subr.bf16.mxu0 0
      %911 = vmatpush1.bf16.msra.mxu0 0
      %912 = vmatprep.subr.bf16.mxu0 0
      %913 = vmatpush1.bf16.msra.mxu0 0
      %914 = vmatprep.subr.bf16.mxu0 0
      %915 = vmatpush1.bf16.msra.mxu0 0
      %916 = vmatprep.subr.bf16.mxu0 0
      %917 = vmatpush1.bf16.msra.mxu0 0
      %918 = vmatprep.subr.bf16.mxu0 0
      %919 = vmatpush1.bf16.msra.mxu0 0
      %920 = vmatprep.subr.bf16.mxu0 0
      %921 = vmatpush1.bf16.msra.mxu0 0
      %922 = vmatprep.subr.bf16.mxu0 0
      %923 = vmatpush1.bf16.msra.mxu0 0
      %924 = vmatprep.subr.bf16.mxu0 0
      %925 = vmatpush1.bf16.msra.mxu0 0
      %926 = vmatprep.subr.bf16.mxu0 0
      %927 = vmatpush1.bf16.msra.mxu0 0
      %928 = vmatprep.subr.bf16.mxu0 0
      %929 = vmatpush1.bf16.msra.mxu0 0
      %930 = vmatprep.subr.bf16.mxu0 0
      %931 = vmatpush1.bf16.msra.mxu0 0
      %932 = vmatprep.subr.bf16.mxu0 0
      %933 = vmatpush1.bf16.msra.mxu0 0
      %934 = vmatprep.subr.bf16.mxu0 0
      %935 = vmatpush1.bf16.msra.mxu0 0
      %936 = vmatprep.mubr.bf16.mxu0 0
      %937 = vmatmul.mubr.bf16.gmra.mrb[0].mxu0 %v902
      %v938 = vpop.f32.mrb[0].mxu0
      %v939 = vadd.f32 0.0, %v938
      %v940 = vpop.f32.mrb[0].mxu0
      %v941 = vpop.f32.mrb[0].mxu0
      %v942 = vadd.f32 0.0, %v941
      %v943 = vpop.f32.mrb[0].mxu0
      %944 = vdwg.mxu0
      %945 = vrot.lane.b32.xlu0 %v579, 64
      %v946 = vpop.permute.xlu0 %945
      %v949 = vsel %vm805, %v895, 0
      %951 = vmatprep.subr.bf16.mxu0 0
      %952 = vmatpush1.bf16.msra.mxu0 %v946
      %953 = vmatprep.subr.bf16.mxu0 0
      %954 = vmatpush1.bf16.msra.mxu0 0
      %955 = vmatprep.subr.bf16.mxu0 0
      %956 = vmatpush1.bf16.msra.mxu0 0
      %957 = vmatprep.subr.bf16.mxu0 0
      %958 = vmatpush1.bf16.msra.mxu0 0
      %959 = vmatprep.subr.bf16.mxu0 0
      %960 = vmatpush1.bf16.msra.mxu0 0
      %961 = vmatprep.subr.bf16.mxu0 0
      %962 = vmatpush1.bf16.msra.mxu0 0
      %963 = vmatprep.subr.bf16.mxu0 0
      %964 = vmatpush1.bf16.msra.mxu0 0
      %965 = vmatprep.subr.bf16.mxu0 0
      %966 = vmatpush1.bf16.msra.mxu0 0
      %967 = vmatprep.subr.bf16.mxu0 0
      %968 = vmatpush1.bf16.msra.mxu0 0
      %969 = vmatprep.subr.bf16.mxu0 0
      %970 = vmatpush1.bf16.msra.mxu0 0
      %971 = vmatprep.subr.bf16.mxu0 0
      %972 = vmatpush1.bf16.msra.mxu0 0
      %973 = vmatprep.subr.bf16.mxu0 0
      %974 = vmatpush1.bf16.msra.mxu0 0
      %975 = vmatprep.subr.bf16.mxu0 0
      %976 = vmatpush1.bf16.msra.mxu0 0
      %977 = vmatprep.subr.bf16.mxu0 0
      %978 = vmatpush1.bf16.msra.mxu0 0
      %979 = vmatprep.subr.bf16.mxu0 0
      %980 = vmatpush1.bf16.msra.mxu0 0
      %981 = vmatprep.subr.bf16.mxu0 0
      %982 = vmatpush1.bf16.msra.mxu0 0
      %983 = vmatprep.mubr.bf16.mxu0 0
      %984 = vmatmul.mubr.bf16.gmra.mrb[0].mxu0 %v949
      %v985 = vpop.f32.mrb[0].mxu0
      %v986 = vadd.f32 0.0, %v985
      %v987 = vpop.f32.mrb[0].mxu0
      %v988 = vpop.f32.mrb[0].mxu0
      %v989 = vadd.f32 0.0, %v988
      %v990 = vpop.f32.mrb[0].mxu0
      %991 = vdwg.mxu0
      %992 = vrot.lane.b32.xlu0 %v580, 64
      %v993 = vpop.permute.xlu0 %992
      %v996 = vsel %vm805, %v896, 0
      %998 = vmatprep.subr.bf16.mxu0 0
      %999 = vmatpush1.bf16.msra.mxu0 %v993
      %1000 = vmatprep.subr.bf16.mxu0 0
      %1001 = vmatpush1.bf16.msra.mxu0 0
      %1002 = vmatprep.subr.bf16.mxu0 0
      %1003 = vmatpush1.bf16.msra.mxu0 0
      %1004 = vmatprep.subr.bf16.mxu0 0
      %1005 = vmatpush1.bf16.msra.mxu0 0
      %1006 = vmatprep.subr.bf16.mxu0 0
      %1007 = vmatpush1.bf16.msra.mxu0 0
      %1008 = vmatprep.subr.bf16.mxu0 0
      %1009 = vmatpush1.bf16.msra.mxu0 0
      %1010 = vmatprep.subr.bf16.mxu0 0
      %1011 = vmatpush1.bf16.msra.mxu0 0
      %1012 = vmatprep.subr.bf16.mxu0 0
      %1013 = vmatpush1.bf16.msra.mxu0 0
      %1014 = vmatprep.subr.bf16.mxu0 0
      %1015 = vmatpush1.bf16.msra.mxu0 0
      %1016 = vmatprep.subr.bf16.mxu0 0
      %1017 = vmatpush1.bf16.msra.mxu0 0
      %1018 = vmatprep.subr.bf16.mxu0 0
      %1019 = vmatpush1.bf16.msra.mxu0 0
      %1020 = vmatprep.subr.bf16.mxu0 0
      %1021 = vmatpush1.bf16.msra.mxu0 0
      %1022 = vmatprep.subr.bf16.mxu0 0
      %1023 = vmatpush1.bf16.msra.mxu0 0
      %1024 = vmatprep.subr.bf16.mxu0 0
      %1025 = vmatpush1.bf16.msra.mxu0 0
      %1026 = vmatprep.subr.bf16.mxu0 0
      %1027 = vmatpush1.bf16.msra.mxu0 0
      %1028 = vmatprep.subr.bf16.mxu0 0
      %1029 = vmatpush1.bf16.msra.mxu0 0
      %1030 = vmatprep.mubr.bf16.mxu0 0
      %1031 = vmatmul.mubr.bf16.gmra.mrb[0].mxu0 %v996
      %v1032 = vpop.f32.mrb[0].mxu0
      %v1033 = vadd.f32 0.0, %v1032
      %v1034 = vpop.f32.mrb[0].mxu0
      %v1035 = vpop.f32.mrb[0].mxu0
      %v1036 = vadd.f32 0.0, %v1035
      %v1037 = vpop.f32.mrb[0].mxu0
      %1038 = vdwg.mxu0
      %1039 = vrot.lane.b32.xlu0 %v581, 64
      %v1040 = vpop.permute.xlu0 %1039
      %v1043 = vsel %vm805, %v897, 0
      %1045 = vmatprep.subr.bf16.mxu0 0
      %1046 = vmatpush1.bf16.msra.mxu0 %v1040
      %1047 = vmatprep.subr.bf16.mxu0 0
      %1048 = vmatpush1.bf16.msra.mxu0 0
      %1049 = vmatprep.subr.bf16.mxu0 0
      %1050 = vmatpush1.bf16.msra.mxu0 0
      %1051 = vmatprep.subr.bf16.mxu0 0
      %1052 = vmatpush1.bf16.msra.mxu0 0
      %1053 = vmatprep.subr.bf16.mxu0 0
      %1054 = vmatpush1.bf16.msra.mxu0 0
      %1055 = vmatprep.subr.bf16.mxu0 0
      %1056 = vmatpush1.bf16.msra.mxu0 0
      %1057 = vmatprep.subr.bf16.mxu0 0
      %1058 = vmatpush1.bf16.msra.mxu0 0
      %1059 = vmatprep.subr.bf16.mxu0 0
      %1060 = vmatpush1.bf16.msra.mxu0 0
      %1061 = vmatprep.subr.bf16.mxu0 0
      %1062 = vmatpush1.bf16.msra.mxu0 0
      %1063 = vmatprep.subr.bf16.mxu0 0
      %1064 = vmatpush1.bf16.msra.mxu0 0
      %1065 = vmatprep.subr.bf16.mxu0 0
      %1066 = vmatpush1.bf16.msra.mxu0 0
      %1067 = vmatprep.subr.bf16.mxu0 0
      %1068 = vmatpush1.bf16.msra.mxu0 0
      %1069 = vmatprep.subr.bf16.mxu0 0
      %1070 = vmatpush1.bf16.msra.mxu0 0
      %1071 = vmatprep.subr.bf16.mxu0 0
      %1072 = vmatpush1.bf16.msra.mxu0 0
      %1073 = vmatprep.subr.bf16.mxu0 0
      %1074 = vmatpush1.bf16.msra.mxu0 0
      %1075 = vmatprep.subr.bf16.mxu0 0
      %1076 = vmatpush1.bf16.msra.mxu0 0
      %1077 = vmatprep.mubr.bf16.mxu0 0
      %1078 = vmatmul.mubr.bf16.gmra.mrb[0].mxu0 %v1043
      %v1079 = vpop.f32.mrb[0].mxu0
      %v1080 = vadd.f32 0.0, %v1079
      %v1081 = vpop.f32.mrb[0].mxu0
      %v1082 = vpop.f32.mrb[0].mxu0
      %v1083 = vadd.f32 0.0, %v1082
      %v1084 = vpop.f32.mrb[0].mxu0
      %1085 = vdwg.mxu0
      %1088 = vrot.lane.b32.xlu0 %v986, 8
      %v1089 = vpop.permute.xlu0 %1088
      %1090 = vrot.lane.b32.xlu0 %v989, 8
      %v1091 = vpop.permute.xlu0 %1090
      %1096 = vrot.lane.b32.xlu0 %v1033, 16
      %v1097 = vpop.permute.xlu0 %1096
      %1098 = vrot.lane.b32.xlu0 %v1036, 16
      %v1099 = vpop.permute.xlu0 %1098
      %1104 = vrot.lane.b32.xlu0 %v1080, 24
      %v1105 = vpop.permute.xlu0 %1104
      %1106 = vrot.lane.b32.xlu0 %v1083, 24
      %v1107 = vpop.permute.xlu0 %1106
      %v1110 = vsel %vm585, %v939, %v1089
      %v1111 = vsel %vm585, %v942, %v1091
      %v1112 = vsel %vm805, %v1110, %v1097
      %v1113 = vsel %vm805, %v1111, %v1099
      %vm1114 = vcmask 195584
      %v1115 = vsel %vm1114, %v1112, %v1105
      %v1116 = vsel %vm1114, %v1113, %v1107
      %v1117 = vpack.c.bf16 %v1116, %v1115
      %v1118 = vld [vmem:[%s4] sm:$0xf]
      %v1119 = vld [vmem:[%s4 + $0x4] sm:$0xf]
      %v1120 = vld [vmem:[%s4 + $0x8] sm:$0xf]
      %v1121 = vld [vmem:[%s4 + $0xc] sm:$0xf]
      %v1122 = vld [vmem:[%s5] sm:$0x1]
      %v1124 = vlaneseq
      %v1125 = vshrl.u32 %v1124, 7
      %v1126 = vsub.s32 0, %v1125
      %v1127 = vrot.slane %v1122, %v1126
      %v1133 = vunpack.c.l.b16 %v1118
      %v1134 = vunpack.c.l.b16 %v1119
      %v1135 = vunpack.c.l.b16 %v1120
      %v1136 = vunpack.c.l.b16 %v1121
      %v1137 = vpack.c.b16 %v1134, %v1133
      %v1138 = vpack.c.b16 %v1136, %v1135
      %v1142 = vsel %vm513, %v1117, 0
      %1144 = vmatprep.subr.bf16.mxu0 0
      %1145 = vmatpush1.bf16.msra.mxu0 %v1137
      %1146 = vmatprep.subr.bf16.mxu0 0
      %1147 = vmatpush1.bf16.msra.mxu0 %v1138
      %1148 = vmatprep.subr.bf16.mxu0 0
      %1149 = vmatpush1.bf16.msra.mxu0 0
      %1150 = vmatprep.subr.bf16.mxu0 0
      %1151 = vmatpush1.bf16.msra.mxu0 0
      %1152 = vmatprep.subr.bf16.mxu0 0
      %1153 = vmatpush1.bf16.msra.mxu0 0
      %1154 = vmatprep.subr.bf16.mxu0 0
      %1155 = vmatpush1.bf16.msra.mxu0 0
      %1156 = vmatprep.subr.bf16.mxu0 0
      %1157 = vmatpush1.bf16.msra.mxu0 0
      %1158 = vmatprep.subr.bf16.mxu0 0
      %1159 = vmatpush1.bf16.msra.mxu0 0
      %1160 = vmatprep.subr.bf16.mxu0 0
      %1161 = vmatpush1.bf16.msra.mxu0 0
      %1162 = vmatprep.subr.bf16.mxu0 0
      %1163 = vmatpush1.bf16.msra.mxu0 0
      %1164 = vmatprep.subr.bf16.mxu0 0
      %1165 = vmatpush1.bf16.msra.mxu0 0
      %1166 = vmatprep.subr.bf16.mxu0 0
      %1167 = vmatpush1.bf16.msra.mxu0 0
      %1168 = vmatprep.subr.bf16.mxu0 0
      %1169 = vmatpush1.bf16.msra.mxu0 0
      %1170 = vmatprep.subr.bf16.mxu0 0
      %1171 = vmatpush1.bf16.msra.mxu0 0
      %1172 = vmatprep.subr.bf16.mxu0 0
      %1173 = vmatpush1.bf16.msra.mxu0 0
      %1174 = vmatprep.subr.bf16.mxu0 0
      %1175 = vmatpush1.bf16.msra.mxu0 0
      %1176 = vmatprep.mubr.bf16.mxu0 0
      %1177 = vmatmul.mubr.bf16.gmra.mrb[0].mxu0 %v1142
      %v1178 = vpop.f32.mrb[0].mxu0
      %v1179 = vadd.f32 %v1127, %v1178
      %v1180 = vpop.f32.mrb[0].mxu0
      %v1181 = vpop.f32.mrb[0].mxu0
      %v1182 = vadd.f32 %v1127, %v1181
      %v1183 = vpop.f32.mrb[0].mxu0
      %1184 = vdwg.mxu0
      %v1185 = vadd.f32 %v486, %v1179
      %v1186 = vadd.f32 %v487, %v1182
      %v1187 = vsel %vm513, %v1185, 0.0
      %1188 = vadd.xlane.f32.xlu0 %v1187
      %v1189 = vpop.xlane.xlu0 %1188
      %v1190 = vsel %vm513, %v1186, 0.0
      %1191 = vadd.xlane.f32.xlu0 %v1190
      %v1192 = vpop.xlane.xlu0 %1191
      %v1193 = vrcp.pop 32.0
      %v1194 = vmul.f32 %v1189, %v1193
      %v1195 = vmul.f32 %v1192, %v1193
      %v1196 = vsub.f32 %v1185, %v1194
      %v1197 = vsub.f32 %v1186, %v1195
      %v1198 = vmul.f32 %v1196, %v1196
      %v1199 = vmul.f32 %v1197, %v1197
      %v1200 = vsel %vm513, %v1198, 0.0
      %1201 = vadd.xlane.f32.xlu0 %v1200
      %v1202 = vpop.xlane.xlu0 %1201
      %v1203 = vsel %vm513, %v1199, 0.0
      %1204 = vadd.xlane.f32.xlu0 %v1203
      %v1205 = vpop.xlane.xlu0 %1204
      %v1206 = vmul.f32 %v1202, %v1193
      %v1207 = vmul.f32 %v1205, %v1193
      %v1208 = vadd.f32 %v1206, 1e-05
      %v1209 = vadd.f32 %v1207, 1e-05
      %v1210 = vrsqrt.pop %v1208
      %v1211 = vrsqrt.pop %v1209
      %v1212 = vmul.f32 %v1196, %v1210
      %v1213 = vmul.f32 %v1197, %v1211
      %v1214 = vld [vmem:[%s6] sm:$0x1]
      %v1216 = vlaneseq
      %v1217 = vshrl.u32 %v1216, 7
      %v1218 = vsub.s32 0, %v1217
      %v1219 = vrot.slane %v1214, %v1218
      %v1221 = vmul.f32 %v1212, %v1219
      %v1222 = vmul.f32 %v1213, %v1219
      %v1223 = vld [vmem:[%s7] sm:$0x1]
      %v1225 = vlaneseq
      %v1226 = vshrl.u32 %v1225, 7
      %v1227 = vsub.s32 0, %v1226
      %v1228 = vrot.slane %v1223, %v1227
      %v1230 = vadd.f32 %v1221, %v1228
      %v1231 = vadd.f32 %v1222, %v1228
      %v1232 = vpack.c.bf16 %v1231, %v1230
      %v1233 = vld [vmem:[%s8] sm:$0xf]
      %v1234 = vld [vmem:[%s8 + $0x4] sm:$0xf]
      %v1235 = vld [vmem:[%s8 + $0x8] sm:$0xf]
      %v1236 = vld [vmem:[%s8 + $0xc] sm:$0xf]
      %v1237 = vld [vmem:[%s9] sm:$0x1]
      %v1239 = vlaneseq
      %v1240 = vshrl.u32 %v1239, 7
      %v1241 = vsub.s32 0, %v1240
      %v1242 = vrot.slane %v1237, %v1241
      %v1248 = vunpack.c.l.b16 %v1233
      %v1249 = vunpack.c.l.b16 %v1234
      %v1250 = vunpack.c.l.b16 %v1235
      %v1251 = vunpack.c.l.b16 %v1236
      %v1252 = vpack.c.b16 %v1249, %v1248
      %v1253 = vpack.c.b16 %v1251, %v1250
      %v1257 = vsel %vm513, %v1232, 0
      %1259 = vmatprep.subr.bf16.mxu0 0
      %1260 = vmatpush1.bf16.msra.mxu0 %v1252
      %1261 = vmatprep.subr.bf16.mxu0 0
      %1262 = vmatpush1.bf16.msra.mxu0 %v1253
      %1263 = vmatprep.subr.bf16.mxu0 0
      %1264 = vmatpush1.bf16.msra.mxu0 0
      %1265 = vmatprep.subr.bf16.mxu0 0
      %1266 = vmatpush1.bf16.msra.mxu0 0
      %1267 = vmatprep.subr.bf16.mxu0 0
      %1268 = vmatpush1.bf16.msra.mxu0 0
      %1269 = vmatprep.subr.bf16.mxu0 0
      %1270 = vmatpush1.bf16.msra.mxu0 0
      %1271 = vmatprep.subr.bf16.mxu0 0
      %1272 = vmatpush1.bf16.msra.mxu0 0
      %1273 = vmatprep.subr.bf16.mxu0 0
      %1274 = vmatpush1.bf16.msra.mxu0 0
      %1275 = vmatprep.subr.bf16.mxu0 0
      %1276 = vmatpush1.bf16.msra.mxu0 0
      %1277 = vmatprep.subr.bf16.mxu0 0
      %1278 = vmatpush1.bf16.msra.mxu0 0
      %1279 = vmatprep.subr.bf16.mxu0 0
      %1280 = vmatpush1.bf16.msra.mxu0 0
      %1281 = vmatprep.subr.bf16.mxu0 0
      %1282 = vmatpush1.bf16.msra.mxu0 0
      %1283 = vmatprep.subr.bf16.mxu0 0
      %1284 = vmatpush1.bf16.msra.mxu0 0
      %1285 = vmatprep.subr.bf16.mxu0 0
      %1286 = vmatpush1.bf16.msra.mxu0 0
      %1287 = vmatprep.subr.bf16.mxu0 0
      %1288 = vmatpush1.bf16.msra.mxu0 0
      %1289 = vmatprep.subr.bf16.mxu0 0
      %1290 = vmatpush1.bf16.msra.mxu0 0
      %1291 = vmatprep.mubr.bf16.mxu0 0
      %1292 = vmatmul.mubr.bf16.gmra.mrb[0].mxu0 %v1257
      %v1293 = vpop.f32.mrb[0].mxu0
      %v1294 = vadd.f32 %v1242, %v1293
      %v1295 = vpop.f32.mrb[0].mxu0
      %v1296 = vpop.f32.mrb[0].mxu0
      %v1297 = vadd.f32 %v1242, %v1296
      %v1298 = vpop.f32.mrb[0].mxu0
      %1299 = vdwg.mxu0
      %v1300 = vmax.f32 %v1294, 0.0
      %v1301 = vmax.f32 %v1297, 0.0
      %v1302 = vpack.c.bf16 %v1301, %v1300
      %v1303 = vld [vmem:[%s10] sm:$0xf]
      %v1304 = vld [vmem:[%s10 + $0x4] sm:$0xf]
      %v1305 = vld [vmem:[%s10 + $0x8] sm:$0xf]
      %v1306 = vld [vmem:[%s10 + $0xc] sm:$0xf]
      %v1307 = vld [vmem:[%s10 + $0x10] sm:$0xf]
      %v1308 = vld [vmem:[%s10 + $0x14] sm:$0xf]
      %v1309 = vld [vmem:[%s10 + $0x18] sm:$0xf]
      %v1310 = vld [vmem:[%s10 + $0x1c] sm:$0xf]
      %v1311 = vld [vmem:[%s11] sm:$0x1]
      %v1313 = vlaneseq
      %v1314 = vshrl.u32 %v1313, 7
      %v1315 = vsub.s32 0, %v1314
      %v1316 = vrot.slane %v1311, %v1315
      %v1326 = vunpack.c.l.b16 %v1303
      %v1327 = vunpack.c.l.b16 %v1304
      %v1328 = vunpack.c.l.b16 %v1305
      %v1329 = vunpack.c.l.b16 %v1306
      %v1330 = vunpack.c.l.b16 %v1307
      %v1331 = vunpack.c.l.b16 %v1308
      %v1332 = vunpack.c.l.b16 %v1309
      %v1333 = vunpack.c.l.b16 %v1310
      %v1334 = vpack.c.b16 %v1327, %v1326
      %v1335 = vpack.c.b16 %v1329, %v1328
      %v1336 = vpack.c.b16 %v1331, %v1330
      %v1337 = vpack.c.b16 %v1333, %v1332
      %vm1342 = vcmask 523264
      %v1344 = vsel %vm1342, %v1302, 0
      %1346 = vmatprep.subr.bf16.mxu0 0
      %1347 = vmatpush1.bf16.msra.mxu0 %v1334
      %1348 = vmatprep.subr.bf16.mxu0 0
      %1349 = vmatpush1.bf16.msra.mxu0 %v1335
      %1350 = vmatprep.subr.bf16.mxu0 0
      %1351 = vmatpush1.bf16.msra.mxu0 %v1336
      %1352 = vmatprep.subr.bf16.mxu0 0
      %1353 = vmatpush1.bf16.msra.mxu0 %v1337
      %1354 = vmatprep.subr.bf16.mxu0 0
      %1355 = vmatpush1.bf16.msra.mxu0 0
      %1356 = vmatprep.subr.bf16.mxu0 0
      %1357 = vmatpush1.bf16.msra.mxu0 0
      %1358 = vmatprep.subr.bf16.mxu0 0
      %1359 = vmatpush1.bf16.msra.mxu0 0
      %1360 = vmatprep.subr.bf16.mxu0 0
      %1361 = vmatpush1.bf16.msra.mxu0 0
      %1362 = vmatprep.subr.bf16.mxu0 0
      %1363 = vmatpush1.bf16.msra.mxu0 0
      %1364 = vmatprep.subr.bf16.mxu0 0
      %1365 = vmatpush1.bf16.msra.mxu0 0
      %1366 = vmatprep.subr.bf16.mxu0 0
      %1367 = vmatpush1.bf16.msra.mxu0 0
      %1368 = vmatprep.subr.bf16.mxu0 0
      %1369 = vmatpush1.bf16.msra.mxu0 0
      %1370 = vmatprep.subr.bf16.mxu0 0
      %1371 = vmatpush1.bf16.msra.mxu0 0
      %1372 = vmatprep.subr.bf16.mxu0 0
      %1373 = vmatpush1.bf16.msra.mxu0 0
      %1374 = vmatprep.subr.bf16.mxu0 0
      %1375 = vmatpush1.bf16.msra.mxu0 0
      %1376 = vmatprep.subr.bf16.mxu0 0
      %1377 = vmatpush1.bf16.msra.mxu0 0
      %1378 = vmatprep.mubr.bf16.mxu0 0
      %1379 = vmatmul.mubr.bf16.gmra.mrb[0].mxu0 %v1344
      %v1380 = vpop.f32.mrb[0].mxu0
      %v1381 = vadd.f32 %v1316, %v1380
      %v1382 = vpop.f32.mrb[0].mxu0
      %v1383 = vpop.f32.mrb[0].mxu0
      %v1384 = vadd.f32 %v1316, %v1383
      %v1385 = vpop.f32.mrb[0].mxu0
      %1386 = vdwg.mxu0
      %v1387 = vadd.f32 %v1230, %v1381
      %v1388 = vadd.f32 %v1231, %v1384
      %v1389 = vsel %vm513, %v1387, 0.0
      %1390 = vadd.xlane.f32.xlu0 %v1389
      %v1391 = vpop.xlane.xlu0 %1390
      %v1392 = vsel %vm513, %v1388, 0.0
      %1393 = vadd.xlane.f32.xlu0 %v1392
      %v1394 = vpop.xlane.xlu0 %1393
      %v1395 = vmul.f32 %v1391, %v1193
      %v1396 = vmul.f32 %v1394, %v1193
      %v1397 = vsub.f32 %v1387, %v1395
      %v1398 = vsub.f32 %v1388, %v1396
      %v1399 = vmul.f32 %v1397, %v1397
      %v1400 = vmul.f32 %v1398, %v1398
      %v1401 = vsel %vm513, %v1399, 0.0
      %1402 = vadd.xlane.f32.xlu0 %v1401
      %v1403 = vpop.xlane.xlu0 %1402
      %v1404 = vsel %vm513, %v1400, 0.0
      %1405 = vadd.xlane.f32.xlu0 %v1404
      %v1406 = vpop.xlane.xlu0 %1405
      %v1407 = vmul.f32 %v1403, %v1193
      %v1408 = vmul.f32 %v1406, %v1193
      %v1409 = vadd.f32 %v1407, 1e-05
      %v1410 = vadd.f32 %v1408, 1e-05
      %v1411 = vrsqrt.pop %v1409
      %v1412 = vrsqrt.pop %v1410
      %v1413 = vmul.f32 %v1397, %v1411
      %v1414 = vmul.f32 %v1398, %v1412
      %v1415 = vld [vmem:[%s12] sm:$0x1]
      %v1417 = vlaneseq
      %v1418 = vshrl.u32 %v1417, 7
      %v1419 = vsub.s32 0, %v1418
      %v1420 = vrot.slane %v1415, %v1419
      %v1422 = vmul.f32 %v1413, %v1420
      %v1423 = vmul.f32 %v1414, %v1420
      %v1424 = vld [vmem:[%s13] sm:$0x1]
      %v1426 = vlaneseq
      %v1427 = vshrl.u32 %v1426, 7
      %v1428 = vsub.s32 0, %v1427
      %v1429 = vrot.slane %v1424, %v1428
      %v1431 = vadd.f32 %v1422, %v1429
      %v1432 = vadd.f32 %v1423, %v1429
      %v1433 = vpack.c.bf16 %v1432, %v1431
      %s1434 = scalar_lea.vmem %s2, 16
      %v1435 = vld [vmem:[%s1434] sm:$0xf]
      %v1436 = vld [vmem:[%s1434 + $0x4] sm:$0xf]
      %v1437 = vld [vmem:[%s1434 + $0x8] sm:$0xf]
      %v1438 = vld [vmem:[%s1434 + $0xc] sm:$0xf]
      %s1439 = scalar_lea.vmem %s3, 1
      %v1440 = vld [vmem:[%s1439] sm:$0x1]
      %v1442 = vlaneseq
      %v1443 = vshrl.u32 %v1442, 7
      %v1444 = vsub.s32 0, %v1443
      %v1445 = vrot.slane %v1440, %v1444
      %v1451 = vunpack.c.l.b16 %v1435
      %v1452 = vunpack.c.l.b16 %v1436
      %v1453 = vunpack.c.l.b16 %v1437
      %v1454 = vunpack.c.l.b16 %v1438
      %v1455 = vpack.c.b16 %v1452, %v1451
      %v1456 = vpack.c.b16 %v1454, %v1453
      %v1460 = vsel %vm513, %v1433, 0
      %1462 = vmatprep.subr.bf16.mxu0 0
      %1463 = vmatpush1.bf16.msra.mxu0 %v1455
      %1464 = vmatprep.subr.bf16.mxu0 0
      %1465 = vmatpush1.bf16.msra.mxu0 %v1456
      %1466 = vmatprep.subr.bf16.mxu0 0
      %1467 = vmatpush1.bf16.msra.mxu0 0
      %1468 = vmatprep.subr.bf16.mxu0 0
      %1469 = vmatpush1.bf16.msra.mxu0 0
      %1470 = vmatprep.subr.bf16.mxu0 0
      %1471 = vmatpush1.bf16.msra.mxu0 0
      %1472 = vmatprep.subr.bf16.mxu0 0
      %1473 = vmatpush1.bf16.msra.mxu0 0
      %1474 = vmatprep.subr.bf16.mxu0 0
      %1475 = vmatpush1.bf16.msra.mxu0 0
      %1476 = vmatprep.subr.bf16.mxu0 0
      %1477 = vmatpush1.bf16.msra.mxu0 0
      %1478 = vmatprep.subr.bf16.mxu0 0
      %1479 = vmatpush1.bf16.msra.mxu0 0
      %1480 = vmatprep.subr.bf16.mxu0 0
      %1481 = vmatpush1.bf16.msra.mxu0 0
      %1482 = vmatprep.subr.bf16.mxu0 0
      %1483 = vmatpush1.bf16.msra.mxu0 0
      %1484 = vmatprep.subr.bf16.mxu0 0
      %1485 = vmatpush1.bf16.msra.mxu0 0
      %1486 = vmatprep.subr.bf16.mxu0 0
      %1487 = vmatpush1.bf16.msra.mxu0 0
      %1488 = vmatprep.subr.bf16.mxu0 0
      %1489 = vmatpush1.bf16.msra.mxu0 0
      %1490 = vmatprep.subr.bf16.mxu0 0
      %1491 = vmatpush1.bf16.msra.mxu0 0
      %1492 = vmatprep.subr.bf16.mxu0 0
      %1493 = vmatpush1.bf16.msra.mxu0 0
      %1494 = vmatprep.mubr.bf16.mxu0 0
      %1495 = vmatmul.mubr.bf16.gmra.mrb[0].mxu0 %v1460
      %v1496 = vpop.f32.mrb[0].mxu0
      %v1497 = vadd.f32 %v1445, %v1496
      %v1498 = vpop.f32.mrb[0].mxu0
      %v1499 = vpop.f32.mrb[0].mxu0
      %v1500 = vadd.f32 %v1445, %v1499
      %v1501 = vpop.f32.mrb[0].mxu0
      %1502 = vdwg.mxu0
      %1505 = vrot.lane.b32.xlu0 %v1497, 120
      %v1506 = vpop.permute.xlu0 %1505
      %1507 = vrot.lane.b32.xlu0 %v1500, 120
      %v1508 = vpop.permute.xlu0 %1507
      %1511 = vrot.lane.b32.xlu0 %v1497, 112
      %v1512 = vpop.permute.xlu0 %1511
      %1513 = vrot.lane.b32.xlu0 %v1500, 112
      %v1514 = vpop.permute.xlu0 %1513
      %1517 = vrot.lane.b32.xlu0 %v1497, 104
      %v1518 = vpop.permute.xlu0 %1517
      %1519 = vrot.lane.b32.xlu0 %v1500, 104
      %v1520 = vpop.permute.xlu0 %1519
      %v1523 = vpack.c.bf16 %v1500, %v1497
      %v1524 = vpack.c.bf16 %v1508, %v1506
      %v1525 = vpack.c.bf16 %v1514, %v1512
      %v1526 = vpack.c.bf16 %v1520, %v1518
      %1528 = vrot.lane.b32.xlu0 %v1523, 96
      %v1529 = vpop.permute.xlu0 %1528
      %v1531 = vsel %vm585, %v1523, 0
      %v1534 = vsel %vm585, %v1529, 0
      %1536 = vmatprep.subr.bf16.mxu0 0
      %1537 = vmatpush1.bf16.xpose.msra.mxu0 %v1534
      %1538 = vmatprep.subr.bf16.mxu0 0
      %1539 = vmatpush1.bf16.xpose.msra.mxu0 0
      %1540 = vmatprep.subr.bf16.mxu0 0
      %1541 = vmatpush1.bf16.xpose.msra.mxu0 0
      %1542 = vmatprep.subr.bf16.mxu0 0
      %1543 = vmatpush1.bf16.xpose.msra.mxu0 0
      %1544 = vmatprep.subr.bf16.mxu0 0
      %1545 = vmatpush1.bf16.xpose.msra.mxu0 0
      %1546 = vmatprep.subr.bf16.mxu0 0
      %1547 = vmatpush1.bf16.xpose.msra.mxu0 0
      %1548 = vmatprep.subr.bf16.mxu0 0
      %1549 = vmatpush1.bf16.xpose.msra.mxu0 0
      %1550 = vmatprep.subr.bf16.mxu0 0
      %1551 = vmatpush1.bf16.xpose.msra.mxu0 0
      %1552 = vmatprep.subr.bf16.mxu0 0
      %1553 = vmatpush1.bf16.xpose.msra.mxu0 0
      %1554 = vmatprep.subr.bf16.mxu0 0
      %1555 = vmatpush1.bf16.xpose.msra.mxu0 0
      %1556 = vmatprep.subr.bf16.mxu0 0
      %1557 = vmatpush1.bf16.xpose.msra.mxu0 0
      %1558 = vmatprep.subr.bf16.mxu0 0
      %1559 = vmatpush1.bf16.xpose.msra.mxu0 0
      %1560 = vmatprep.subr.bf16.mxu0 0
      %1561 = vmatpush1.bf16.xpose.msra.mxu0 0
      %1562 = vmatprep.subr.bf16.mxu0 0
      %1563 = vmatpush1.bf16.xpose.msra.mxu0 0
      %1564 = vmatprep.subr.bf16.mxu0 0
      %1565 = vmatpush1.bf16.xpose.msra.mxu0 0
      %1566 = vmatprep.subr.bf16.mxu0 0
      %1567 = vmatpush1.bf16.xpose.msra.mxu0 0
      %1568 = vmatprep.mubr.bf16.mxu0 0
      %1569 = vmatmul.mubr.bf16.gmra.mrb[0].mxu0 %v1531
      %v1570 = vpop.f32.mrb[0].mxu0
      %v1571 = vadd.f32 0.0, %v1570
      %v1572 = vpop.f32.mrb[0].mxu0
      %v1573 = vpop.f32.mrb[0].mxu0
      %v1574 = vadd.f32 0.0, %v1573
      %v1575 = vpop.f32.mrb[0].mxu0
      %1576 = vdwg.mxu0
      %1578 = vrot.lane.b32.xlu0 %v1524, 96
      %v1579 = vpop.permute.xlu0 %1578
      %v1581 = vsel %vm585, %v1524, 0
      %v1584 = vsel %vm585, %v1579, 0
      %1586 = vmatprep.subr.bf16.mxu0 0
      %1587 = vmatpush1.bf16.xpose.msra.mxu0 %v1584
      %1588 = vmatprep.subr.bf16.mxu0 0
      %1589 = vmatpush1.bf16.xpose.msra.mxu0 0
      %1590 = vmatprep.subr.bf16.mxu0 0
      %1591 = vmatpush1.bf16.xpose.msra.mxu0 0
      %1592 = vmatprep.subr.bf16.mxu0 0
      %1593 = vmatpush1.bf16.xpose.msra.mxu0 0
      %1594 = vmatprep.subr.bf16.mxu0 0
      %1595 = vmatpush1.bf16.xpose.msra.mxu0 0
      %1596 = vmatprep.subr.bf16.mxu0 0
      %1597 = vmatpush1.bf16.xpose.msra.mxu0 0
      %1598 = vmatprep.subr.bf16.mxu0 0
      %1599 = vmatpush1.bf16.xpose.msra.mxu0 0
      %1600 = vmatprep.subr.bf16.mxu0 0
      %1601 = vmatpush1.bf16.xpose.msra.mxu0 0
      %1602 = vmatprep.subr.bf16.mxu0 0
      %1603 = vmatpush1.bf16.xpose.msra.mxu0 0
      %1604 = vmatprep.subr.bf16.mxu0 0
      %1605 = vmatpush1.bf16.xpose.msra.mxu0 0
      %1606 = vmatprep.subr.bf16.mxu0 0
      %1607 = vmatpush1.bf16.xpose.msra.mxu0 0
      %1608 = vmatprep.subr.bf16.mxu0 0
      %1609 = vmatpush1.bf16.xpose.msra.mxu0 0
      %1610 = vmatprep.subr.bf16.mxu0 0
      %1611 = vmatpush1.bf16.xpose.msra.mxu0 0
      %1612 = vmatprep.subr.bf16.mxu0 0
      %1613 = vmatpush1.bf16.xpose.msra.mxu0 0
      %1614 = vmatprep.subr.bf16.mxu0 0
      %1615 = vmatpush1.bf16.xpose.msra.mxu0 0
      %1616 = vmatprep.subr.bf16.mxu0 0
      %1617 = vmatpush1.bf16.xpose.msra.mxu0 0
      %1618 = vmatprep.mubr.bf16.mxu0 0
      %1619 = vmatmul.mubr.bf16.gmra.mrb[0].mxu0 %v1581
      %v1620 = vpop.f32.mrb[0].mxu0
      %v1621 = vadd.f32 0.0, %v1620
      %v1622 = vpop.f32.mrb[0].mxu0
      %v1623 = vpop.f32.mrb[0].mxu0
      %v1624 = vadd.f32 0.0, %v1623
      %v1625 = vpop.f32.mrb[0].mxu0
      %1626 = vdwg.mxu0
      %1628 = vrot.lane.b32.xlu0 %v1525, 96
      %v1629 = vpop.permute.xlu0 %1628
      %v1631 = vsel %vm585, %v1525, 0
      %v1634 = vsel %vm585, %v1629, 0
      %1636 = vmatprep.subr.bf16.mxu0 0
      %1637 = vmatpush1.bf16.xpose.msra.mxu0 %v1634
      %1638 = vmatprep.subr.bf16.mxu0 0
      %1639 = vmatpush1.bf16.xpose.msra.mxu0 0
      %1640 = vmatprep.subr.bf16.mxu0 0
      %1641 = vmatpush1.bf16.xpose.msra.mxu0 0
      %1642 = vmatprep.subr.bf16.mxu0 0
      %1643 = vmatpush1.bf16.xpose.msra.mxu0 0
      %1644 = vmatprep.subr.bf16.mxu0 0
      %1645 = vmatpush1.bf16.xpose.msra.mxu0 0
      %1646 = vmatprep.subr.bf16.mxu0 0
      %1647 = vmatpush1.bf16.xpose.msra.mxu0 0
      %1648 = vmatprep.subr.bf16.mxu0 0
      %1649 = vmatpush1.bf16.xpose.msra.mxu0 0
      %1650 = vmatprep.subr.bf16.mxu0 0
      %1651 = vmatpush1.bf16.xpose.msra.mxu0 0
      %1652 = vmatprep.subr.bf16.mxu0 0
      %1653 = vmatpush1.bf16.xpose.msra.mxu0 0
      %1654 = vmatprep.subr.bf16.mxu0 0
      %1655 = vmatpush1.bf16.xpose.msra.mxu0 0
      %1656 = vmatprep.subr.bf16.mxu0 0
      %1657 = vmatpush1.bf16.xpose.msra.mxu0 0
      %1658 = vmatprep.subr.bf16.mxu0 0
      %1659 = vmatpush1.bf16.xpose.msra.mxu0 0
      %1660 = vmatprep.subr.bf16.mxu0 0
      %1661 = vmatpush1.bf16.xpose.msra.mxu0 0
      %1662 = vmatprep.subr.bf16.mxu0 0
      %1663 = vmatpush1.bf16.xpose.msra.mxu0 0
      %1664 = vmatprep.subr.bf16.mxu0 0
      %1665 = vmatpush1.bf16.xpose.msra.mxu0 0
      %1666 = vmatprep.subr.bf16.mxu0 0
      %1667 = vmatpush1.bf16.xpose.msra.mxu0 0
      %1668 = vmatprep.mubr.bf16.mxu0 0
      %1669 = vmatmul.mubr.bf16.gmra.mrb[0].mxu0 %v1631
      %v1670 = vpop.f32.mrb[0].mxu0
      %v1671 = vadd.f32 0.0, %v1670
      %v1672 = vpop.f32.mrb[0].mxu0
      %v1673 = vpop.f32.mrb[0].mxu0
      %v1674 = vadd.f32 0.0, %v1673
      %v1675 = vpop.f32.mrb[0].mxu0
      %1676 = vdwg.mxu0
      %1678 = vrot.lane.b32.xlu0 %v1526, 96
      %v1679 = vpop.permute.xlu0 %1678
      %v1681 = vsel %vm585, %v1526, 0
      %v1684 = vsel %vm585, %v1679, 0
      %1686 = vmatprep.subr.bf16.mxu0 0
      %1687 = vmatpush1.bf16.xpose.msra.mxu0 %v1684
      %1688 = vmatprep.subr.bf16.mxu0 0
      %1689 = vmatpush1.bf16.xpose.msra.mxu0 0
      %1690 = vmatprep.subr.bf16.mxu0 0
      %1691 = vmatpush1.bf16.xpose.msra.mxu0 0
      %1692 = vmatprep.subr.bf16.mxu0 0
      %1693 = vmatpush1.bf16.xpose.msra.mxu0 0
      %1694 = vmatprep.subr.bf16.mxu0 0
      %1695 = vmatpush1.bf16.xpose.msra.mxu0 0
      %1696 = vmatprep.subr.bf16.mxu0 0
      %1697 = vmatpush1.bf16.xpose.msra.mxu0 0
      %1698 = vmatprep.subr.bf16.mxu0 0
      %1699 = vmatpush1.bf16.xpose.msra.mxu0 0
      %1700 = vmatprep.subr.bf16.mxu0 0
      %1701 = vmatpush1.bf16.xpose.msra.mxu0 0
      %1702 = vmatprep.subr.bf16.mxu0 0
      %1703 = vmatpush1.bf16.xpose.msra.mxu0 0
      %1704 = vmatprep.subr.bf16.mxu0 0
      %1705 = vmatpush1.bf16.xpose.msra.mxu0 0
      %1706 = vmatprep.subr.bf16.mxu0 0
      %1707 = vmatpush1.bf16.xpose.msra.mxu0 0
      %1708 = vmatprep.subr.bf16.mxu0 0
      %1709 = vmatpush1.bf16.xpose.msra.mxu0 0
      %1710 = vmatprep.subr.bf16.mxu0 0
      %1711 = vmatpush1.bf16.xpose.msra.mxu0 0
      %1712 = vmatprep.subr.bf16.mxu0 0
      %1713 = vmatpush1.bf16.xpose.msra.mxu0 0
      %1714 = vmatprep.subr.bf16.mxu0 0
      %1715 = vmatpush1.bf16.xpose.msra.mxu0 0
      %1716 = vmatprep.subr.bf16.mxu0 0
      %1717 = vmatpush1.bf16.xpose.msra.mxu0 0
      %1718 = vmatprep.mubr.bf16.mxu0 0
      %1719 = vmatmul.mubr.bf16.gmra.mrb[0].mxu0 %v1681
      %v1720 = vpop.f32.mrb[0].mxu0
      %v1721 = vadd.f32 0.0, %v1720
      %v1722 = vpop.f32.mrb[0].mxu0
      %v1723 = vpop.f32.mrb[0].mxu0
      %v1724 = vadd.f32 0.0, %v1723
      %v1725 = vpop.f32.mrb[0].mxu0
      %1726 = vdwg.mxu0
      %v1727 = vmul.f32 %v1571, 0.35355338
      %v1728 = vmul.f32 %v1574, 0.35355338
      %v1729 = vmul.f32 %v1621, 0.35355338
      %v1730 = vmul.f32 %v1624, 0.35355338
      %v1731 = vmul.f32 %v1671, 0.35355338
      %v1732 = vmul.f32 %v1674, 0.35355338
      %v1733 = vmul.f32 %v1721, 0.35355338
      %v1734 = vmul.f32 %v1724, 0.35355338
      %v1735 = vadd.f32 %v1727, %v795
      %v1736 = vadd.f32 %v1728, %v795
      %v1737 = vadd.f32 %v1729, %v795
      %v1738 = vadd.f32 %v1730, %v795
      %v1739 = vadd.f32 %v1731, %v795
      %v1740 = vadd.f32 %v1732, %v795
      %v1741 = vadd.f32 %v1733, %v795
      %v1742 = vadd.f32 %v1734, %v795
      %v1743 = vsel %vm805, %v1735, -inf
      %1744 = vmax.xlane.f32.xlu0 %v1743
      %v1745 = vpop.xlane.xlu0 %1744
      %v1746 = vsel %vm805, %v1736, -inf
      %1747 = vmax.xlane.f32.xlu0 %v1746
      %v1748 = vpop.xlane.xlu0 %1747
      %v1749 = vsel %vm805, %v1737, -inf
      %1750 = vmax.xlane.f32.xlu0 %v1749
      %v1751 = vpop.xlane.xlu0 %1750
      %v1752 = vsel %vm805, %v1738, -inf
      %1753 = vmax.xlane.f32.xlu0 %v1752
      %v1754 = vpop.xlane.xlu0 %1753
      %v1755 = vsel %vm805, %v1739, -inf
      %1756 = vmax.xlane.f32.xlu0 %v1755
      %v1757 = vpop.xlane.xlu0 %1756
      %v1758 = vsel %vm805, %v1740, -inf
      %1759 = vmax.xlane.f32.xlu0 %v1758
      %v1760 = vpop.xlane.xlu0 %1759
      %v1761 = vsel %vm805, %v1741, -inf
      %1762 = vmax.xlane.f32.xlu0 %v1761
      %v1763 = vpop.xlane.xlu0 %1762
      %v1764 = vsel %vm805, %v1742, -inf
      %1765 = vmax.xlane.f32.xlu0 %v1764
      %v1766 = vpop.xlane.xlu0 %1765
      %v1767 = vsub.f32 %v1735, %v1745
      %v1768 = vsub.f32 %v1736, %v1748
      %v1769 = vsub.f32 %v1737, %v1751
      %v1770 = vsub.f32 %v1738, %v1754
      %v1771 = vsub.f32 %v1739, %v1757
      %v1772 = vsub.f32 %v1740, %v1760
      %v1773 = vsub.f32 %v1741, %v1763
      %v1774 = vsub.f32 %v1742, %v1766
      %v1775 = vmul.f32 %v1767, 1.442695
      %v1776 = vpow.pop %v1775
      %v1777 = vmul.f32 %v1768, 1.442695
      %v1778 = vpow.pop %v1777
      %v1779 = vmul.f32 %v1769, 1.442695
      %v1780 = vpow.pop %v1779
      %v1781 = vmul.f32 %v1770, 1.442695
      %v1782 = vpow.pop %v1781
      %v1783 = vmul.f32 %v1771, 1.442695
      %v1784 = vpow.pop %v1783
      %v1785 = vmul.f32 %v1772, 1.442695
      %v1786 = vpow.pop %v1785
      %v1787 = vmul.f32 %v1773, 1.442695
      %v1788 = vpow.pop %v1787
      %v1789 = vmul.f32 %v1774, 1.442695
      %v1790 = vpow.pop %v1789
      %v1791 = vsel %vm805, %v1776, 0.0
      %1792 = vadd.xlane.f32.xlu0 %v1791
      %v1793 = vpop.xlane.xlu0 %1792
      %v1794 = vsel %vm805, %v1778, 0.0
      %1795 = vadd.xlane.f32.xlu0 %v1794
      %v1796 = vpop.xlane.xlu0 %1795
      %v1797 = vsel %vm805, %v1780, 0.0
      %1798 = vadd.xlane.f32.xlu0 %v1797
      %v1799 = vpop.xlane.xlu0 %1798
      %v1800 = vsel %vm805, %v1782, 0.0
      %1801 = vadd.xlane.f32.xlu0 %v1800
      %v1802 = vpop.xlane.xlu0 %1801
      %v1803 = vsel %vm805, %v1784, 0.0
      %1804 = vadd.xlane.f32.xlu0 %v1803
      %v1805 = vpop.xlane.xlu0 %1804
      %v1806 = vsel %vm805, %v1786, 0.0
      %1807 = vadd.xlane.f32.xlu0 %v1806
      %v1808 = vpop.xlane.xlu0 %1807
      %v1809 = vsel %vm805, %v1788, 0.0
      %1810 = vadd.xlane.f32.xlu0 %v1809
      %v1811 = vpop.xlane.xlu0 %1810
      %v1812 = vsel %vm805, %v1790, 0.0
      %1813 = vadd.xlane.f32.xlu0 %v1812
      %v1814 = vpop.xlane.xlu0 %1813
      %v1815 = vrcp.pop %v1793
      %v1816 = vrcp.pop %v1796
      %v1817 = vrcp.pop %v1799
      %v1818 = vrcp.pop %v1802
      %v1819 = vrcp.pop %v1805
      %v1820 = vrcp.pop %v1808
      %v1821 = vrcp.pop %v1811
      %v1822 = vrcp.pop %v1814
      %v1823 = vmul.f32 %v1776, %v1815
      %v1824 = vmul.f32 %v1778, %v1816
      %v1825 = vmul.f32 %v1780, %v1817
      %v1826 = vmul.f32 %v1782, %v1818
      %v1827 = vmul.f32 %v1784, %v1819
      %v1828 = vmul.f32 %v1786, %v1820
      %v1829 = vmul.f32 %v1788, %v1821
      %v1830 = vmul.f32 %v1790, %v1822
      %v1831 = vpack.c.bf16 %v1824, %v1823
      %v1832 = vpack.c.bf16 %v1826, %v1825
      %v1833 = vpack.c.bf16 %v1828, %v1827
      %v1834 = vpack.c.bf16 %v1830, %v1829
      %1835 = vrot.lane.b32.xlu0 %v1523, 64
      %v1836 = vpop.permute.xlu0 %1835
      %v1839 = vsel %vm805, %v1831, 0
      %1841 = vmatprep.subr.bf16.mxu0 0
      %1842 = vmatpush1.bf16.msra.mxu0 %v1836
      %1843 = vmatprep.subr.bf16.mxu0 0
      %1844 = vmatpush1.bf16.msra.mxu0 0
      %1845 = vmatprep.subr.bf16.mxu0 0
      %1846 = vmatpush1.bf16.msra.mxu0 0
      %1847 = vmatprep.subr.bf16.mxu0 0
      %1848 = vmatpush1.bf16.msra.mxu0 0
      %1849 = vmatprep.subr.bf16.mxu0 0
      %1850 = vmatpush1.bf16.msra.mxu0 0
      %1851 = vmatprep.subr.bf16.mxu0 0
      %1852 = vmatpush1.bf16.msra.mxu0 0
      %1853 = vmatprep.subr.bf16.mxu0 0
      %1854 = vmatpush1.bf16.msra.mxu0 0
      %1855 = vmatprep.subr.bf16.mxu0 0
      %1856 = vmatpush1.bf16.msra.mxu0 0
      %1857 = vmatprep.subr.bf16.mxu0 0
      %1858 = vmatpush1.bf16.msra.mxu0 0
      %1859 = vmatprep.subr.bf16.mxu0 0
      %1860 = vmatpush1.bf16.msra.mxu0 0
      %1861 = vmatprep.subr.bf16.mxu0 0
      %1862 = vmatpush1.bf16.msra.mxu0 0
      %1863 = vmatprep.subr.bf16.mxu0 0
      %1864 = vmatpush1.bf16.msra.mxu0 0
      %1865 = vmatprep.subr.bf16.mxu0 0
      %1866 = vmatpush1.bf16.msra.mxu0 0
      %1867 = vmatprep.subr.bf16.mxu0 0
      %1868 = vmatpush1.bf16.msra.mxu0 0
      %1869 = vmatprep.subr.bf16.mxu0 0
      %1870 = vmatpush1.bf16.msra.mxu0 0
      %1871 = vmatprep.subr.bf16.mxu0 0
      %1872 = vmatpush1.bf16.msra.mxu0 0
      %1873 = vmatprep.mubr.bf16.mxu0 0
      %1874 = vmatmul.mubr.bf16.gmra.mrb[0].mxu0 %v1839
      %v1875 = vpop.f32.mrb[0].mxu0
      %v1876 = vadd.f32 0.0, %v1875
      %v1877 = vpop.f32.mrb[0].mxu0
      %v1878 = vpop.f32.mrb[0].mxu0
      %v1879 = vadd.f32 0.0, %v1878
      %v1880 = vpop.f32.mrb[0].mxu0
      %1881 = vdwg.mxu0
      %1882 = vrot.lane.b32.xlu0 %v1524, 64
      %v1883 = vpop.permute.xlu0 %1882
      %v1886 = vsel %vm805, %v1832, 0
      %1888 = vmatprep.subr.bf16.mxu0 0
      %1889 = vmatpush1.bf16.msra.mxu0 %v1883
      %1890 = vmatprep.subr.bf16.mxu0 0
      %1891 = vmatpush1.bf16.msra.mxu0 0
      %1892 = vmatprep.subr.bf16.mxu0 0
      %1893 = vmatpush1.bf16.msra.mxu0 0
      %1894 = vmatprep.subr.bf16.mxu0 0
      %1895 = vmatpush1.bf16.msra.mxu0 0
      %1896 = vmatprep.subr.bf16.mxu0 0
      %1897 = vmatpush1.bf16.msra.mxu0 0
      %1898 = vmatprep.subr.bf16.mxu0 0
      %1899 = vmatpush1.bf16.msra.mxu0 0
      %1900 = vmatprep.subr.bf16.mxu0 0
      %1901 = vmatpush1.bf16.msra.mxu0 0
      %1902 = vmatprep.subr.bf16.mxu0 0
      %1903 = vmatpush1.bf16.msra.mxu0 0
      %1904 = vmatprep.subr.bf16.mxu0 0
      %1905 = vmatpush1.bf16.msra.mxu0 0
      %1906 = vmatprep.subr.bf16.mxu0 0
      %1907 = vmatpush1.bf16.msra.mxu0 0
      %1908 = vmatprep.subr.bf16.mxu0 0
      %1909 = vmatpush1.bf16.msra.mxu0 0
      %1910 = vmatprep.subr.bf16.mxu0 0
      %1911 = vmatpush1.bf16.msra.mxu0 0
      %1912 = vmatprep.subr.bf16.mxu0 0
      %1913 = vmatpush1.bf16.msra.mxu0 0
      %1914 = vmatprep.subr.bf16.mxu0 0
      %1915 = vmatpush1.bf16.msra.mxu0 0
      %1916 = vmatprep.subr.bf16.mxu0 0
      %1917 = vmatpush1.bf16.msra.mxu0 0
      %1918 = vmatprep.subr.bf16.mxu0 0
      %1919 = vmatpush1.bf16.msra.mxu0 0
      %1920 = vmatprep.mubr.bf16.mxu0 0
      %1921 = vmatmul.mubr.bf16.gmra.mrb[0].mxu0 %v1886
      %v1922 = vpop.f32.mrb[0].mxu0
      %v1923 = vadd.f32 0.0, %v1922
      %v1924 = vpop.f32.mrb[0].mxu0
      %v1925 = vpop.f32.mrb[0].mxu0
      %v1926 = vadd.f32 0.0, %v1925
      %v1927 = vpop.f32.mrb[0].mxu0
      %1928 = vdwg.mxu0
      %1929 = vrot.lane.b32.xlu0 %v1525, 64
      %v1930 = vpop.permute.xlu0 %1929
      %v1933 = vsel %vm805, %v1833, 0
      %1935 = vmatprep.subr.bf16.mxu0 0
      %1936 = vmatpush1.bf16.msra.mxu0 %v1930
      %1937 = vmatprep.subr.bf16.mxu0 0
      %1938 = vmatpush1.bf16.msra.mxu0 0
      %1939 = vmatprep.subr.bf16.mxu0 0
      %1940 = vmatpush1.bf16.msra.mxu0 0
      %1941 = vmatprep.subr.bf16.mxu0 0
      %1942 = vmatpush1.bf16.msra.mxu0 0
      %1943 = vmatprep.subr.bf16.mxu0 0
      %1944 = vmatpush1.bf16.msra.mxu0 0
      %1945 = vmatprep.subr.bf16.mxu0 0
      %1946 = vmatpush1.bf16.msra.mxu0 0
      %1947 = vmatprep.subr.bf16.mxu0 0
      %1948 = vmatpush1.bf16.msra.mxu0 0
      %1949 = vmatprep.subr.bf16.mxu0 0
      %1950 = vmatpush1.bf16.msra.mxu0 0
      %1951 = vmatprep.subr.bf16.mxu0 0
      %1952 = vmatpush1.bf16.msra.mxu0 0
      %1953 = vmatprep.subr.bf16.mxu0 0
      %1954 = vmatpush1.bf16.msra.mxu0 0
      %1955 = vmatprep.subr.bf16.mxu0 0
      %1956 = vmatpush1.bf16.msra.mxu0 0
      %1957 = vmatprep.subr.bf16.mxu0 0
      %1958 = vmatpush1.bf16.msra.mxu0 0
      %1959 = vmatprep.subr.bf16.mxu0 0
      %1960 = vmatpush1.bf16.msra.mxu0 0
      %1961 = vmatprep.subr.bf16.mxu0 0
      %1962 = vmatpush1.bf16.msra.mxu0 0
      %1963 = vmatprep.subr.bf16.mxu0 0
      %1964 = vmatpush1.bf16.msra.mxu0 0
      %1965 = vmatprep.subr.bf16.mxu0 0
      %1966 = vmatpush1.bf16.msra.mxu0 0
      %1967 = vmatprep.mubr.bf16.mxu0 0
      %1968 = vmatmul.mubr.bf16.gmra.mrb[0].mxu0 %v1933
      %v1969 = vpop.f32.mrb[0].mxu0
      %v1970 = vadd.f32 0.0, %v1969
      %v1971 = vpop.f32.mrb[0].mxu0
      %v1972 = vpop.f32.mrb[0].mxu0
      %v1973 = vadd.f32 0.0, %v1972
      %v1974 = vpop.f32.mrb[0].mxu0
      %1975 = vdwg.mxu0
      %1976 = vrot.lane.b32.xlu0 %v1526, 64
      %v1977 = vpop.permute.xlu0 %1976
      %v1980 = vsel %vm805, %v1834, 0
      %1982 = vmatprep.subr.bf16.mxu0 0
      %1983 = vmatpush1.bf16.msra.mxu0 %v1977
      %1984 = vmatprep.subr.bf16.mxu0 0
      %1985 = vmatpush1.bf16.msra.mxu0 0
      %1986 = vmatprep.subr.bf16.mxu0 0
      %1987 = vmatpush1.bf16.msra.mxu0 0
      %1988 = vmatprep.subr.bf16.mxu0 0
      %1989 = vmatpush1.bf16.msra.mxu0 0
      %1990 = vmatprep.subr.bf16.mxu0 0
      %1991 = vmatpush1.bf16.msra.mxu0 0
      %1992 = vmatprep.subr.bf16.mxu0 0
      %1993 = vmatpush1.bf16.msra.mxu0 0
      %1994 = vmatprep.subr.bf16.mxu0 0
      %1995 = vmatpush1.bf16.msra.mxu0 0
      %1996 = vmatprep.subr.bf16.mxu0 0
      %1997 = vmatpush1.bf16.msra.mxu0 0
      %1998 = vmatprep.subr.bf16.mxu0 0
      %1999 = vmatpush1.bf16.msra.mxu0 0
      %2000 = vmatprep.subr.bf16.mxu0 0
      %2001 = vmatpush1.bf16.msra.mxu0 0
      %2002 = vmatprep.subr.bf16.mxu0 0
      %2003 = vmatpush1.bf16.msra.mxu0 0
      %2004 = vmatprep.subr.bf16.mxu0 0
      %2005 = vmatpush1.bf16.msra.mxu0 0
      %2006 = vmatprep.subr.bf16.mxu0 0
      %2007 = vmatpush1.bf16.msra.mxu0 0
      %2008 = vmatprep.subr.bf16.mxu0 0
      %2009 = vmatpush1.bf16.msra.mxu0 0
      %2010 = vmatprep.subr.bf16.mxu0 0
      %2011 = vmatpush1.bf16.msra.mxu0 0
      %2012 = vmatprep.subr.bf16.mxu0 0
      %2013 = vmatpush1.bf16.msra.mxu0 0
      %2014 = vmatprep.mubr.bf16.mxu0 0
      %2015 = vmatmul.mubr.bf16.gmra.mrb[0].mxu0 %v1980
      %v2016 = vpop.f32.mrb[0].mxu0
      %v2017 = vadd.f32 0.0, %v2016
      %v2018 = vpop.f32.mrb[0].mxu0
      %v2019 = vpop.f32.mrb[0].mxu0
      %v2020 = vadd.f32 0.0, %v2019
      %v2021 = vpop.f32.mrb[0].mxu0
      %2022 = vdwg.mxu0
      %2025 = vrot.lane.b32.xlu0 %v1923, 8
      %v2026 = vpop.permute.xlu0 %2025
      %2027 = vrot.lane.b32.xlu0 %v1926, 8
      %v2028 = vpop.permute.xlu0 %2027
      %2033 = vrot.lane.b32.xlu0 %v1970, 16
      %v2034 = vpop.permute.xlu0 %2033
      %2035 = vrot.lane.b32.xlu0 %v1973, 16
      %v2036 = vpop.permute.xlu0 %2035
      %2041 = vrot.lane.b32.xlu0 %v2017, 24
      %v2042 = vpop.permute.xlu0 %2041
      %2043 = vrot.lane.b32.xlu0 %v2020, 24
      %v2044 = vpop.permute.xlu0 %2043
      %v2047 = vsel %vm585, %v1876, %v2026
      %v2048 = vsel %vm585, %v1879, %v2028
      %v2049 = vsel %vm805, %v2047, %v2034
      %v2050 = vsel %vm805, %v2048, %v2036
      %v2051 = vsel %vm1114, %v2049, %v2042
      %v2052 = vsel %vm1114, %v2050, %v2044
      %v2053 = vpack.c.bf16 %v2052, %v2051
      %s2054 = scalar_lea.vmem %s4, 16
      %v2055 = vld [vmem:[%s2054] sm:$0xf]
      %v2056 = vld [vmem:[%s2054 + $0x4] sm:$0xf]
      %v2057 = vld [vmem:[%s2054 + $0x8] sm:$0xf]
      %v2058 = vld [vmem:[%s2054 + $0xc] sm:$0xf]
      %s2059 = scalar_lea.vmem %s5, 1
      %v2060 = vld [vmem:[%s2059] sm:$0x1]
      %v2062 = vlaneseq
      %v2063 = vshrl.u32 %v2062, 7
      %v2064 = vsub.s32 0, %v2063
      %v2065 = vrot.slane %v2060, %v2064
      %v2071 = vunpack.c.l.b16 %v2055
      %v2072 = vunpack.c.l.b16 %v2056
      %v2073 = vunpack.c.l.b16 %v2057
      %v2074 = vunpack.c.l.b16 %v2058
      %v2075 = vpack.c.b16 %v2072, %v2071
      %v2076 = vpack.c.b16 %v2074, %v2073
      %v2080 = vsel %vm513, %v2053, 0
      %2082 = vmatprep.subr.bf16.mxu0 0
      %2083 = vmatpush1.bf16.msra.mxu0 %v2075
      %2084 = vmatprep.subr.bf16.mxu0 0
      %2085 = vmatpush1.bf16.msra.mxu0 %v2076
      %2086 = vmatprep.subr.bf16.mxu0 0
      %2087 = vmatpush1.bf16.msra.mxu0 0
      %2088 = vmatprep.subr.bf16.mxu0 0
      %2089 = vmatpush1.bf16.msra.mxu0 0
      %2090 = vmatprep.subr.bf16.mxu0 0
      %2091 = vmatpush1.bf16.msra.mxu0 0
      %2092 = vmatprep.subr.bf16.mxu0 0
      %2093 = vmatpush1.bf16.msra.mxu0 0
      %2094 = vmatprep.subr.bf16.mxu0 0
      %2095 = vmatpush1.bf16.msra.mxu0 0
      %2096 = vmatprep.subr.bf16.mxu0 0
      %2097 = vmatpush1.bf16.msra.mxu0 0
      %2098 = vmatprep.subr.bf16.mxu0 0
      %2099 = vmatpush1.bf16.msra.mxu0 0
      %2100 = vmatprep.subr.bf16.mxu0 0
      %2101 = vmatpush1.bf16.msra.mxu0 0
      %2102 = vmatprep.subr.bf16.mxu0 0
      %2103 = vmatpush1.bf16.msra.mxu0 0
      %2104 = vmatprep.subr.bf16.mxu0 0
      %2105 = vmatpush1.bf16.msra.mxu0 0
      %2106 = vmatprep.subr.bf16.mxu0 0
      %2107 = vmatpush1.bf16.msra.mxu0 0
      %2108 = vmatprep.subr.bf16.mxu0 0
      %2109 = vmatpush1.bf16.msra.mxu0 0
      %2110 = vmatprep.subr.bf16.mxu0 0
      %2111 = vmatpush1.bf16.msra.mxu0 0
      %2112 = vmatprep.subr.bf16.mxu0 0
      %2113 = vmatpush1.bf16.msra.mxu0 0
      %2114 = vmatprep.mubr.bf16.mxu0 0
      %2115 = vmatmul.mubr.bf16.gmra.mrb[0].mxu0 %v2080
      %v2116 = vpop.f32.mrb[0].mxu0
      %v2117 = vadd.f32 %v2065, %v2116
      %v2118 = vpop.f32.mrb[0].mxu0
      %v2119 = vpop.f32.mrb[0].mxu0
      %v2120 = vadd.f32 %v2065, %v2119
      %v2121 = vpop.f32.mrb[0].mxu0
      %2122 = vdwg.mxu0
      %v2123 = vadd.f32 %v1431, %v2117
      %v2124 = vadd.f32 %v1432, %v2120
      %v2125 = vsel %vm513, %v2123, 0.0
      %2126 = vadd.xlane.f32.xlu0 %v2125
      %v2127 = vpop.xlane.xlu0 %2126
      %v2128 = vsel %vm513, %v2124, 0.0
      %2129 = vadd.xlane.f32.xlu0 %v2128
      %v2130 = vpop.xlane.xlu0 %2129
      %v2131 = vmul.f32 %v2127, %v1193
      %v2132 = vmul.f32 %v2130, %v1193
      %v2133 = vsub.f32 %v2123, %v2131
      %v2134 = vsub.f32 %v2124, %v2132
      %v2135 = vmul.f32 %v2133, %v2133
      %v2136 = vmul.f32 %v2134, %v2134
      %v2137 = vsel %vm513, %v2135, 0.0
      %2138 = vadd.xlane.f32.xlu0 %v2137
      %v2139 = vpop.xlane.xlu0 %2138
      %v2140 = vsel %vm513, %v2136, 0.0
      %2141 = vadd.xlane.f32.xlu0 %v2140
      %v2142 = vpop.xlane.xlu0 %2141
      %v2143 = vmul.f32 %v2139, %v1193
      %v2144 = vmul.f32 %v2142, %v1193
      %v2145 = vadd.f32 %v2143, 1e-05
      %v2146 = vadd.f32 %v2144, 1e-05
      %v2147 = vrsqrt.pop %v2145
      %v2148 = vrsqrt.pop %v2146
      %v2149 = vmul.f32 %v2133, %v2147
      %v2150 = vmul.f32 %v2134, %v2148
      %s2151 = scalar_lea.vmem %s6, 1
      %v2152 = vld [vmem:[%s2151] sm:$0x1]
      %v2154 = vlaneseq
      %v2155 = vshrl.u32 %v2154, 7
      %v2156 = vsub.s32 0, %v2155
      %v2157 = vrot.slane %v2152, %v2156
      %v2159 = vmul.f32 %v2149, %v2157
      %v2160 = vmul.f32 %v2150, %v2157
      %s2161 = scalar_lea.vmem %s7, 1
      %v2162 = vld [vmem:[%s2161] sm:$0x1]
      %v2164 = vlaneseq
      %v2165 = vshrl.u32 %v2164, 7
      %v2166 = vsub.s32 0, %v2165
      %v2167 = vrot.slane %v2162, %v2166
      %v2169 = vadd.f32 %v2159, %v2167
      %v2170 = vadd.f32 %v2160, %v2167
      %v2171 = vpack.c.bf16 %v2170, %v2169
      %s2172 = scalar_lea.vmem %s8, 16
      %v2173 = vld [vmem:[%s2172] sm:$0xf]
      %v2174 = vld [vmem:[%s2172 + $0x4] sm:$0xf]
      %v2175 = vld [vmem:[%s2172 + $0x8] sm:$0xf]
      %v2176 = vld [vmem:[%s2172 + $0xc] sm:$0xf]
      %s2177 = scalar_lea.vmem %s9, 1
      %v2178 = vld [vmem:[%s2177] sm:$0x1]
      %v2180 = vlaneseq
      %v2181 = vshrl.u32 %v2180, 7
      %v2182 = vsub.s32 0, %v2181
      %v2183 = vrot.slane %v2178, %v2182
      %v2189 = vunpack.c.l.b16 %v2173
      %v2190 = vunpack.c.l.b16 %v2174
      %v2191 = vunpack.c.l.b16 %v2175
      %v2192 = vunpack.c.l.b16 %v2176
      %v2193 = vpack.c.b16 %v2190, %v2189
      %v2194 = vpack.c.b16 %v2192, %v2191
      %v2198 = vsel %vm513, %v2171, 0
      %2200 = vmatprep.subr.bf16.mxu0 0
      %2201 = vmatpush1.bf16.msra.mxu0 %v2193
      %2202 = vmatprep.subr.bf16.mxu0 0
      %2203 = vmatpush1.bf16.msra.mxu0 %v2194
      %2204 = vmatprep.subr.bf16.mxu0 0
      %2205 = vmatpush1.bf16.msra.mxu0 0
      %2206 = vmatprep.subr.bf16.mxu0 0
      %2207 = vmatpush1.bf16.msra.mxu0 0
      %2208 = vmatprep.subr.bf16.mxu0 0
      %2209 = vmatpush1.bf16.msra.mxu0 0
      %2210 = vmatprep.subr.bf16.mxu0 0
      %2211 = vmatpush1.bf16.msra.mxu0 0
      %2212 = vmatprep.subr.bf16.mxu0 0
      %2213 = vmatpush1.bf16.msra.mxu0 0
      %2214 = vmatprep.subr.bf16.mxu0 0
      %2215 = vmatpush1.bf16.msra.mxu0 0
      %2216 = vmatprep.subr.bf16.mxu0 0
      %2217 = vmatpush1.bf16.msra.mxu0 0
      %2218 = vmatprep.subr.bf16.mxu0 0
      %2219 = vmatpush1.bf16.msra.mxu0 0
      %2220 = vmatprep.subr.bf16.mxu0 0
      %2221 = vmatpush1.bf16.msra.mxu0 0
      %2222 = vmatprep.subr.bf16.mxu0 0
      %2223 = vmatpush1.bf16.msra.mxu0 0
      %2224 = vmatprep.subr.bf16.mxu0 0
      %2225 = vmatpush1.bf16.msra.mxu0 0
      %2226 = vmatprep.subr.bf16.mxu0 0
      %2227 = vmatpush1.bf16.msra.mxu0 0
      %2228 = vmatprep.subr.bf16.mxu0 0
      %2229 = vmatpush1.bf16.msra.mxu0 0
      %2230 = vmatprep.subr.bf16.mxu0 0
      %2231 = vmatpush1.bf16.msra.mxu0 0
      %2232 = vmatprep.mubr.bf16.mxu0 0
      %2233 = vmatmul.mubr.bf16.gmra.mrb[0].mxu0 %v2198
      %v2234 = vpop.f32.mrb[0].mxu0
      %v2235 = vadd.f32 %v2183, %v2234
      %v2236 = vpop.f32.mrb[0].mxu0
      %v2237 = vpop.f32.mrb[0].mxu0
      %v2238 = vadd.f32 %v2183, %v2237
      %v2239 = vpop.f32.mrb[0].mxu0
      %2240 = vdwg.mxu0
      %v2241 = vmax.f32 %v2235, 0.0
      %v2242 = vmax.f32 %v2238, 0.0
      %v2243 = vpack.c.bf16 %v2242, %v2241
      %s2244 = scalar_lea.vmem %s10, 32
      %v2245 = vld [vmem:[%s2244] sm:$0xf]
      %v2246 = vld [vmem:[%s2244 + $0x4] sm:$0xf]
      %v2247 = vld [vmem:[%s2244 + $0x8] sm:$0xf]
      %v2248 = vld [vmem:[%s2244 + $0xc] sm:$0xf]
      %v2249 = vld [vmem:[%s2244 + $0x10] sm:$0xf]
      %v2250 = vld [vmem:[%s2244 + $0x14] sm:$0xf]
      %v2251 = vld [vmem:[%s2244 + $0x18] sm:$0xf]
      %v2252 = vld [vmem:[%s2244 + $0x1c] sm:$0xf]
      %s2253 = scalar_lea.vmem %s11, 1
      %v2254 = vld [vmem:[%s2253] sm:$0x1]
      %v2256 = vlaneseq
      %v2257 = vshrl.u32 %v2256, 7
      %v2258 = vsub.s32 0, %v2257
      %v2259 = vrot.slane %v2254, %v2258
      %v2269 = vunpack.c.l.b16 %v2245
      %v2270 = vunpack.c.l.b16 %v2246
      %v2271 = vunpack.c.l.b16 %v2247
      %v2272 = vunpack.c.l.b16 %v2248
      %v2273 = vunpack.c.l.b16 %v2249
      %v2274 = vunpack.c.l.b16 %v2250
      %v2275 = vunpack.c.l.b16 %v2251
      %v2276 = vunpack.c.l.b16 %v2252
      %v2277 = vpack.c.b16 %v2270, %v2269
      %v2278 = vpack.c.b16 %v2272, %v2271
      %v2279 = vpack.c.b16 %v2274, %v2273
      %v2280 = vpack.c.b16 %v2276, %v2275
      %v2286 = vsel %vm1342, %v2243, 0
      %2288 = vmatprep.subr.bf16.mxu0 0
      %2289 = vmatpush1.bf16.msra.mxu0 %v2277
      %2290 = vmatprep.subr.bf16.mxu0 0
      %2291 = vmatpush1.bf16.msra.mxu0 %v2278
      %2292 = vmatprep.subr.bf16.mxu0 0
      %2293 = vmatpush1.bf16.msra.mxu0 %v2279
      %2294 = vmatprep.subr.bf16.mxu0 0
      %2295 = vmatpush1.bf16.msra.mxu0 %v2280
      %2296 = vmatprep.subr.bf16.mxu0 0
      %2297 = vmatpush1.bf16.msra.mxu0 0
      %2298 = vmatprep.subr.bf16.mxu0 0
      %2299 = vmatpush1.bf16.msra.mxu0 0
      %2300 = vmatprep.subr.bf16.mxu0 0
      %2301 = vmatpush1.bf16.msra.mxu0 0
      %2302 = vmatprep.subr.bf16.mxu0 0
      %2303 = vmatpush1.bf16.msra.mxu0 0
      %2304 = vmatprep.subr.bf16.mxu0 0
      %2305 = vmatpush1.bf16.msra.mxu0 0
      %2306 = vmatprep.subr.bf16.mxu0 0
      %2307 = vmatpush1.bf16.msra.mxu0 0
      %2308 = vmatprep.subr.bf16.mxu0 0
      %2309 = vmatpush1.bf16.msra.mxu0 0
      %2310 = vmatprep.subr.bf16.mxu0 0
      %2311 = vmatpush1.bf16.msra.mxu0 0
      %2312 = vmatprep.subr.bf16.mxu0 0
      %2313 = vmatpush1.bf16.msra.mxu0 0
      %2314 = vmatprep.subr.bf16.mxu0 0
      %2315 = vmatpush1.bf16.msra.mxu0 0
      %2316 = vmatprep.subr.bf16.mxu0 0
      %2317 = vmatpush1.bf16.msra.mxu0 0
      %2318 = vmatprep.subr.bf16.mxu0 0
      %2319 = vmatpush1.bf16.msra.mxu0 0
      %2320 = vmatprep.mubr.bf16.mxu0 0
      %2321 = vmatmul.mubr.bf16.gmra.mrb[0].mxu0 %v2286
      %v2322 = vpop.f32.mrb[0].mxu0
      %v2323 = vadd.f32 %v2259, %v2322
      %v2324 = vpop.f32.mrb[0].mxu0
      %v2325 = vpop.f32.mrb[0].mxu0
      %v2326 = vadd.f32 %v2259, %v2325
      %v2327 = vpop.f32.mrb[0].mxu0
      %2328 = vdwg.mxu0
      %v2329 = vadd.f32 %v2169, %v2323
      %v2330 = vadd.f32 %v2170, %v2326
      %v2331 = vsel %vm513, %v2329, 0.0
      %2332 = vadd.xlane.f32.xlu0 %v2331
      %v2333 = vpop.xlane.xlu0 %2332
      %v2334 = vsel %vm513, %v2330, 0.0
      %2335 = vadd.xlane.f32.xlu0 %v2334
      %v2336 = vpop.xlane.xlu0 %2335
      %v2337 = vmul.f32 %v2333, %v1193
      %v2338 = vmul.f32 %v2336, %v1193
      %v2339 = vsub.f32 %v2329, %v2337
      %v2340 = vsub.f32 %v2330, %v2338
      %v2341 = vmul.f32 %v2339, %v2339
      %v2342 = vmul.f32 %v2340, %v2340
      %v2343 = vsel %vm513, %v2341, 0.0
      %2344 = vadd.xlane.f32.xlu0 %v2343
      %v2345 = vpop.xlane.xlu0 %2344
      %v2346 = vsel %vm513, %v2342, 0.0
      %2347 = vadd.xlane.f32.xlu0 %v2346
      %v2348 = vpop.xlane.xlu0 %2347
      %v2349 = vmul.f32 %v2345, %v1193
      %v2350 = vmul.f32 %v2348, %v1193
      %v2351 = vadd.f32 %v2349, 1e-05
      %v2352 = vadd.f32 %v2350, 1e-05
      %v2353 = vrsqrt.pop %v2351
      %v2354 = vrsqrt.pop %v2352
      %v2355 = vmul.f32 %v2339, %v2353
      %v2356 = vmul.f32 %v2340, %v2354
      %s2357 = scalar_lea.vmem %s12, 1
      %v2358 = vld [vmem:[%s2357] sm:$0x1]
      %v2360 = vlaneseq
      %v2361 = vshrl.u32 %v2360, 7
      %v2362 = vsub.s32 0, %v2361
      %v2363 = vrot.slane %v2358, %v2362
      %v2365 = vmul.f32 %v2355, %v2363
      %v2366 = vmul.f32 %v2356, %v2363
      %s2367 = scalar_lea.vmem %s13, 1
      %v2368 = vld [vmem:[%s2367] sm:$0x1]
      %v2370 = vlaneseq
      %v2371 = vshrl.u32 %v2370, 7
      %v2372 = vsub.s32 0, %v2371
      %v2373 = vrot.slane %v2368, %v2372
      %v2375 = vadd.f32 %v2365, %v2373
      %v2376 = vadd.f32 %v2366, %v2373
      %2377 = vst.msk [vmem:[%s483] sm:$0xff] %vm513, %v2375
      %2378 = vst.msk [vmem:[%s483 + $0x8] sm:$0xff] %vm513, %v2376
      %s2379 = smul.u32 2, %s25
      %p2380 = scmp.lt.s32.totalorder %s2379, 3
      %s2381 = scalar_select %p2380, %s2379, 3
      %s2382 = smul.addr %s2381, 8
      %s2383 = scalar_lea.vmem %s14, %s2382
      // Predicated region
      $region77: #{peptide_encoder_forward.1} parent=75 // pred_check
        %p2384 = pneg %p347
      $region78: #{peptide_encoder_forward.1} parent=75 // pred_check_branch
        %2386 = sbr.rel (%p2384) target = $region80
      $region79: #{peptide_encoder_forward.1} parent=75 // pred_region
        %s2387 = smul.u32 2, %s25
      $region80: #{peptide_encoder_forward.1} parent=75 // pred_fallthru
        _
    $region76: #{peptide_encoder_forward.1} parent=5 // pred_fallthru
      _
    %p2388 = scmp.le.s32.totalorder 2, %s20
    // Predicated region
    $region81: #{peptide_encoder_forward.1} parent=5 // pred_check
      %p2389 = pneg %p2388
    $region82: #{peptide_encoder_forward.1} parent=5 // pred_check_branch
      %2391 = sbr.rel (%p2389) target = $region84
    $region83: #{peptide_encoder_forward.1} parent=5 // pred_region
      %s2392 = ssub.s32 %s20, 2
      // Predicated region
      $region85: #{peptide_encoder_forward.1} parent=83 // pred_check
        %p2393 = pneg %p353
      $region86: #{peptide_encoder_forward.1} parent=83 // pred_check_branch
        %2395 = sbr.rel (%p2393) target = $region88
      $region87: #{peptide_encoder_forward.1} parent=83 // pred_region
        %s2396 = smul.u32 2, %s26
        %p2397 = scmp.lt.s32.totalorder %s2396, 3
        %s2398 = scalar_select %p2397, %s2396, 3
        %s2399 = smul.addr %s2398, 8
        %s2400 = scalar_lea.vmem %s14, %s2399
      $region88: #{peptide_encoder_forward.1} parent=83 // pred_fallthru
        _
    $region84: #{peptide_encoder_forward.1} parent=5 // pred_fallthru
      _
  $region6: #{peptide_encoder_forward.1} parent=0 // loop_footer
    %s24 = sadd.s32 1, %s20
  $region7: #{peptide_encoder_forward.1} parent=0 // loop_footer_branch
    %19 = sbr.rel target = $region3
  $region8: #{peptide_encoder_forward.1} parent=0 // loop_exit
    _

</llo_original>
